<compile_context>
chip_gen: v6e
topology: v6e:2x2x1
jax: 0.10.0
libtpu: 0.0.40
codegen_flags: <defaults>
</compile_context>

<pallas_src>
import functools
import math

import jax
import jax.numpy as jnp
import numpy as np
from jax.experimental import pallas as pl
from jax.experimental.pallas import tpu as pltpu


# ----------------------------------------------------------------------------
# Pallas kernel: im2col row block (built once per row block, reused across
# cout blocks) + single MXU matmul + folded-BN bias + optional ReLU.
# ----------------------------------------------------------------------------
def _conv_kernel(x_ref, w_ref, b_ref, o_ref, col_ref, *,
                 KH, KW, OWP, TILE_OH, CINP, stride, dilation, relu):
    # x_ref:   (Hp_eff, Wp_eff, CINP)       bf16 zero-padded NHWC image (resident)
    # w_ref:   (KH*KW*CINP, tile_co)        bf16 BN-folded weights for this cout block
    # b_ref:   (1, tile_co)                 f32  folded bias
    # o_ref:   (TILE_OH*OWP, tile_co)       output row block (lane dense)
    # col_ref: (TILE_OH, OWP, KH*KW*CINP)   bf16 VMEM im2col scratch (persists across j)
    oh_blk = pl.program_id(1)
    j = pl.program_id(2)

    # Build the im2col slab once per output-row block; reuse across cout blocks.
    @pl.when(j == 0)
    def _build_im2col():
        row0 = pl.multiple_of(oh_blk * (TILE_OH * stride), TILE_OH * stride)
        for kh in range(KH):
            for kw in range(KW):
                tap = kh * KW + kw
                if stride == 1:
                    rows = pl.ds(row0 + kh * dilation, TILE_OH)
                    cols = pl.ds(kw * dilation, OWP)
                else:
                    rows = pl.ds(row0 + kh * dilation, TILE_OH, stride=stride)
                    cols = pl.ds(kw * dilation, OWP, stride=stride)
                # tap * CINP is a multiple of 128 -> lane-tile aligned store.
                col_ref[:, :, tap * CINP:(tap + 1) * CINP] = x_ref[rows, cols, :]

    K = KH * KW * CINP
    # OWP % 8 == 0 -> clean sublane merge.
    col = col_ref[...].reshape(TILE_OH * OWP, K)
    acc = jnp.dot(col, w_ref[...], preferred_element_type=jnp.float32)
    y = acc + b_ref[...]
    if relu:
        y = jnp.maximum(y, 0.0)
    o_ref[...] = y.astype(o_ref.dtype)


# ----------------------------------------------------------------------------
# Helpers.
# ----------------------------------------------------------------------------
def _vmem_limit_bytes():
    try:
        cap = int(pltpu.get_tpu_info().vmem_capacity_bytes)
    except Exception:
        cap = 64 * 1024 * 1024  # conservative (v7x-sized) fallback
    # 3/4 of physical VMEM, capped at ~100 MiB (v5e/v6e) -> ~48 MiB on v7x.
    return min(cap * 3 // 4, 100 * 1024 * 1024)


def _pick_tile_oh(OH, OWp, K, Cin_pad, Hp, Wp, tile_co, out_itemsize, stride,
                  vmem_limit):
    budget = int(vmem_limit * 0.6)              # headroom for Mosaic scratch
    cap = max(1, 2048 // OWp)                   # keep live f32 result ~<= 1 MiB
    fixed = (2 * (Hp + cap * stride) * (Wp + 8 * stride) * Cin_pad * 2  # image slab x2
             + 2 * K * tile_co * 2                                      # weight slab x2
             + 2 * tile_co * 4)                                         # bias
    per_row = OWp * (2 * tile_co * out_itemsize   # double-buffered output block
                     + K * 2                      # im2col scratch
                     + tile_co * 4)               # live f32 matmul result
    t = (budget - fixed) // per_row if budget > fixed else 1
    t = max(1, min(int(t), cap))
    return min(t, OH)


# ----------------------------------------------------------------------------
# BasicConv wrapper.  NCHW in / NCHW out (PyTorch API); NHWC + bf16 internally.
# ----------------------------------------------------------------------------
def basic_conv(
    x,              # (N, Cin, H, W)  NCHW, float32
    weight,         # (Cout, Cin, KH, KW)
    conv_bias,      # (Cout,) or None
    bn_gamma,       # (Cout,)
    bn_beta,        # (Cout,)
    bn_mean,        # (Cout,)
    bn_var,         # (Cout,)
    *,
    stride=1,
    padding=0,
    dilation=1,
    relu=True,
    bn=True,
    eps=1e-5,
    out_dtype=jnp.float32,
    tile_co=None,
    tile_oh=None,
):
    N, Cin, H, W = x.shape
    Cout, Cin_w, KH, KW = weight.shape
    assert Cin_w == Cin, "groups != 1 not supported"  # TODO(synk): grouped conv

    OH = (H + 2 * padding - dilation * (KH - 1) - 1) // stride + 1
    OW = (W + 2 * padding - dilation * (KW - 1) - 1) // stride + 1
    Hp, Wp = H + 2 * padding, W + 2 * padding

    # ---- fold conv-bias + BN(eval) into per-channel scale / shift ----------
    # TODO(synk): BatchNorm training mode (batch statistics) not implemented.
    if bn:
        scale = bn_gamma / jnp.sqrt(bn_var + eps)           # (Cout,)
        shift = bn_beta - bn_mean * scale                   # (Cout,)
    else:
        scale = jnp.ones((Cout,), jnp.float32)
        shift = jnp.zeros((Cout,), jnp.float32)
    if conv_bias is not None:
        shift = shift + conv_bias * scale

    # ---- lane-dense paddings (ideally precomputed once at model init) ------
    Cin_pad = ((Cin + 127) // 128) * 128         # aligned im2col tap slots
    Coutp = ((Cout + 127) // 128) * 128          # lane-dense output
    OWp = ((OW + 7) // 8) * 8                    # sublane-friendly row blocks
    K = KH * KW * Cin_pad

    # (Cout, Cin, KH, KW) -> (KH*KW*Cin_pad, Coutp); BN scale folded into cols.
    w = jnp.transpose(weight, (2, 3, 1, 0)).astype(jnp.float32)  # (KH,KW,Cin,Cout)
    w = w * scale[None, None, None, :]
    if Cin_pad != Cin:
        w = jnp.pad(w, ((0, 0), (0, 0), (0, Cin_pad - Cin), (0, 0)))
    w = w.reshape(K, Cout)
    if Coutp != Cout:
        w = jnp.pad(w, ((0, 0), (0, Coutp - Cout)))
        shift = jnp.pad(shift, (0, Coutp - Cout))
    w = w.astype(jnp.bfloat16)
    bias = shift.reshape(1, Coutp).astype(jnp.float32)

    if tile_co is None:
        tile_co = 128                            # lane dense; safe on v5e/v7x too
    assert tile_co % 128 == 0 and Coutp % tile_co == 0
    n_co = Coutp // tile_co

    vmem_limit = int(_vmem_limit_bytes())
    osz = jnp.dtype(out_dtype).itemsize
    if tile_oh is None:
        tile_oh = _pick_tile_oh(OH, OWp, K, Cin_pad, Hp, Wp, tile_co, osz,
                                stride, vmem_limit)
    tile_oh = max(1, min(int(tile_oh), OH))
    n_oh = -(-OH // tile_oh)
    OHp = n_oh * tile_oh

    # Zero-padded NHWC bf16 image; extra bottom/right rows so the (padded)
    # last row/col blocks stay in-bounds (their extra outputs are sliced off).
    Hp_eff = max(Hp, (OHp - 1) * stride + (KH - 1) * dilation + 1)
    Wp_eff = max(Wp, (OWp - 1) * stride + (KW - 1) * dilation + 1)
    # TODO(synk): keep activations NHWC/bf16 between layers to drop this
    # transpose + pad HBM pass at the API boundary.
    x_nhwc = jnp.transpose(x, (0, 2, 3, 1)).astype(jnp.bfloat16)
    x_p = jnp.pad(
        x_nhwc,
        ((0, 0),
         (padding, padding + (Hp_eff - Hp)),
         (padding, padding + (Wp_eff - Wp)),
         (0, Cin_pad - Cin)))

    kernel = functools.partial(
        _conv_kernel, KH=KH, KW=KW, OWP=OWp, TILE_OH=tile_oh, CINP=Cin_pad,
        stride=stride, dilation=dilation, relu=relu)

    flops = 2 * N * OHp * OWp * K * Coutp
    w_reads = 1 if n_co == 1 else N * n_oh * n_co       # weight re-DMA pattern
    bytes_accessed = (N * Hp_eff * Wp_eff * Cin_pad * 2
                      + w_reads * K * tile_co * 2
                      + Coutp * 4
                      + N * OHp * OWp * Coutp * osz)

    out = pl.pallas_call(
        kernel,
        out_shape=jax.ShapeDtypeStruct((N, OHp * OWp, Coutp), out_dtype),
        grid_spec=pltpu.PrefetchScalarGridSpec(
            num_scalar_prefetch=0,
            grid=(N, n_oh, n_co),
            in_specs=[
                # one padded NHWC image per batch element; constant along
                # (oh, cout) axes -> stays VMEM resident across inner steps.
                pl.BlockSpec((None, Hp_eff, Wp_eff, Cin_pad),
                             lambda n, oh, j: (n, 0, 0, 0)),
                # weight slab for this cout block (resident when n_co == 1).
                pl.BlockSpec((K, tile_co), lambda n, oh, j: (0, j)),
                # folded bias for this cout block.
                pl.BlockSpec((1, tile_co), lambda n, oh, j: (0, j)),
            ],
            out_specs=pl.BlockSpec((None, tile_oh * OWp, tile_co),
                                   lambda n, oh, j: (n, oh, j)),
            scratch_shapes=[pltpu.VMEM((tile_oh, OWp, K), jnp.bfloat16)],
        ),
        compiler_params=pltpu.CompilerParams(
            # j (cout) is innermost & "arbitrary" so the im2col scratch built
            # at j == 0 is never split across TensorCores; N / oh shard freely.
            dimension_semantics=("parallel", "parallel", "arbitrary"),
            vmem_limit_bytes=vmem_limit,
        ),
        cost_estimate=pl.CostEstimate(flops=int(flops), transcendentals=0,
                                      bytes_accessed=int(bytes_accessed)),
    )(x_p, w, bias)

    # Strip OH/OW/Cout padding; back to NCHW only at the API boundary.
    y = out.reshape(N, OHp, OWp, Coutp)[:, :OH, :OW, :Cout]
    return jnp.transpose(y, (0, 3, 1, 2))


# ----------------------------------------------------------------------------
# Pure-JAX reference (sanity check only).
# ----------------------------------------------------------------------------
def basic_conv_ref(x, weight, conv_bias, g, b, m, v, *, stride, padding,
                   dilation, relu, bn, eps=1e-5):
    y = jax.lax.conv_general_dilated(
        x, weight,
        window_strides=(stride, stride),
        padding=[(padding, padding), (padding, padding)],
        rhs_dilation=(dilation, dilation),
        dimension_numbers=("NCHW", "OIHW", "NCHW"),
    )
    if conv_bias is not None:
        y = y + conv_bias[None, :, None, None]
    if bn:
        y = (y - m[None, :, None, None]) / jnp.sqrt(v[None, :, None, None] + eps)
        y = y * g[None, :, None, None] + b[None, :, None, None]
    if relu:
        y = jnp.maximum(y, 0.0)
    return y


if __name__ == "__main__":
    def run_case(seed, N, Cin, H, W, Cout, ksize, stride, padding, dilation,
                 relu_flag, bn_flag, bias_flag, **tile_kw):
        key = jax.random.PRNGKey(seed)
        kx, kw_, kb_, kg, kbt, km, kv = jax.random.split(key, 7)
        x = jax.random.normal(kx, (N, Cin, H, W), jnp.float32)
        weight = jax.random.normal(kw_, (Cout, Cin, ksize, ksize), jnp.float32) * 0.1
        conv_bias = (0.1 * jax.random.normal(kb_, (Cout,), jnp.float32)
                     if bias_flag else None)
        bn_gamma = 1.0 + 0.1 * jax.random.normal(kg, (Cout,), jnp.float32)
        bn_beta = 0.1 * jax.random.normal(kbt, (Cout,), jnp.float32)
        bn_mean = 0.05 * jax.random.normal(km, (Cout,), jnp.float32)
        bn_var = jnp.abs(1.0 + 0.1 * jax.random.normal(kv, (Cout,), jnp.float32))

        out = basic_conv(x, weight, conv_bias, bn_gamma, bn_beta, bn_mean, bn_var,
                         stride=stride, padding=padding, dilation=dilation,
                         relu=relu_flag, bn=bn_flag, **tile_kw)
        out = jax.block_until_ready(out)
        ref = basic_conv_ref(x, weight, conv_bias, bn_gamma, bn_beta, bn_mean,
                             bn_var, stride=stride, padding=padding,
                             dilation=dilation, relu=relu_flag, bn=bn_flag)
        # bf16 activations/weights on the MXU (f32 accumulation) -> modest tol.
        np.testing.assert_allclose(np.asarray(out), np.asarray(ref),
                                   rtol=3e-2, atol=3e-2)

    # BasicConv(in_planes=4, out_planes=8, kernel_size=3, stride=1, padding=1)
    run_case(0, N=2, Cin=4, H=16, W=16, Cout=8, ksize=3, stride=1, padding=1,
             dilation=1, relu_flag=True, bn_flag=True, bias_flag=False)

    # Exercise: multiple output-row blocks, multiple Cout blocks (im2col reuse
    # across j), OH/OW/Cout padding paths, conv-bias folding, relu=False.
    run_case(0, N=2, Cin=4, H=16, W=16, Cout=200, ksize=3, stride=1, padding=0,
             dilation=1, relu_flag=False, bn_flag=True, bias_flag=True,
             tile_oh=8, tile_co=128)

    print("KERNEL_OK")
</pallas_src>

<mosaic_0001>
module attributes {stable_mosaic.version = 11 : i64} {
  func.func @_conv_kernel(%arg0: i32, %arg1: i32, %arg2: i32, %arg3: memref<1x18x18x128xbf16, #tpu.memory_space<vmem>>, %arg4: memref<1152x128xbf16, #tpu.memory_space<vmem>>, %arg5: memref<1x128xf32, #tpu.memory_space<vmem>>, %arg6: memref<1x256x128xf32, #tpu.memory_space<vmem>>, %arg7: memref<16x16x1152xbf16, #tpu.memory_space<vmem>>) attributes {dimension_semantics = [#tpu.dimension_semantics<parallel>, #tpu.dimension_semantics<parallel>, #tpu.dimension_semantics<arbitrary>], iteration_bounds = array<i64: 2, 1, 1>, scalar_prefetch = 0 : i64, scratch_operands = 1 : i64, tpu.core_type = #tpu.core_type<tc>, window_params = [{transform_indices = @transform_0, window_bounds = array<i64: 1, 18, 18, 128>}, {transform_indices = @transform_1, window_bounds = array<i64: 1152, 128>}, {transform_indices = @transform_2, window_bounds = array<i64: 1, 128>}, {transform_indices = @transform_3, window_bounds = array<i64: 1, 256, 128>}]} {
    %c0_i32 = arith.constant 0 : i32
    %0 = arith.cmpi eq, %arg2, %c0_i32 : i32
    %1 = arith.extui %0 : i1 to i32
    %c0_i32_0 = arith.constant 0 : i32
    %2 = arith.cmpi ne, %1, %c0_i32_0 : i32
    scf.if %2 {
      %c16_i32 = arith.constant 16 : i32
      %15 = arith.muli %arg1, %c16_i32 : i32
      %16 = tpu.assume_multiple %15, 16 : i32
      %c0_i32_11 = arith.constant 0 : i32
      %17 = arith.addi %16, %c0_i32_11 : i32
      %c0_12 = arith.constant 0 : index
      %18 = arith.index_cast %17 : i32 to index
      %c0_13 = arith.constant 0 : index
      %c0_14 = arith.constant 0 : index
      %19 = vector.load %arg3[%c0_12, %18, %c0_13, %c0_14] : memref<1x18x18x128xbf16, #tpu.memory_space<vmem>>, vector<1x16x16x128xbf16>
      %20 = vector.shape_cast %19 : vector<1x16x16x128xbf16> to vector<16x16x128xbf16>
      %c0_15 = arith.constant 0 : index
      %c0_16 = arith.constant 0 : index
      %c0_17 = arith.constant 0 : index
      %21 = vector.load %arg7[%c0_15, %c0_16, %c0_17] : memref<16x16x1152xbf16, #tpu.memory_space<vmem>>, vector<16x16x128xbf16>
      tpu.vector_store %arg7[%c0_15, %c0_16, %c0_17], %20 {strides = array<i32>} : memref<16x16x1152xbf16, #tpu.memory_space<vmem>>, vector<16x16x128xbf16>,
      %c0_i32_18 = arith.constant 0 : i32
      %22 = arith.addi %16, %c0_i32_18 : i32
      %c0_19 = arith.constant 0 : index
      %23 = arith.index_cast %22 : i32 to index
      %c1 = arith.constant 1 : index
      %c0_20 = arith.constant 0 : index
      %24 = vector.load %arg3[%c0_19, %23, %c1, %c0_20] : memref<1x18x18x128xbf16, #tpu.memory_space<vmem>>, vector<1x16x16x128xbf16>
      %25 = vector.shape_cast %24 : vector<1x16x16x128xbf16> to vector<16x16x128xbf16>
      %c0_21 = arith.constant 0 : index
      %c0_22 = arith.constant 0 : index
      %c128 = arith.constant 128 : index
      %26 = vector.load %arg7[%c0_21, %c0_22, %c128] : memref<16x16x1152xbf16, #tpu.memory_space<vmem>>, vector<16x16x128xbf16>
      tpu.vector_store %arg7[%c0_21, %c0_22, %c128], %25 {strides = array<i32>} : memref<16x16x1152xbf16, #tpu.memory_space<vmem>>, vector<16x16x128xbf16>,
      %c0_i32_23 = arith.constant 0 : i32
      %27 = arith.addi %16, %c0_i32_23 : i32
      %c0_24 = arith.constant 0 : index
      %28 = arith.index_cast %27 : i32 to index
      %c2 = arith.constant 2 : index
      %c0_25 = arith.constant 0 : index
      %29 = vector.load %arg3[%c0_24, %28, %c2, %c0_25] : memref<1x18x18x128xbf16, #tpu.memory_space<vmem>>, vector<1x16x16x128xbf16>
      %30 = vector.shape_cast %29 : vector<1x16x16x128xbf16> to vector<16x16x128xbf16>
      %c0_26 = arith.constant 0 : index
      %c0_27 = arith.constant 0 : index
      %c256 = arith.constant 256 : index
      %31 = vector.load %arg7[%c0_26, %c0_27, %c256] : memref<16x16x1152xbf16, #tpu.memory_space<vmem>>, vector<16x16x128xbf16>
      tpu.vector_store %arg7[%c0_26, %c0_27, %c256], %30 {strides = array<i32>} : memref<16x16x1152xbf16, #tpu.memory_space<vmem>>, vector<16x16x128xbf16>,
      %c1_i32 = arith.constant 1 : i32
      %32 = arith.addi %16, %c1_i32 : i32
      %c0_28 = arith.constant 0 : index
      %33 = arith.index_cast %32 : i32 to index
      %c0_29 = arith.constant 0 : index
      %c0_30 = arith.constant 0 : index
      %34 = vector.load %arg3[%c0_28, %33, %c0_29, %c0_30] : memref<1x18x18x128xbf16, #tpu.memory_space<vmem>>, vector<1x16x16x128xbf16>
      %35 = vector.shape_cast %34 : vector<1x16x16x128xbf16> to vector<16x16x128xbf16>
      %c0_31 = arith.constant 0 : index
      %c0_32 = arith.constant 0 : index
      %c384 = arith.constant 384 : index
      %36 = vector.load %arg7[%c0_31, %c0_32, %c384] : memref<16x16x1152xbf16, #tpu.memory_space<vmem>>, vector<16x16x128xbf16>
      tpu.vector_store %arg7[%c0_31, %c0_32, %c384], %35 {strides = array<i32>} : memref<16x16x1152xbf16, #tpu.memory_space<vmem>>, vector<16x16x128xbf16>,
      %c1_i32_33 = arith.constant 1 : i32
      %37 = arith.addi %16, %c1_i32_33 : i32
      %c0_34 = arith.constant 0 : index
      %38 = arith.index_cast %37 : i32 to index
      %c1_35 = arith.constant 1 : index
      %c0_36 = arith.constant 0 : index
      %39 = vector.load %arg3[%c0_34, %38, %c1_35, %c0_36] : memref<1x18x18x128xbf16, #tpu.memory_space<vmem>>, vector<1x16x16x128xbf16>
      %40 = vector.shape_cast %39 : vector<1x16x16x128xbf16> to vector<16x16x128xbf16>
      %c0_37 = arith.constant 0 : index
      %c0_38 = arith.constant 0 : index
      %c512 = arith.constant 512 : index
      %41 = vector.load %arg7[%c0_37, %c0_38, %c512] : memref<16x16x1152xbf16, #tpu.memory_space<vmem>>, vector<16x16x128xbf16>
      tpu.vector_store %arg7[%c0_37, %c0_38, %c512], %40 {strides = array<i32>} : memref<16x16x1152xbf16, #tpu.memory_space<vmem>>, vector<16x16x128xbf16>,
      %c1_i32_39 = arith.constant 1 : i32
      %42 = arith.addi %16, %c1_i32_39 : i32
      %c0_40 = arith.constant 0 : index
      %43 = arith.index_cast %42 : i32 to index
      %c2_41 = arith.constant 2 : index
      %c0_42 = arith.constant 0 : index
      %44 = vector.load %arg3[%c0_40, %43, %c2_41, %c0_42] : memref<1x18x18x128xbf16, #tpu.memory_space<vmem>>, vector<1x16x16x128xbf16>
      %45 = vector.shape_cast %44 : vector<1x16x16x128xbf16> to vector<16x16x128xbf16>
      %c0_43 = arith.constant 0 : index
      %c0_44 = arith.constant 0 : index
      %c640 = arith.constant 640 : index
      %46 = vector.load %arg7[%c0_43, %c0_44, %c640] : memref<16x16x1152xbf16, #tpu.memory_space<vmem>>, vector<16x16x128xbf16>
      tpu.vector_store %arg7[%c0_43, %c0_44, %c640], %45 {strides = array<i32>} : memref<16x16x1152xbf16, #tpu.memory_space<vmem>>, vector<16x16x128xbf16>,
      %c2_i32 = arith.constant 2 : i32
      %47 = arith.addi %16, %c2_i32 : i32
      %c0_45 = arith.constant 0 : index
      %48 = arith.index_cast %47 : i32 to index
      %c0_46 = arith.constant 0 : index
      %c0_47 = arith.constant 0 : index
      %49 = vector.load %arg3[%c0_45, %48, %c0_46, %c0_47] : memref<1x18x18x128xbf16, #tpu.memory_space<vmem>>, vector<1x16x16x128xbf16>
      %50 = vector.shape_cast %49 : vector<1x16x16x128xbf16> to vector<16x16x128xbf16>
      %c0_48 = arith.constant 0 : index
      %c0_49 = arith.constant 0 : index
      %c768 = arith.constant 768 : index
      %51 = vector.load %arg7[%c0_48, %c0_49, %c768] : memref<16x16x1152xbf16, #tpu.memory_space<vmem>>, vector<16x16x128xbf16>
      tpu.vector_store %arg7[%c0_48, %c0_49, %c768], %50 {strides = array<i32>} : memref<16x16x1152xbf16, #tpu.memory_space<vmem>>, vector<16x16x128xbf16>,
      %c2_i32_50 = arith.constant 2 : i32
      %52 = arith.addi %16, %c2_i32_50 : i32
      %c0_51 = arith.constant 0 : index
      %53 = arith.index_cast %52 : i32 to index
      %c1_52 = arith.constant 1 : index
      %c0_53 = arith.constant 0 : index
      %54 = vector.load %arg3[%c0_51, %53, %c1_52, %c0_53] : memref<1x18x18x128xbf16, #tpu.memory_space<vmem>>, vector<1x16x16x128xbf16>
      %55 = vector.shape_cast %54 : vector<1x16x16x128xbf16> to vector<16x16x128xbf16>
      %c0_54 = arith.constant 0 : index
      %c0_55 = arith.constant 0 : index
      %c896 = arith.constant 896 : index
      %56 = vector.load %arg7[%c0_54, %c0_55, %c896] : memref<16x16x1152xbf16, #tpu.memory_space<vmem>>, vector<16x16x128xbf16>
      tpu.vector_store %arg7[%c0_54, %c0_55, %c896], %55 {strides = array<i32>} : memref<16x16x1152xbf16, #tpu.memory_space<vmem>>, vector<16x16x128xbf16>,
      %c2_i32_56 = arith.constant 2 : i32
      %57 = arith.addi %16, %c2_i32_56 : i32
      %c0_57 = arith.constant 0 : index
      %58 = arith.index_cast %57 : i32 to index
      %c2_58 = arith.constant 2 : index
      %c0_59 = arith.constant 0 : index
      %59 = vector.load %arg3[%c0_57, %58, %c2_58, %c0_59] : memref<1x18x18x128xbf16, #tpu.memory_space<vmem>>, vector<1x16x16x128xbf16>
      %60 = vector.shape_cast %59 : vector<1x16x16x128xbf16> to vector<16x16x128xbf16>
      %c0_60 = arith.constant 0 : index
      %c0_61 = arith.constant 0 : index
      %c1024 = arith.constant 1024 : index
      %61 = vector.load %arg7[%c0_60, %c0_61, %c1024] : memref<16x16x1152xbf16, #tpu.memory_space<vmem>>, vector<16x16x128xbf16>
      tpu.vector_store %arg7[%c0_60, %c0_61, %c1024], %60 {strides = array<i32>} : memref<16x16x1152xbf16, #tpu.memory_space<vmem>>, vector<16x16x128xbf16>,
    } else {
    }
    %c0 = arith.constant 0 : index
    %c0_1 = arith.constant 0 : index
    %c0_2 = arith.constant 0 : index
    %3 = vector.load %arg7[%c0, %c0_1, %c0_2] : memref<16x16x1152xbf16, #tpu.memory_space<vmem>>, vector<16x16x1152xbf16>
    %4 = vector.shape_cast %3 : vector<16x16x1152xbf16> to vector<256x1152xbf16>
    %c0_3 = arith.constant 0 : index
    %c0_4 = arith.constant 0 : index
    %5 = vector.load %arg4[%c0_3, %c0_4] : memref<1152x128xbf16, #tpu.memory_space<vmem>>, vector<1152x128xbf16>
    %cst = arith.constant dense<0.000000e+00> : vector<256x128xf32>
    %6 = tpu.matmul %4, %5, %cst {dimension_numbers = #tpu.dot_dimension_numbers<[1], [0], [0], [1], [0, 0, 1, 1], [], []>} : vector<256x1152xbf16>, vector<1152x128xbf16>, vector<256x128xf32> -> vector<256x128xf32>
    %c0_5 = arith.constant 0 : index
    %c0_6 = arith.constant 0 : index
    %7 = vector.load %arg5[%c0_5, %c0_6] : memref<1x128xf32, #tpu.memory_space<vmem>>, vector<1x128xf32>
    %8 = vector.broadcast %7 : vector<1x128xf32> to vector<256x128xf32>
    %9 = arith.addf %6, %8 : vector<256x128xf32>
    %cst_7 = arith.constant 0.000000e+00 : f32
    %10 = vector.broadcast %cst_7 : f32 to vector<256x128xf32>
    %11 = arith.maximumf %9, %10 : vector<256x128xf32>
    %c0_8 = arith.constant 0 : index
    %c0_9 = arith.constant 0 : index
    %c0_10 = arith.constant 0 : index
    %12 = vector.load %arg6[%c0_8, %c0_9, %c0_10] : memref<1x256x128xf32, #tpu.memory_space<vmem>>, vector<1x256x128xf32>
    %13 = vector.shape_cast %12 : vector<1x256x128xf32> to vector<256x128xf32>
    %14 = vector.shape_cast %11 : vector<256x128xf32> to vector<1x256x128xf32>
    tpu.vector_store %arg6[%c0_8, %c0_9, %c0_10], %14 {strides = array<i32>} : memref<1x256x128xf32, #tpu.memory_space<vmem>>, vector<1x256x128xf32>,
    return
  }
  func.func @transform_0(%arg0: i32, %arg1: i32, %arg2: i32) -> (i32, i32, i32, i32) {
    %c0_i32 = arith.constant 0 : i32
    %c0_i32_0 = arith.constant 0 : i32
    %c0_i32_1 = arith.constant 0 : i32
    %c0_i32_2 = arith.constant 0 : i32
    return %arg0, %c0_i32, %c0_i32_0, %c0_i32_1 : i32, i32, i32, i32
  }
  func.func @transform_1(%arg0: i32, %arg1: i32, %arg2: i32) -> (i32, i32) {
    %c0_i32 = arith.constant 0 : i32
    %c0_i32_0 = arith.constant 0 : i32
    return %c0_i32, %arg2 : i32, i32
  }
  func.func @transform_2(%arg0: i32, %arg1: i32, %arg2: i32) -> (i32, i32) {
    %c0_i32 = arith.constant 0 : i32
    %c0_i32_0 = arith.constant 0 : i32
    return %c0_i32, %arg2 : i32, i32
  }
  func.func @transform_3(%arg0: i32, %arg1: i32, %arg2: i32) -> (i32, i32, i32) {
    %c0_i32 = arith.constant 0 : i32
    return %arg0, %arg1, %arg2 : i32, i32, i32
  }
}

</mosaic_0001>

<llo_original>
// kernel: tpu_custom_call.1
$region0: #{tpu_custom_call.1}
  #allocation0 [shape = 'u32[]', space=smem, size = 0x4, offset = 0x4, fixed_abs, tag = 'smem constant byte address 0x4 - core index']
  #allocation1 [shape = 'u32[144,128]{1,0:T(1,128)}', space=vmem, size = 0x12000, scoped, tag = 'internal scratch']
  #allocation2 [shape = 'bf16[16,16,1152]{2,1,0:T(8,128)(2,1)}', space=vmem, size = 0x90000, scoped, tag = 'scratch operand']
  %s0 = inlined_call_operand.vmem [shape: bf16[2,18,18,128], index: 0, kind: input, shape index: {}]
  %s1 = inlined_call_operand.vmem [shape: bf16[1152,128], index: 1, kind: input, shape index: {}]
  %s2 = inlined_call_operand.vmem [shape: f32[1,128], index: 2, kind: input, shape index: {}]
  %s3 = inlined_call_operand.hbm [shape: f32[2,256,128], index: 3, kind: output, shape index: {}]
  %s4 = sld [smem:[#allocation0]]
  $region49: #{tpu_custom_call.1} parent=0
    _
  %s6 = ssub.s32 1, %s4
  %s7 = scalar_select 0, %s6, %s4
  $region1: #{tpu_custom_call.1} parent=0
    #allocation3 [shape = 'u8[262144]{0}', space=vmem, size = 0x40000, scoped, tag = 'output window, operand 0']
    #allocation4 [shape = 's32[2]{0}', space=sflag, size = 0x8, scoped, tag = 'scoped memory for tpu_custom_call.1']
    %8 = vsyncpa [#allocation4], 0
    %s9 = scalar_lea.sflag [#allocation4], 1
    %10 = vsyncpa %s9, 0
    loop: start=0, step=1, limit=4
    $region2: #{tpu_custom_call.1} parent=1 // loop_pre_header
      _
    $region3: #{tpu_custom_call.1} parent=1 // loop_header
      %s12 = sphi 0, %s16
      %p13 = scmp.ge.s32.totalorder %s12, 4
      %s19 = sphi 0, %s38
      %s20 = sphi 0, %s34
      %s21 = sphi 0, %s30
      %s22 = sphi 0, %s19
      %s23 = sphi 0, %s20
      %s24 = sphi 0, %s21
      %s25 = sphi 0, %s22
      %s26 = sphi 0, %s23
      %s27 = sphi 0, %s24
      %s41 = sphi 0, %s43
      %s44 = sphi 0, %s41
      %s45 = sphi 0, %s44
      %s61 = sphi 0, %s45
      %s67 = sphi 0, %s69
      %s70 = sphi 0, %s67
      %s71 = sphi 0, %s70
      %s87 = sphi 0, %s71
      %s93 = sphi 0, %s95
      %s96 = sphi 0, %s93
      %s97 = sphi 0, %s96
      %s113 = sphi 0, %s97
      %s123 = sphi 0, %s125
      %s126 = sphi 0, %s123
      %s127 = sphi 0, %s126
      %s143 = sphi 0, %s127
    $region4: #{tpu_custom_call.1} parent=1 // loop_header_branch
      %15 = sbr.rel (%p13) target = $region8
    $region5: #{tpu_custom_call.1} parent=1 // loop_body
      %s17 = ssub.s32 %s12, 1
      %s18 = ssub.s32 %s12, 2
      %s28 = sadd.s32 1, %s21
      %p29 = scmp.ge.s32.totalorder %s28, 1
      %s30 = scalar_select %p29, 0, %s28
      %s31 = sadd.s32 1, %s20
      %s32 = scalar_select %p29, %s31, %s20
      %p33 = scmp.ge.s32.totalorder %s32, 1
      %s34 = scalar_select %p33, 0, %s32
      %s35 = sadd.s32 1, %s19
      %s36 = scalar_select %p33, %s35, %s19
      %p37 = scmp.ge.s32.totalorder %s36, 2
      %s38 = scalar_select %p37, 0, %s36
      %s39 = ssub.s32 %s19, %s38
      %p40 = scmp.eq.s32.totalorder %s39, 0
      %s42 = sadd.s32 %s41, 1
      %s43 = scalar_select %p40, %s41, %s42
      %p46 = pneg %p40
      %p47 = scmp.eq.s32.totalorder %s12, 1
      %p48 = por %p46, %p47
      %p49 = scmp.ne.s32.totalorder %s41, %s44
      %p50 = scmp.eq.s32.totalorder %s12, 0
      %p51 = por %p49, %p50
      %p52 = scmp.ne.s32.totalorder %s41, %s44
      %p53 = scmp.eq.s32.totalorder %s17, 1
      %p54 = por %p52, %p53
      %p55 = scmp.ne.s32.totalorder %s44, %s45
      %p56 = scmp.eq.s32.totalorder %s17, 0
      %p57 = por %p55, %p56
      %p58 = scmp.ne.s32.totalorder %s44, %s45
      %p59 = scmp.eq.s32.totalorder %s18, 1
      %p60 = por %p58, %p59
      %p62 = scmp.ne.s32.totalorder %s45, %s61
      %p63 = scmp.eq.s32.totalorder %s18, 0
      %p64 = por %p62, %p63
      %s65 = ssub.s32 %s21, %s30
      %p66 = scmp.eq.s32.totalorder %s65, 0
      %s68 = sadd.s32 %s67, 1
      %s69 = scalar_select %p66, %s67, %s68
      %p72 = pneg %p66
      %p73 = scmp.eq.s32.totalorder %s12, 1
      %p74 = por %p72, %p73
      %p75 = scmp.ne.s32.totalorder %s67, %s70
      %p76 = scmp.eq.s32.totalorder %s12, 0
      %p77 = por %p75, %p76
      %p78 = scmp.ne.s32.totalorder %s67, %s70
      %p79 = scmp.eq.s32.totalorder %s17, 1
      %p80 = por %p78, %p79
      %p81 = scmp.ne.s32.totalorder %s70, %s71
      %p82 = scmp.eq.s32.totalorder %s17, 0
      %p83 = por %p81, %p82
      %p84 = scmp.ne.s32.totalorder %s70, %s71
      %p85 = scmp.eq.s32.totalorder %s18, 1
      %p86 = por %p84, %p85
      %p88 = scmp.ne.s32.totalorder %s71, %s87
      %p89 = scmp.eq.s32.totalorder %s18, 0
      %p90 = por %p88, %p89
      %s91 = ssub.s32 %s21, %s30
      %p92 = scmp.eq.s32.totalorder %s91, 0
      %s94 = sadd.s32 %s93, 1
      %s95 = scalar_select %p92, %s93, %s94
      %p98 = pneg %p92
      %p99 = scmp.eq.s32.totalorder %s12, 1
      %p100 = por %p98, %p99
      %p101 = scmp.ne.s32.totalorder %s93, %s96
      %p102 = scmp.eq.s32.totalorder %s12, 0
      %p103 = por %p101, %p102
      %p104 = scmp.ne.s32.totalorder %s93, %s96
      %p105 = scmp.eq.s32.totalorder %s17, 1
      %p106 = por %p104, %p105
      %p107 = scmp.ne.s32.totalorder %s96, %s97
      %p108 = scmp.eq.s32.totalorder %s17, 0
      %p109 = por %p107, %p108
      %p110 = scmp.ne.s32.totalorder %s96, %s97
      %p111 = scmp.eq.s32.totalorder %s18, 1
      %p112 = por %p110, %p111
      %p114 = scmp.ne.s32.totalorder %s97, %s113
      %p115 = scmp.eq.s32.totalorder %s18, 0
      %p116 = por %p114, %p115
      %s117 = ssub.s32 %s19, %s38
      %s118 = ssub.s32 %s20, %s34
      %s119 = sor.u32 %s117, %s118
      %s120 = ssub.s32 %s21, %s30
      %s121 = sor.u32 %s119, %s120
      %p122 = scmp.eq.s32.totalorder %s121, 0
      %s124 = sadd.s32 %s123, 1
      %s125 = scalar_select %p122, %s123, %s124
      %p128 = pneg %p122
      %p129 = scmp.eq.s32.totalorder %s12, 1
      %p130 = por %p128, %p129
      %p131 = scmp.ne.s32.totalorder %s123, %s126
      %p132 = scmp.eq.s32.totalorder %s12, 0
      %p133 = por %p131, %p132
      %p134 = scmp.ne.s32.totalorder %s123, %s126
      %p135 = scmp.eq.s32.totalorder %s17, 1
      %p136 = por %p134, %p135
      %p137 = scmp.ne.s32.totalorder %s126, %s127
      %p138 = scmp.eq.s32.totalorder %s17, 0
      %p139 = por %p137, %p138
      %p140 = scmp.ne.s32.totalorder %s126, %s127
      %p141 = scmp.eq.s32.totalorder %s18, 1
      %p142 = por %p140, %p141
      %p144 = scmp.ne.s32.totalorder %s127, %s143
      %p145 = scmp.eq.s32.totalorder %s18, 0
      %p146 = por %p144, %p145
      %p147 = scmp.le.s32.totalorder 1, %s12
      %p148 = scmp.lt.s32.totalorder %s12, 3
      %p149 = pnand %p147, %p148
      %p150 = pneg %p149
      // Predicated region
      $region9: #{tpu_custom_call.1} parent=5 // pred_check
        _
      $region10: #{tpu_custom_call.1} parent=5 // pred_check_branch
        %152 = sbr.rel (%p149) target = $region12
      $region11: #{tpu_custom_call.1} parent=5 // pred_region
        %s153 = ssub.s32 %s12, 1
        // Predicated region
        $region13: #{tpu_custom_call.1} parent=11 // pred_check
          %p154 = pneg %p83
        $region14: #{tpu_custom_call.1} parent=11 // pred_check_branch
          %156 = sbr.rel (%p154) target = $region16
        $region15: #{tpu_custom_call.1} parent=11 // pred_region
          %p157 = scmp.lt.s32.totalorder %s24, 0
          %s158 = scalar_select %p157, %s24, 0
          %s159 = smul.addr %s158, 4
          %s160 = scalar_lea.vmem %s1, %s159
        $region16: #{tpu_custom_call.1} parent=11 // pred_fallthru
          _
        // Predicated region
        $region17: #{tpu_custom_call.1} parent=11 // pred_check
          %p161 = pneg %p109
        $region18: #{tpu_custom_call.1} parent=11 // pred_check_branch
          %163 = sbr.rel (%p161) target = $region20
        $region19: #{tpu_custom_call.1} parent=11 // pred_region
          %p164 = scmp.lt.s32.totalorder %s24, 0
          %s165 = scalar_select %p164, %s24, 0
          %s166 = scalar_lea.vmem %s2, %s165
        $region20: #{tpu_custom_call.1} parent=11 // pred_fallthru
          _
      $region12: #{tpu_custom_call.1} parent=5 // pred_fallthru
        _
      %p167 = scmp.lt.s32.totalorder %s12, 2
      // Predicated region
      $region21: #{tpu_custom_call.1} parent=5 // pred_check
        %p168 = pneg %p167
      $region22: #{tpu_custom_call.1} parent=5 // pred_check_branch
        %170 = sbr.rel (%p168) target = $region24
      $region23: #{tpu_custom_call.1} parent=5 // pred_region
        // Predicated region
        $region25: #{tpu_custom_call.1} parent=23 // pred_check
          %p171 = pneg %p51
        $region26: #{tpu_custom_call.1} parent=23 // pred_check_branch
          %173 = sbr.rel (%p171) target = $region28
        $region27: #{tpu_custom_call.1} parent=23 // pred_region
          %p174 = scmp.lt.s32.totalorder %s19, 1
          %s175 = scalar_select %p174, %s19, 1
          %s176 = smul.addr %s175, 54
          %s177 = smul.addr %s176, 4
          %s178 = scalar_lea.vmem %s0, %s177
        $region28: #{tpu_custom_call.1} parent=23 // pred_fallthru
          _
      $region24: #{tpu_custom_call.1} parent=5 // pred_fallthru
        _
      %p179 = scmp.le.s32.totalorder 1, %s12
      %p180 = scmp.lt.s32.totalorder %s12, 3
      %p181 = pnand %p179, %p180
      %p182 = pneg %p181
      // Predicated region
      $region29: #{tpu_custom_call.1} parent=5 // pred_check
        _
      $region30: #{tpu_custom_call.1} parent=5 // pred_check_branch
        %184 = sbr.rel (%p181) target = $region32
      $region31: #{tpu_custom_call.1} parent=5 // pred_region
        %s185 = ssub.s32 %s12, 1
        %p186 = scmp.lt.s32.totalorder %s22, 1
        %s187 = scalar_select %p186, %s22, 1
        %s188 = smul.addr %s187, 54
        %s189 = smul.addr %s188, 4
        %s190 = scalar_lea.vmem %s0, %s189
        %p191 = pneg %p57
        %p192 = pneg %p54
        %p193 = scmp.lt.s32.totalorder %s24, 0
        %s194 = scalar_select %p193, %s24, 0
        %s195 = smul.addr %s194, 4
        %s196 = scalar_lea.vmem %s1, %s195
        %p197 = pneg %p83
        %p198 = pneg %p80
        %p199 = scmp.lt.s32.totalorder %s24, 0
        %s200 = scalar_select %p199, %s24, 0
        %s201 = scalar_lea.vmem %s2, %s200
        %p202 = pneg %p109
        %p203 = pneg %p106
        %p204 = pneg %p139
        %p205 = pneg %p136
        %s206 = sand.u32 %s126, 1
        %s207 = scalar_lea.sflag [#allocation4], %s206
        %s208 = sand.u32 %s126, 1
        %s209 = smul.addr %s208, 256
        %s210 = scalar_lea.vmem [#allocation3], %s209
        %p211 = scmp.lt.s32.totalorder %s22, 1
        %s212 = scalar_select %p211, %s22, 1
        %s213 = smul.addr %s212, 54
        %s214 = smul.addr %s213, 4
        %s215 = scalar_lea.vmem %s0, %s214
        %p216 = scmp.lt.s32.totalorder %s24, 0
        %s217 = scalar_select %p216, %s24, 0
        %s218 = smul.addr %s217, 4
        %s219 = scalar_lea.vmem %s1, %s218
        %p220 = scmp.lt.s32.totalorder %s24, 0
        %s221 = scalar_select %p220, %s24, 0
        %s222 = scalar_lea.vmem %s2, %s221
        %s223 = smul.u32 32, %s23
        %p225 = scmp.eq.s32.totalorder %s24, 0
        // Predicated region
        $region33: #{tpu_custom_call.1} parent=31 // pred_check
          %p226 = pneg %p225
        $region34: #{tpu_custom_call.1} parent=31 // pred_check_branch
          %228 = sbr.rel (%p226) target = $region36
        $region35: #{tpu_custom_call.1} parent=31 // pred_region
          %s229 = smul.u32 %s23, 16
          %s230 = smul.u32 %s229, 3
          %s231 = smul.addr %s230, 4
          %s232 = scalar_lea.vmem %s215, %s231
          %v233 = vld [vmem:[%s232] sm:$0xf]
          %v234 = vld [vmem:[%s232 + $0x4] sm:$0xf]
          %v235 = vld [vmem:[%s232 + $0xc] sm:$0xf]
          %v236 = vld [vmem:[%s232 + $0x10] sm:$0xf]
          %v237 = vld [vmem:[%s232 + $0x18] sm:$0xf]
          %v238 = vld [vmem:[%s232 + $0x1c] sm:$0xf]
          %v239 = vld [vmem:[%s232 + $0x24] sm:$0xf]
          %v240 = vld [vmem:[%s232 + $0x28] sm:$0xf]
          %v241 = vld [vmem:[%s232 + $0x30] sm:$0xf]
          %v242 = vld [vmem:[%s232 + $0x34] sm:$0xf]
          %v243 = vld [vmem:[%s232 + $0x3c] sm:$0xf]
          %v244 = vld [vmem:[%s232 + $0x40] sm:$0xf]
          %v245 = vld [vmem:[%s232 + $0x48] sm:$0xf]
          %v246 = vld [vmem:[%s232 + $0x4c] sm:$0xf]
          %v247 = vld [vmem:[%s232 + $0x54] sm:$0xf]
          %v248 = vld [vmem:[%s232 + $0x58] sm:$0xf]
          %v249 = vld [vmem:[%s232 + $0x60] sm:$0xf]
          %v250 = vld [vmem:[%s232 + $0x64] sm:$0xf]
          %v251 = vld [vmem:[%s232 + $0x6c] sm:$0xf]
          %v252 = vld [vmem:[%s232 + $0x70] sm:$0xf]
          %v253 = vld [vmem:[%s232 + $0x78] sm:$0xf]
          %v254 = vld [vmem:[%s232 + $0x7c] sm:$0xf]
          %v255 = vld [vmem:[%s232 + $0x84] sm:$0xf]
          %v256 = vld [vmem:[%s232 + $0x88] sm:$0xf]
          %v257 = vld [vmem:[%s232 + $0x90] sm:$0xf]
          %v258 = vld [vmem:[%s232 + $0x94] sm:$0xf]
          %v259 = vld [vmem:[%s232 + $0x9c] sm:$0xf]
          %v260 = vld [vmem:[%s232 + $0xa0] sm:$0xf]
          %v261 = vld [vmem:[%s232 + $0xa8] sm:$0xf]
          %v262 = vld [vmem:[%s232 + $0xac] sm:$0xf]
          %v263 = vld [vmem:[%s232 + $0xb4] sm:$0xf]
          %v264 = vld [vmem:[%s232 + $0xb8] sm:$0xf]
          %265 = vst [vmem:[#allocation2] sm:$0xf] %v233
          %266 = vst [vmem:[#allocation2 + $0x24] sm:$0xf] %v234
          %267 = vst [vmem:[#allocation2 + $0x48] sm:$0xf] %v235
          %268 = vst [vmem:[#allocation2 + $0x6c] sm:$0xf] %v236
          %269 = vst [vmem:[#allocation2 + $0x90] sm:$0xf] %v237
          %270 = vst [vmem:[#allocation2 + $0xb4] sm:$0xf] %v238
          %271 = vst [vmem:[#allocation2 + $0xd8] sm:$0xf] %v239
          %272 = vst [vmem:[#allocation2 + $0xfc] sm:$0xf] %v240
          %273 = vst [vmem:[#allocation2 + $0x120] sm:$0xf] %v241
          %274 = vst [vmem:[#allocation2 + $0x144] sm:$0xf] %v242
          %275 = vst [vmem:[#allocation2 + $0x168] sm:$0xf] %v243
          %276 = vst [vmem:[#allocation2 + $0x18c] sm:$0xf] %v244
          %277 = vst [vmem:[#allocation2 + $0x1b0] sm:$0xf] %v245
          %278 = vst [vmem:[#allocation2 + $0x1d4] sm:$0xf] %v246
          %279 = vst [vmem:[#allocation2 + $0x1f8] sm:$0xf] %v247
          %280 = vst [vmem:[#allocation2 + $0x21c] sm:$0xf] %v248
          %281 = vst [vmem:[#allocation2 + $0x240] sm:$0xf] %v249
          %282 = vst [vmem:[#allocation2 + $0x264] sm:$0xf] %v250
          %283 = vst [vmem:[#allocation2 + $0x288] sm:$0xf] %v251
          %284 = vst [vmem:[#allocation2 + $0x2ac] sm:$0xf] %v252
          %285 = vst [vmem:[#allocation2 + $0x2d0] sm:$0xf] %v253
          %286 = vst [vmem:[#allocation2 + $0x2f4] sm:$0xf] %v254
          %287 = vst [vmem:[#allocation2 + $0x318] sm:$0xf] %v255
          %288 = vst [vmem:[#allocation2 + $0x33c] sm:$0xf] %v256
          %289 = vst [vmem:[#allocation2 + $0x360] sm:$0xf] %v257
          %290 = vst [vmem:[#allocation2 + $0x384] sm:$0xf] %v258
          %291 = vst [vmem:[#allocation2 + $0x3a8] sm:$0xf] %v259
          %292 = vst [vmem:[#allocation2 + $0x3cc] sm:$0xf] %v260
          %293 = vst [vmem:[#allocation2 + $0x3f0] sm:$0xf] %v261
          %294 = vst [vmem:[#allocation2 + $0x414] sm:$0xf] %v262
          %295 = vst [vmem:[#allocation2 + $0x438] sm:$0xf] %v263
          %296 = vst [vmem:[#allocation2 + $0x45c] sm:$0xf] %v264
          %v297 = vld [vmem:[%s232] sm:$0xf]
          %v298 = vld [vmem:[%s232 + $0x4] sm:$0xf]
          %v299 = vld [vmem:[%s232 + $0x8] sm:$0x1]
          %v300 = vld [vmem:[%s232 + $0xc] sm:$0xf]
          %v301 = vld [vmem:[%s232 + $0x10] sm:$0xf]
          %v302 = vld [vmem:[%s232 + $0x14] sm:$0x1]
          %v303 = vld [vmem:[%s232 + $0x18] sm:$0xf]
          %v304 = vld [vmem:[%s232 + $0x1c] sm:$0xf]
          %v305 = vld [vmem:[%s232 + $0x20] sm:$0x1]
          %v306 = vld [vmem:[%s232 + $0x24] sm:$0xf]
          %v307 = vld [vmem:[%s232 + $0x28] sm:$0xf]
          %v308 = vld [vmem:[%s232 + $0x2c] sm:$0x1]
          %v309 = vld [vmem:[%s232 + $0x30] sm:$0xf]
          %v310 = vld [vmem:[%s232 + $0x34] sm:$0xf]
          %v311 = vld [vmem:[%s232 + $0x38] sm:$0x1]
          %v312 = vld [vmem:[%s232 + $0x3c] sm:$0xf]
          %v313 = vld [vmem:[%s232 + $0x40] sm:$0xf]
          %v314 = vld [vmem:[%s232 + $0x44] sm:$0x1]
          %v315 = vld [vmem:[%s232 + $0x48] sm:$0xf]
          %v316 = vld [vmem:[%s232 + $0x4c] sm:$0xf]
          %v317 = vld [vmem:[%s232 + $0x50] sm:$0x1]
          %v318 = vld [vmem:[%s232 + $0x54] sm:$0xf]
          %v319 = vld [vmem:[%s232 + $0x58] sm:$0xf]
          %v320 = vld [vmem:[%s232 + $0x5c] sm:$0x1]
          %v321 = vld [vmem:[%s232 + $0x60] sm:$0xf]
          %v322 = vld [vmem:[%s232 + $0x64] sm:$0xf]
          %v323 = vld [vmem:[%s232 + $0x68] sm:$0x1]
          %v324 = vld [vmem:[%s232 + $0x6c] sm:$0xf]
          %v325 = vld [vmem:[%s232 + $0x70] sm:$0xf]
          %v326 = vld [vmem:[%s232 + $0x74] sm:$0x1]
          %v327 = vld [vmem:[%s232 + $0x78] sm:$0xf]
          %v328 = vld [vmem:[%s232 + $0x7c] sm:$0xf]
          %v329 = vld [vmem:[%s232 + $0x80] sm:$0x1]
          %v330 = vld [vmem:[%s232 + $0x84] sm:$0xf]
          %v331 = vld [vmem:[%s232 + $0x88] sm:$0xf]
          %v332 = vld [vmem:[%s232 + $0x8c] sm:$0x1]
          %v333 = vld [vmem:[%s232 + $0x90] sm:$0xf]
          %v334 = vld [vmem:[%s232 + $0x94] sm:$0xf]
          %v335 = vld [vmem:[%s232 + $0x98] sm:$0x1]
          %v336 = vld [vmem:[%s232 + $0x9c] sm:$0xf]
          %v337 = vld [vmem:[%s232 + $0xa0] sm:$0xf]
          %v338 = vld [vmem:[%s232 + $0xa4] sm:$0x1]
          %v339 = vld [vmem:[%s232 + $0xa8] sm:$0xf]
          %v340 = vld [vmem:[%s232 + $0xac] sm:$0xf]
          %v341 = vld [vmem:[%s232 + $0xb0] sm:$0x1]
          %v342 = vld [vmem:[%s232 + $0xb4] sm:$0xf]
          %v343 = vld [vmem:[%s232 + $0xb8] sm:$0xf]
          %v344 = vld [vmem:[%s232 + $0xbc] sm:$0x1]
          %vm345 = vsmask.f32 3328
          %vm346 = vsmask.f32 7440
          %vm347 = vmor %vm345, %vm346
          %v349 = vshrl.u32 %v297, 16
          %v351 = vrot.slane %v349, 4
          %v352 = vshll.u32 %v297, 16
          %v354 = vrot.slane %v352, 5
          %v355 = vor.u32 %v351, %v354
          %v356 = vrot.slane %v355, 4
          %v358 = vshll.u32 %v298, 16
          %v360 = vrot.slane %v358, 5
          %v361 = vsel %vm347, %v356, %v360
          %v362 = vshrl.u32 %v298, 16
          %v364 = vrot.slane %v362, 4
          %v365 = vor.u32 %v364, %v360
          %v366 = vrot.slane %v365, 4
          %v368 = vshll.u32 %v299, 16
          %v370 = vrot.slane %v368, 5
          %v371 = vsel %vm347, %v366, %v370
          %v373 = vshrl.u32 %v300, 16
          %v375 = vrot.slane %v373, 4
          %v376 = vshll.u32 %v300, 16
          %v378 = vrot.slane %v376, 5
          %v379 = vor.u32 %v375, %v378
          %v380 = vrot.slane %v379, 4
          %v382 = vshll.u32 %v301, 16
          %v384 = vrot.slane %v382, 5
          %v385 = vsel %vm347, %v380, %v384
          %v386 = vshrl.u32 %v301, 16
          %v388 = vrot.slane %v386, 4
          %v389 = vor.u32 %v388, %v384
          %v390 = vrot.slane %v389, 4
          %v392 = vshll.u32 %v302, 16
          %v394 = vrot.slane %v392, 5
          %v395 = vsel %vm347, %v390, %v394
          %v397 = vshrl.u32 %v303, 16
          %v399 = vrot.slane %v397, 4
          %v400 = vshll.u32 %v303, 16
          %v402 = vrot.slane %v400, 5
          %v403 = vor.u32 %v399, %v402
          %v404 = vrot.slane %v403, 4
          %v406 = vshll.u32 %v304, 16
          %v408 = vrot.slane %v406, 5
          %v409 = vsel %vm347, %v404, %v408
          %v410 = vshrl.u32 %v304, 16
          %v412 = vrot.slane %v410, 4
          %v413 = vor.u32 %v412, %v408
          %v414 = vrot.slane %v413, 4
          %v416 = vshll.u32 %v305, 16
          %v418 = vrot.slane %v416, 5
          %v419 = vsel %vm347, %v414, %v418
          %v421 = vshrl.u32 %v306, 16
          %v423 = vrot.slane %v421, 4
          %v424 = vshll.u32 %v306, 16
          %v426 = vrot.slane %v424, 5
          %v427 = vor.u32 %v423, %v426
          %v428 = vrot.slane %v427, 4
          %v430 = vshll.u32 %v307, 16
          %v432 = vrot.slane %v430, 5
          %v433 = vsel %vm347, %v428, %v432
          %v434 = vshrl.u32 %v307, 16
          %v436 = vrot.slane %v434, 4
          %v437 = vor.u32 %v436, %v432
          %v438 = vrot.slane %v437, 4
          %v440 = vshll.u32 %v308, 16
          %v442 = vrot.slane %v440, 5
          %v443 = vsel %vm347, %v438, %v442
          %v445 = vshrl.u32 %v309, 16
          %v447 = vrot.slane %v445, 4
          %v448 = vshll.u32 %v309, 16
          %v450 = vrot.slane %v448, 5
          %v451 = vor.u32 %v447, %v450
          %v452 = vrot.slane %v451, 4
          %v454 = vshll.u32 %v310, 16
          %v456 = vrot.slane %v454, 5
          %v457 = vsel %vm347, %v452, %v456
          %v458 = vshrl.u32 %v310, 16
          %v460 = vrot.slane %v458, 4
          %v461 = vor.u32 %v460, %v456
          %v462 = vrot.slane %v461, 4
          %v464 = vshll.u32 %v311, 16
          %v466 = vrot.slane %v464, 5
          %v467 = vsel %vm347, %v462, %v466
          %v469 = vshrl.u32 %v312, 16
          %v471 = vrot.slane %v469, 4
          %v472 = vshll.u32 %v312, 16
          %v474 = vrot.slane %v472, 5
          %v475 = vor.u32 %v471, %v474
          %v476 = vrot.slane %v475, 4
          %v478 = vshll.u32 %v313, 16
          %v480 = vrot.slane %v478, 5
          %v481 = vsel %vm347, %v476, %v480
          %v482 = vshrl.u32 %v313, 16
          %v484 = vrot.slane %v482, 4
          %v485 = vor.u32 %v484, %v480
          %v486 = vrot.slane %v485, 4
          %v488 = vshll.u32 %v314, 16
          %v490 = vrot.slane %v488, 5
          %v491 = vsel %vm347, %v486, %v490
          %v493 = vshrl.u32 %v315, 16
          %v495 = vrot.slane %v493, 4
          %v496 = vshll.u32 %v315, 16
          %v498 = vrot.slane %v496, 5
          %v499 = vor.u32 %v495, %v498
          %v500 = vrot.slane %v499, 4
          %v502 = vshll.u32 %v316, 16
          %v504 = vrot.slane %v502, 5
          %v505 = vsel %vm347, %v500, %v504
          %v506 = vshrl.u32 %v316, 16
          %v508 = vrot.slane %v506, 4
          %v509 = vor.u32 %v508, %v504
          %v510 = vrot.slane %v509, 4
          %v512 = vshll.u32 %v317, 16
          %v514 = vrot.slane %v512, 5
          %v515 = vsel %vm347, %v510, %v514
          %v517 = vshrl.u32 %v318, 16
          %v519 = vrot.slane %v517, 4
          %v520 = vshll.u32 %v318, 16
          %v522 = vrot.slane %v520, 5
          %v523 = vor.u32 %v519, %v522
          %v524 = vrot.slane %v523, 4
          %v526 = vshll.u32 %v319, 16
          %v528 = vrot.slane %v526, 5
          %v529 = vsel %vm347, %v524, %v528
          %v530 = vshrl.u32 %v319, 16
          %v532 = vrot.slane %v530, 4
          %v533 = vor.u32 %v532, %v528
          %v534 = vrot.slane %v533, 4
          %v536 = vshll.u32 %v320, 16
          %v538 = vrot.slane %v536, 5
          %v539 = vsel %vm347, %v534, %v538
          %v541 = vshrl.u32 %v321, 16
          %v543 = vrot.slane %v541, 4
          %v544 = vshll.u32 %v321, 16
          %v546 = vrot.slane %v544, 5
          %v547 = vor.u32 %v543, %v546
          %v548 = vrot.slane %v547, 4
          %v550 = vshll.u32 %v322, 16
          %v552 = vrot.slane %v550, 5
          %v553 = vsel %vm347, %v548, %v552
          %v554 = vshrl.u32 %v322, 16
          %v556 = vrot.slane %v554, 4
          %v557 = vor.u32 %v556, %v552
          %v558 = vrot.slane %v557, 4
          %v560 = vshll.u32 %v323, 16
          %v562 = vrot.slane %v560, 5
          %v563 = vsel %vm347, %v558, %v562
          %v565 = vshrl.u32 %v324, 16
          %v567 = vrot.slane %v565, 4
          %v568 = vshll.u32 %v324, 16
          %v570 = vrot.slane %v568, 5
          %v571 = vor.u32 %v567, %v570
          %v572 = vrot.slane %v571, 4
          %v574 = vshll.u32 %v325, 16
          %v576 = vrot.slane %v574, 5
          %v577 = vsel %vm347, %v572, %v576
          %v578 = vshrl.u32 %v325, 16
          %v580 = vrot.slane %v578, 4
          %v581 = vor.u32 %v580, %v576
          %v582 = vrot.slane %v581, 4
          %v584 = vshll.u32 %v326, 16
          %v586 = vrot.slane %v584, 5
          %v587 = vsel %vm347, %v582, %v586
          %v589 = vshrl.u32 %v327, 16
          %v591 = vrot.slane %v589, 4
          %v592 = vshll.u32 %v327, 16
          %v594 = vrot.slane %v592, 5
          %v595 = vor.u32 %v591, %v594
          %v596 = vrot.slane %v595, 4
          %v598 = vshll.u32 %v328, 16
          %v600 = vrot.slane %v598, 5
          %v601 = vsel %vm347, %v596, %v600
          %v602 = vshrl.u32 %v328, 16
          %v604 = vrot.slane %v602, 4
          %v605 = vor.u32 %v604, %v600
          %v606 = vrot.slane %v605, 4
          %v608 = vshll.u32 %v329, 16
          %v610 = vrot.slane %v608, 5
          %v611 = vsel %vm347, %v606, %v610
          %v613 = vshrl.u32 %v330, 16
          %v615 = vrot.slane %v613, 4
          %v616 = vshll.u32 %v330, 16
          %v618 = vrot.slane %v616, 5
          %v619 = vor.u32 %v615, %v618
          %v620 = vrot.slane %v619, 4
          %v622 = vshll.u32 %v331, 16
          %v624 = vrot.slane %v622, 5
          %v625 = vsel %vm347, %v620, %v624
          %v626 = vshrl.u32 %v331, 16
          %v628 = vrot.slane %v626, 4
          %v629 = vor.u32 %v628, %v624
          %v630 = vrot.slane %v629, 4
          %v632 = vshll.u32 %v332, 16
          %v634 = vrot.slane %v632, 5
          %v635 = vsel %vm347, %v630, %v634
          %v637 = vshrl.u32 %v333, 16
          %v639 = vrot.slane %v637, 4
          %v640 = vshll.u32 %v333, 16
          %v642 = vrot.slane %v640, 5
          %v643 = vor.u32 %v639, %v642
          %v644 = vrot.slane %v643, 4
          %v646 = vshll.u32 %v334, 16
          %v648 = vrot.slane %v646, 5
          %v649 = vsel %vm347, %v644, %v648
          %v650 = vshrl.u32 %v334, 16
          %v652 = vrot.slane %v650, 4
          %v653 = vor.u32 %v652, %v648
          %v654 = vrot.slane %v653, 4
          %v656 = vshll.u32 %v335, 16
          %v658 = vrot.slane %v656, 5
          %v659 = vsel %vm347, %v654, %v658
          %v661 = vshrl.u32 %v336, 16
          %v663 = vrot.slane %v661, 4
          %v664 = vshll.u32 %v336, 16
          %v666 = vrot.slane %v664, 5
          %v667 = vor.u32 %v663, %v666
          %v668 = vrot.slane %v667, 4
          %v670 = vshll.u32 %v337, 16
          %v672 = vrot.slane %v670, 5
          %v673 = vsel %vm347, %v668, %v672
          %v674 = vshrl.u32 %v337, 16
          %v676 = vrot.slane %v674, 4
          %v677 = vor.u32 %v676, %v672
          %v678 = vrot.slane %v677, 4
          %v680 = vshll.u32 %v338, 16
          %v682 = vrot.slane %v680, 5
          %v683 = vsel %vm347, %v678, %v682
          %v685 = vshrl.u32 %v339, 16
          %v687 = vrot.slane %v685, 4
          %v688 = vshll.u32 %v339, 16
          %v690 = vrot.slane %v688, 5
          %v691 = vor.u32 %v687, %v690
          %v692 = vrot.slane %v691, 4
          %v694 = vshll.u32 %v340, 16
          %v696 = vrot.slane %v694, 5
          %v697 = vsel %vm347, %v692, %v696
          %v698 = vshrl.u32 %v340, 16
          %v700 = vrot.slane %v698, 4
          %v701 = vor.u32 %v700, %v696
          %v702 = vrot.slane %v701, 4
          %v704 = vshll.u32 %v341, 16
          %v706 = vrot.slane %v704, 5
          %v707 = vsel %vm347, %v702, %v706
          %v709 = vshrl.u32 %v342, 16
          %v711 = vrot.slane %v709, 4
          %v712 = vshll.u32 %v342, 16
          %v714 = vrot.slane %v712, 5
          %v715 = vor.u32 %v711, %v714
          %v716 = vrot.slane %v715, 4
          %v718 = vshll.u32 %v343, 16
          %v720 = vrot.slane %v718, 5
          %v721 = vsel %vm347, %v716, %v720
          %v722 = vshrl.u32 %v343, 16
          %v724 = vrot.slane %v722, 4
          %v725 = vor.u32 %v724, %v720
          %v726 = vrot.slane %v725, 4
          %v728 = vshll.u32 %v344, 16
          %v730 = vrot.slane %v728, 5
          %v731 = vsel %vm347, %v726, %v730
          %764 = vst [vmem:[#allocation2 + $0x4] sm:$0xf] %v361
          %765 = vst [vmem:[#allocation2 + $0x28] sm:$0xf] %v371
          %766 = vst [vmem:[#allocation2 + $0x4c] sm:$0xf] %v385
          %767 = vst [vmem:[#allocation2 + $0x70] sm:$0xf] %v395
          %768 = vst [vmem:[#allocation2 + $0x94] sm:$0xf] %v409
          %769 = vst [vmem:[#allocation2 + $0xb8] sm:$0xf] %v419
          %770 = vst [vmem:[#allocation2 + $0xdc] sm:$0xf] %v433
          %771 = vst [vmem:[#allocation2 + $0x100] sm:$0xf] %v443
          %772 = vst [vmem:[#allocation2 + $0x124] sm:$0xf] %v457
          %773 = vst [vmem:[#allocation2 + $0x148] sm:$0xf] %v467
          %774 = vst [vmem:[#allocation2 + $0x16c] sm:$0xf] %v481
          %775 = vst [vmem:[#allocation2 + $0x190] sm:$0xf] %v491
          %776 = vst [vmem:[#allocation2 + $0x1b4] sm:$0xf] %v505
          %777 = vst [vmem:[#allocation2 + $0x1d8] sm:$0xf] %v515
          %778 = vst [vmem:[#allocation2 + $0x1fc] sm:$0xf] %v529
          %779 = vst [vmem:[#allocation2 + $0x220] sm:$0xf] %v539
          %780 = vst [vmem:[#allocation2 + $0x244] sm:$0xf] %v553
          %781 = vst [vmem:[#allocation2 + $0x268] sm:$0xf] %v563
          %782 = vst [vmem:[#allocation2 + $0x28c] sm:$0xf] %v577
          %783 = vst [vmem:[#allocation2 + $0x2b0] sm:$0xf] %v587
          %784 = vst [vmem:[#allocation2 + $0x2d4] sm:$0xf] %v601
          %785 = vst [vmem:[#allocation2 + $0x2f8] sm:$0xf] %v611
          %786 = vst [vmem:[#allocation2 + $0x31c] sm:$0xf] %v625
          %787 = vst [vmem:[#allocation2 + $0x340] sm:$0xf] %v635
          %788 = vst [vmem:[#allocation2 + $0x364] sm:$0xf] %v649
          %789 = vst [vmem:[#allocation2 + $0x388] sm:$0xf] %v659
          %790 = vst [vmem:[#allocation2 + $0x3ac] sm:$0xf] %v673
          %791 = vst [vmem:[#allocation2 + $0x3d0] sm:$0xf] %v683
          %792 = vst [vmem:[#allocation2 + $0x3f4] sm:$0xf] %v697
          %793 = vst [vmem:[#allocation2 + $0x418] sm:$0xf] %v707
          %794 = vst [vmem:[#allocation2 + $0x43c] sm:$0xf] %v721
          %795 = vst [vmem:[#allocation2 + $0x460] sm:$0xf] %v731
          %v796 = vld [vmem:[%s232] sm:$0xe]
          %v797 = vld [vmem:[%s232 + $0x4] sm:$0xf]
          %v798 = vld [vmem:[%s232 + $0x8] sm:$0x1]
          %v799 = vld [vmem:[%s232 + $0xc] sm:$0xe]
          %v800 = vld [vmem:[%s232 + $0x10] sm:$0xf]
          %v801 = vld [vmem:[%s232 + $0x14] sm:$0x1]
          %v802 = vld [vmem:[%s232 + $0x18] sm:$0xe]
          %v803 = vld [vmem:[%s232 + $0x1c] sm:$0xf]
          %v804 = vld [vmem:[%s232 + $0x20] sm:$0x1]
          %v805 = vld [vmem:[%s232 + $0x24] sm:$0xe]
          %v806 = vld [vmem:[%s232 + $0x28] sm:$0xf]
          %v807 = vld [vmem:[%s232 + $0x2c] sm:$0x1]
          %v808 = vld [vmem:[%s232 + $0x30] sm:$0xe]
          %v809 = vld [vmem:[%s232 + $0x34] sm:$0xf]
          %v810 = vld [vmem:[%s232 + $0x38] sm:$0x1]
          %v811 = vld [vmem:[%s232 + $0x3c] sm:$0xe]
          %v812 = vld [vmem:[%s232 + $0x40] sm:$0xf]
          %v813 = vld [vmem:[%s232 + $0x44] sm:$0x1]
          %v814 = vld [vmem:[%s232 + $0x48] sm:$0xe]
          %v815 = vld [vmem:[%s232 + $0x4c] sm:$0xf]
          %v816 = vld [vmem:[%s232 + $0x50] sm:$0x1]
          %v817 = vld [vmem:[%s232 + $0x54] sm:$0xe]
          %v818 = vld [vmem:[%s232 + $0x58] sm:$0xf]
          %v819 = vld [vmem:[%s232 + $0x5c] sm:$0x1]
          %v820 = vld [vmem:[%s232 + $0x60] sm:$0xe]
          %v821 = vld [vmem:[%s232 + $0x64] sm:$0xf]
          %v822 = vld [vmem:[%s232 + $0x68] sm:$0x1]
          %v823 = vld [vmem:[%s232 + $0x6c] sm:$0xe]
          %v824 = vld [vmem:[%s232 + $0x70] sm:$0xf]
          %v825 = vld [vmem:[%s232 + $0x74] sm:$0x1]
          %v826 = vld [vmem:[%s232 + $0x78] sm:$0xe]
          %v827 = vld [vmem:[%s232 + $0x7c] sm:$0xf]
          %v828 = vld [vmem:[%s232 + $0x80] sm:$0x1]
          %v829 = vld [vmem:[%s232 + $0x84] sm:$0xe]
          %v830 = vld [vmem:[%s232 + $0x88] sm:$0xf]
          %v831 = vld [vmem:[%s232 + $0x8c] sm:$0x1]
          %v832 = vld [vmem:[%s232 + $0x90] sm:$0xe]
          %v833 = vld [vmem:[%s232 + $0x94] sm:$0xf]
          %v834 = vld [vmem:[%s232 + $0x98] sm:$0x1]
          %v835 = vld [vmem:[%s232 + $0x9c] sm:$0xe]
          %v836 = vld [vmem:[%s232 + $0xa0] sm:$0xf]
          %v837 = vld [vmem:[%s232 + $0xa4] sm:$0x1]
          %v838 = vld [vmem:[%s232 + $0xa8] sm:$0xe]
          %v839 = vld [vmem:[%s232 + $0xac] sm:$0xf]
          %v840 = vld [vmem:[%s232 + $0xb0] sm:$0x1]
          %v841 = vld [vmem:[%s232 + $0xb4] sm:$0xe]
          %v842 = vld [vmem:[%s232 + $0xb8] sm:$0xf]
          %v843 = vld [vmem:[%s232 + $0xbc] sm:$0x1]
          %vm892 = vcmask 1042432
          %vm893 = vcmask 1046532
          %vm894 = vmor %vm892, %vm893
          %v895 = vrot.slane %v796, 5
          %v896 = vrot.slane %v895, 4
          %v897 = vrot.slane %v797, 5
          %v898 = vsel %vm894, %v896, %v897
          %v899 = vrot.slane %v897, 4
          %v900 = vrot.slane %v798, 5
          %v901 = vsel %vm894, %v899, %v900
          %v902 = vrot.slane %v799, 5
          %v903 = vrot.slane %v902, 4
          %v904 = vrot.slane %v800, 5
          %v905 = vsel %vm894, %v903, %v904
          %v906 = vrot.slane %v904, 4
          %v907 = vrot.slane %v801, 5
          %v908 = vsel %vm894, %v906, %v907
          %v909 = vrot.slane %v802, 5
          %v910 = vrot.slane %v909, 4
          %v911 = vrot.slane %v803, 5
          %v912 = vsel %vm894, %v910, %v911
          %v913 = vrot.slane %v911, 4
          %v914 = vrot.slane %v804, 5
          %v915 = vsel %vm894, %v913, %v914
          %v916 = vrot.slane %v805, 5
          %v917 = vrot.slane %v916, 4
          %v918 = vrot.slane %v806, 5
          %v919 = vsel %vm894, %v917, %v918
          %v920 = vrot.slane %v918, 4
          %v921 = vrot.slane %v807, 5
          %v922 = vsel %vm894, %v920, %v921
          %v923 = vrot.slane %v808, 5
          %v924 = vrot.slane %v923, 4
          %v925 = vrot.slane %v809, 5
          %v926 = vsel %vm894, %v924, %v925
          %v927 = vrot.slane %v925, 4
          %v928 = vrot.slane %v810, 5
          %v929 = vsel %vm894, %v927, %v928
          %v930 = vrot.slane %v811, 5
          %v931 = vrot.slane %v930, 4
          %v932 = vrot.slane %v812, 5
          %v933 = vsel %vm894, %v931, %v932
          %v934 = vrot.slane %v932, 4
          %v935 = vrot.slane %v813, 5
          %v936 = vsel %vm894, %v934, %v935
          %v937 = vrot.slane %v814, 5
          %v938 = vrot.slane %v937, 4
          %v939 = vrot.slane %v815, 5
          %v940 = vsel %vm894, %v938, %v939
          %v941 = vrot.slane %v939, 4
          %v942 = vrot.slane %v816, 5
          %v943 = vsel %vm894, %v941, %v942
          %v944 = vrot.slane %v817, 5
          %v945 = vrot.slane %v944, 4
          %v946 = vrot.slane %v818, 5
          %v947 = vsel %vm894, %v945, %v946
          %v948 = vrot.slane %v946, 4
          %v949 = vrot.slane %v819, 5
          %v950 = vsel %vm894, %v948, %v949
          %v951 = vrot.slane %v820, 5
          %v952 = vrot.slane %v951, 4
          %v953 = vrot.slane %v821, 5
          %v954 = vsel %vm894, %v952, %v953
          %v955 = vrot.slane %v953, 4
          %v956 = vrot.slane %v822, 5
          %v957 = vsel %vm894, %v955, %v956
          %v958 = vrot.slane %v823, 5
          %v959 = vrot.slane %v958, 4
          %v960 = vrot.slane %v824, 5
          %v961 = vsel %vm894, %v959, %v960
          %v962 = vrot.slane %v960, 4
          %v963 = vrot.slane %v825, 5
          %v964 = vsel %vm894, %v962, %v963
          %v965 = vrot.slane %v826, 5
          %v966 = vrot.slane %v965, 4
          %v967 = vrot.slane %v827, 5
          %v968 = vsel %vm894, %v966, %v967
          %v969 = vrot.slane %v967, 4
          %v970 = vrot.slane %v828, 5
          %v971 = vsel %vm894, %v969, %v970
          %v972 = vrot.slane %v829, 5
          %v973 = vrot.slane %v972, 4
          %v974 = vrot.slane %v830, 5
          %v975 = vsel %vm894, %v973, %v974
          %v976 = vrot.slane %v974, 4
          %v977 = vrot.slane %v831, 5
          %v978 = vsel %vm894, %v976, %v977
          %v979 = vrot.slane %v832, 5
          %v980 = vrot.slane %v979, 4
          %v981 = vrot.slane %v833, 5
          %v982 = vsel %vm894, %v980, %v981
          %v983 = vrot.slane %v981, 4
          %v984 = vrot.slane %v834, 5
          %v985 = vsel %vm894, %v983, %v984
          %v986 = vrot.slane %v835, 5
          %v987 = vrot.slane %v986, 4
          %v988 = vrot.slane %v836, 5
          %v989 = vsel %vm894, %v987, %v988
          %v990 = vrot.slane %v988, 4
          %v991 = vrot.slane %v837, 5
          %v992 = vsel %vm894, %v990, %v991
          %v993 = vrot.slane %v838, 5
          %v994 = vrot.slane %v993, 4
          %v995 = vrot.slane %v839, 5
          %v996 = vsel %vm894, %v994, %v995
          %v997 = vrot.slane %v995, 4
          %v998 = vrot.slane %v840, 5
          %v999 = vsel %vm894, %v997, %v998
          %v1000 = vrot.slane %v841, 5
          %v1001 = vrot.slane %v1000, 4
          %v1002 = vrot.slane %v842, 5
          %v1003 = vsel %vm894, %v1001, %v1002
          %v1004 = vrot.slane %v1002, 4
          %v1005 = vrot.slane %v843, 5
          %v1006 = vsel %vm894, %v1004, %v1005
          %1039 = vst [vmem:[#allocation2 + $0x8] sm:$0xf] %v898
          %1040 = vst [vmem:[#allocation2 + $0x2c] sm:$0xf] %v901
          %1041 = vst [vmem:[#allocation2 + $0x50] sm:$0xf] %v905
          %1042 = vst [vmem:[#allocation2 + $0x74] sm:$0xf] %v908
          %1043 = vst [vmem:[#allocation2 + $0x98] sm:$0xf] %v912
          %1044 = vst [vmem:[#allocation2 + $0xbc] sm:$0xf] %v915
          %1045 = vst [vmem:[#allocation2 + $0xe0] sm:$0xf] %v919
          %1046 = vst [vmem:[#allocation2 + $0x104] sm:$0xf] %v922
          %1047 = vst [vmem:[#allocation2 + $0x128] sm:$0xf] %v926
          %1048 = vst [vmem:[#allocation2 + $0x14c] sm:$0xf] %v929
          %1049 = vst [vmem:[#allocation2 + $0x170] sm:$0xf] %v933
          %1050 = vst [vmem:[#allocation2 + $0x194] sm:$0xf] %v936
          %1051 = vst [vmem:[#allocation2 + $0x1b8] sm:$0xf] %v940
          %1052 = vst [vmem:[#allocation2 + $0x1dc] sm:$0xf] %v943
          %1053 = vst [vmem:[#allocation2 + $0x200] sm:$0xf] %v947
          %1054 = vst [vmem:[#allocation2 + $0x224] sm:$0xf] %v950
          %1055 = vst [vmem:[#allocation2 + $0x248] sm:$0xf] %v954
          %1056 = vst [vmem:[#allocation2 + $0x26c] sm:$0xf] %v957
          %1057 = vst [vmem:[#allocation2 + $0x290] sm:$0xf] %v961
          %1058 = vst [vmem:[#allocation2 + $0x2b4] sm:$0xf] %v964
          %1059 = vst [vmem:[#allocation2 + $0x2d8] sm:$0xf] %v968
          %1060 = vst [vmem:[#allocation2 + $0x2fc] sm:$0xf] %v971
          %1061 = vst [vmem:[#allocation2 + $0x320] sm:$0xf] %v975
          %1062 = vst [vmem:[#allocation2 + $0x344] sm:$0xf] %v978
          %1063 = vst [vmem:[#allocation2 + $0x368] sm:$0xf] %v982
          %1064 = vst [vmem:[#allocation2 + $0x38c] sm:$0xf] %v985
          %1065 = vst [vmem:[#allocation2 + $0x3b0] sm:$0xf] %v989
          %1066 = vst [vmem:[#allocation2 + $0x3d4] sm:$0xf] %v992
          %1067 = vst [vmem:[#allocation2 + $0x3f8] sm:$0xf] %v996
          %1068 = vst [vmem:[#allocation2 + $0x41c] sm:$0xf] %v999
          %1069 = vst [vmem:[#allocation2 + $0x440] sm:$0xf] %v1003
          %1070 = vst [vmem:[#allocation2 + $0x464] sm:$0xf] %v1006
          %s1071 = sadd.s32 %s229, 1
          %s1072 = smul.u32 %s1071, 3
          %s1073 = smul.addr %s1072, 4
          %s1074 = scalar_lea.vmem %s215, %s1073
          %v1075 = vld [vmem:[%s1074] sm:$0xf]
          %v1076 = vld [vmem:[%s1074 + $0x4] sm:$0xf]
          %v1077 = vld [vmem:[%s1074 + $0xc] sm:$0xf]
          %v1078 = vld [vmem:[%s1074 + $0x10] sm:$0xf]
          %v1079 = vld [vmem:[%s1074 + $0x18] sm:$0xf]
          %v1080 = vld [vmem:[%s1074 + $0x1c] sm:$0xf]
          %v1081 = vld [vmem:[%s1074 + $0x24] sm:$0xf]
          %v1082 = vld [vmem:[%s1074 + $0x28] sm:$0xf]
          %v1083 = vld [vmem:[%s1074 + $0x30] sm:$0xf]
          %v1084 = vld [vmem:[%s1074 + $0x34] sm:$0xf]
          %v1085 = vld [vmem:[%s1074 + $0x3c] sm:$0xf]
          %v1086 = vld [vmem:[%s1074 + $0x40] sm:$0xf]
          %v1087 = vld [vmem:[%s1074 + $0x48] sm:$0xf]
          %v1088 = vld [vmem:[%s1074 + $0x4c] sm:$0xf]
          %v1089 = vld [vmem:[%s1074 + $0x54] sm:$0xf]
          %v1090 = vld [vmem:[%s1074 + $0x58] sm:$0xf]
          %v1091 = vld [vmem:[%s1074 + $0x60] sm:$0xf]
          %v1092 = vld [vmem:[%s1074 + $0x64] sm:$0xf]
          %v1093 = vld [vmem:[%s1074 + $0x6c] sm:$0xf]
          %v1094 = vld [vmem:[%s1074 + $0x70] sm:$0xf]
          %v1095 = vld [vmem:[%s1074 + $0x78] sm:$0xf]
          %v1096 = vld [vmem:[%s1074 + $0x7c] sm:$0xf]
          %v1097 = vld [vmem:[%s1074 + $0x84] sm:$0xf]
          %v1098 = vld [vmem:[%s1074 + $0x88] sm:$0xf]
          %v1099 = vld [vmem:[%s1074 + $0x90] sm:$0xf]
          %v1100 = vld [vmem:[%s1074 + $0x94] sm:$0xf]
          %v1101 = vld [vmem:[%s1074 + $0x9c] sm:$0xf]
          %v1102 = vld [vmem:[%s1074 + $0xa0] sm:$0xf]
          %v1103 = vld [vmem:[%s1074 + $0xa8] sm:$0xf]
          %v1104 = vld [vmem:[%s1074 + $0xac] sm:$0xf]
          %v1105 = vld [vmem:[%s1074 + $0xb4] sm:$0xf]
          %v1106 = vld [vmem:[%s1074 + $0xb8] sm:$0xf]
          %1107 = vst [vmem:[#allocation2 + $0xc] sm:$0xf] %v1075
          %1108 = vst [vmem:[#allocation2 + $0x30] sm:$0xf] %v1076
          %1109 = vst [vmem:[#allocation2 + $0x54] sm:$0xf] %v1077
          %1110 = vst [vmem:[#allocation2 + $0x78] sm:$0xf] %v1078
          %1111 = vst [vmem:[#allocation2 + $0x9c] sm:$0xf] %v1079
          %1112 = vst [vmem:[#allocation2 + $0xc0] sm:$0xf] %v1080
          %1113 = vst [vmem:[#allocation2 + $0xe4] sm:$0xf] %v1081
          %1114 = vst [vmem:[#allocation2 + $0x108] sm:$0xf] %v1082
          %1115 = vst [vmem:[#allocation2 + $0x12c] sm:$0xf] %v1083
          %1116 = vst [vmem:[#allocation2 + $0x150] sm:$0xf] %v1084
          %1117 = vst [vmem:[#allocation2 + $0x174] sm:$0xf] %v1085
          %1118 = vst [vmem:[#allocation2 + $0x198] sm:$0xf] %v1086
          %1119 = vst [vmem:[#allocation2 + $0x1bc] sm:$0xf] %v1087
          %1120 = vst [vmem:[#allocation2 + $0x1e0] sm:$0xf] %v1088
          %1121 = vst [vmem:[#allocation2 + $0x204] sm:$0xf] %v1089
          %1122 = vst [vmem:[#allocation2 + $0x228] sm:$0xf] %v1090
          %1123 = vst [vmem:[#allocation2 + $0x24c] sm:$0xf] %v1091
          %1124 = vst [vmem:[#allocation2 + $0x270] sm:$0xf] %v1092
          %1125 = vst [vmem:[#allocation2 + $0x294] sm:$0xf] %v1093
          %1126 = vst [vmem:[#allocation2 + $0x2b8] sm:$0xf] %v1094
          %1127 = vst [vmem:[#allocation2 + $0x2dc] sm:$0xf] %v1095
          %1128 = vst [vmem:[#allocation2 + $0x300] sm:$0xf] %v1096
          %1129 = vst [vmem:[#allocation2 + $0x324] sm:$0xf] %v1097
          %1130 = vst [vmem:[#allocation2 + $0x348] sm:$0xf] %v1098
          %1131 = vst [vmem:[#allocation2 + $0x36c] sm:$0xf] %v1099
          %1132 = vst [vmem:[#allocation2 + $0x390] sm:$0xf] %v1100
          %1133 = vst [vmem:[#allocation2 + $0x3b4] sm:$0xf] %v1101
          %1134 = vst [vmem:[#allocation2 + $0x3d8] sm:$0xf] %v1102
          %1135 = vst [vmem:[#allocation2 + $0x3fc] sm:$0xf] %v1103
          %1136 = vst [vmem:[#allocation2 + $0x420] sm:$0xf] %v1104
          %1137 = vst [vmem:[#allocation2 + $0x444] sm:$0xf] %v1105
          %1138 = vst [vmem:[#allocation2 + $0x468] sm:$0xf] %v1106
          %v1139 = vld [vmem:[%s1074] sm:$0xf]
          %v1140 = vld [vmem:[%s1074 + $0x4] sm:$0xf]
          %v1141 = vld [vmem:[%s1074 + $0x8] sm:$0x1]
          %v1142 = vld [vmem:[%s1074 + $0xc] sm:$0xf]
          %v1143 = vld [vmem:[%s1074 + $0x10] sm:$0xf]
          %v1144 = vld [vmem:[%s1074 + $0x14] sm:$0x1]
          %v1145 = vld [vmem:[%s1074 + $0x18] sm:$0xf]
          %v1146 = vld [vmem:[%s1074 + $0x1c] sm:$0xf]
          %v1147 = vld [vmem:[%s1074 + $0x20] sm:$0x1]
          %v1148 = vld [vmem:[%s1074 + $0x24] sm:$0xf]
          %v1149 = vld [vmem:[%s1074 + $0x28] sm:$0xf]
          %v1150 = vld [vmem:[%s1074 + $0x2c] sm:$0x1]
          %v1151 = vld [vmem:[%s1074 + $0x30] sm:$0xf]
          %v1152 = vld [vmem:[%s1074 + $0x34] sm:$0xf]
          %v1153 = vld [vmem:[%s1074 + $0x38] sm:$0x1]
          %v1154 = vld [vmem:[%s1074 + $0x3c] sm:$0xf]
          %v1155 = vld [vmem:[%s1074 + $0x40] sm:$0xf]
          %v1156 = vld [vmem:[%s1074 + $0x44] sm:$0x1]
          %v1157 = vld [vmem:[%s1074 + $0x48] sm:$0xf]
          %v1158 = vld [vmem:[%s1074 + $0x4c] sm:$0xf]
          %v1159 = vld [vmem:[%s1074 + $0x50] sm:$0x1]
          %v1160 = vld [vmem:[%s1074 + $0x54] sm:$0xf]
          %v1161 = vld [vmem:[%s1074 + $0x58] sm:$0xf]
          %v1162 = vld [vmem:[%s1074 + $0x5c] sm:$0x1]
          %v1163 = vld [vmem:[%s1074 + $0x60] sm:$0xf]
          %v1164 = vld [vmem:[%s1074 + $0x64] sm:$0xf]
          %v1165 = vld [vmem:[%s1074 + $0x68] sm:$0x1]
          %v1166 = vld [vmem:[%s1074 + $0x6c] sm:$0xf]
          %v1167 = vld [vmem:[%s1074 + $0x70] sm:$0xf]
          %v1168 = vld [vmem:[%s1074 + $0x74] sm:$0x1]
          %v1169 = vld [vmem:[%s1074 + $0x78] sm:$0xf]
          %v1170 = vld [vmem:[%s1074 + $0x7c] sm:$0xf]
          %v1171 = vld [vmem:[%s1074 + $0x80] sm:$0x1]
          %v1172 = vld [vmem:[%s1074 + $0x84] sm:$0xf]
          %v1173 = vld [vmem:[%s1074 + $0x88] sm:$0xf]
          %v1174 = vld [vmem:[%s1074 + $0x8c] sm:$0x1]
          %v1175 = vld [vmem:[%s1074 + $0x90] sm:$0xf]
          %v1176 = vld [vmem:[%s1074 + $0x94] sm:$0xf]
          %v1177 = vld [vmem:[%s1074 + $0x98] sm:$0x1]
          %v1178 = vld [vmem:[%s1074 + $0x9c] sm:$0xf]
          %v1179 = vld [vmem:[%s1074 + $0xa0] sm:$0xf]
          %v1180 = vld [vmem:[%s1074 + $0xa4] sm:$0x1]
          %v1181 = vld [vmem:[%s1074 + $0xa8] sm:$0xf]
          %v1182 = vld [vmem:[%s1074 + $0xac] sm:$0xf]
          %v1183 = vld [vmem:[%s1074 + $0xb0] sm:$0x1]
          %v1184 = vld [vmem:[%s1074 + $0xb4] sm:$0xf]
          %v1185 = vld [vmem:[%s1074 + $0xb8] sm:$0xf]
          %v1186 = vld [vmem:[%s1074 + $0xbc] sm:$0x1]
          %v1188 = vshrl.u32 %v1139, 16
          %v1190 = vrot.slane %v1188, 4
          %v1191 = vshll.u32 %v1139, 16
          %v1193 = vrot.slane %v1191, 5
          %v1194 = vor.u32 %v1190, %v1193
          %v1195 = vrot.slane %v1194, 4
          %v1197 = vshll.u32 %v1140, 16
          %v1199 = vrot.slane %v1197, 5
          %v1200 = vsel %vm347, %v1195, %v1199
          %v1201 = vshrl.u32 %v1140, 16
          %v1203 = vrot.slane %v1201, 4
          %v1204 = vor.u32 %v1203, %v1199
          %v1205 = vrot.slane %v1204, 4
          %v1207 = vshll.u32 %v1141, 16
          %v1209 = vrot.slane %v1207, 5
          %v1210 = vsel %vm347, %v1205, %v1209
          %v1212 = vshrl.u32 %v1142, 16
          %v1214 = vrot.slane %v1212, 4
          %v1215 = vshll.u32 %v1142, 16
          %v1217 = vrot.slane %v1215, 5
          %v1218 = vor.u32 %v1214, %v1217
          %v1219 = vrot.slane %v1218, 4
          %v1221 = vshll.u32 %v1143, 16
          %v1223 = vrot.slane %v1221, 5
          %v1224 = vsel %vm347, %v1219, %v1223
          %v1225 = vshrl.u32 %v1143, 16
          %v1227 = vrot.slane %v1225, 4
          %v1228 = vor.u32 %v1227, %v1223
          %v1229 = vrot.slane %v1228, 4
          %v1231 = vshll.u32 %v1144, 16
          %v1233 = vrot.slane %v1231, 5
          %v1234 = vsel %vm347, %v1229, %v1233
          %v1236 = vshrl.u32 %v1145, 16
          %v1238 = vrot.slane %v1236, 4
          %v1239 = vshll.u32 %v1145, 16
          %v1241 = vrot.slane %v1239, 5
          %v1242 = vor.u32 %v1238, %v1241
          %v1243 = vrot.slane %v1242, 4
          %v1245 = vshll.u32 %v1146, 16
          %v1247 = vrot.slane %v1245, 5
          %v1248 = vsel %vm347, %v1243, %v1247
          %v1249 = vshrl.u32 %v1146, 16
          %v1251 = vrot.slane %v1249, 4
          %v1252 = vor.u32 %v1251, %v1247
          %v1253 = vrot.slane %v1252, 4
          %v1255 = vshll.u32 %v1147, 16
          %v1257 = vrot.slane %v1255, 5
          %v1258 = vsel %vm347, %v1253, %v1257
          %v1260 = vshrl.u32 %v1148, 16
          %v1262 = vrot.slane %v1260, 4
          %v1263 = vshll.u32 %v1148, 16
          %v1265 = vrot.slane %v1263, 5
          %v1266 = vor.u32 %v1262, %v1265
          %v1267 = vrot.slane %v1266, 4
          %v1269 = vshll.u32 %v1149, 16
          %v1271 = vrot.slane %v1269, 5
          %v1272 = vsel %vm347, %v1267, %v1271
          %v1273 = vshrl.u32 %v1149, 16
          %v1275 = vrot.slane %v1273, 4
          %v1276 = vor.u32 %v1275, %v1271
          %v1277 = vrot.slane %v1276, 4
          %v1279 = vshll.u32 %v1150, 16
          %v1281 = vrot.slane %v1279, 5
          %v1282 = vsel %vm347, %v1277, %v1281
          %v1284 = vshrl.u32 %v1151, 16
          %v1286 = vrot.slane %v1284, 4
          %v1287 = vshll.u32 %v1151, 16
          %v1289 = vrot.slane %v1287, 5
          %v1290 = vor.u32 %v1286, %v1289
          %v1291 = vrot.slane %v1290, 4
          %v1293 = vshll.u32 %v1152, 16
          %v1295 = vrot.slane %v1293, 5
          %v1296 = vsel %vm347, %v1291, %v1295
          %v1297 = vshrl.u32 %v1152, 16
          %v1299 = vrot.slane %v1297, 4
          %v1300 = vor.u32 %v1299, %v1295
          %v1301 = vrot.slane %v1300, 4
          %v1303 = vshll.u32 %v1153, 16
          %v1305 = vrot.slane %v1303, 5
          %v1306 = vsel %vm347, %v1301, %v1305
          %v1308 = vshrl.u32 %v1154, 16
          %v1310 = vrot.slane %v1308, 4
          %v1311 = vshll.u32 %v1154, 16
          %v1313 = vrot.slane %v1311, 5
          %v1314 = vor.u32 %v1310, %v1313
          %v1315 = vrot.slane %v1314, 4
          %v1317 = vshll.u32 %v1155, 16
          %v1319 = vrot.slane %v1317, 5
          %v1320 = vsel %vm347, %v1315, %v1319
          %v1321 = vshrl.u32 %v1155, 16
          %v1323 = vrot.slane %v1321, 4
          %v1324 = vor.u32 %v1323, %v1319
          %v1325 = vrot.slane %v1324, 4
          %v1327 = vshll.u32 %v1156, 16
          %v1329 = vrot.slane %v1327, 5
          %v1330 = vsel %vm347, %v1325, %v1329
          %v1332 = vshrl.u32 %v1157, 16
          %v1334 = vrot.slane %v1332, 4
          %v1335 = vshll.u32 %v1157, 16
          %v1337 = vrot.slane %v1335, 5
          %v1338 = vor.u32 %v1334, %v1337
          %v1339 = vrot.slane %v1338, 4
          %v1341 = vshll.u32 %v1158, 16
          %v1343 = vrot.slane %v1341, 5
          %v1344 = vsel %vm347, %v1339, %v1343
          %v1345 = vshrl.u32 %v1158, 16
          %v1347 = vrot.slane %v1345, 4
          %v1348 = vor.u32 %v1347, %v1343
          %v1349 = vrot.slane %v1348, 4
          %v1351 = vshll.u32 %v1159, 16
          %v1353 = vrot.slane %v1351, 5
          %v1354 = vsel %vm347, %v1349, %v1353
          %v1356 = vshrl.u32 %v1160, 16
          %v1358 = vrot.slane %v1356, 4
          %v1359 = vshll.u32 %v1160, 16
          %v1361 = vrot.slane %v1359, 5
          %v1362 = vor.u32 %v1358, %v1361
          %v1363 = vrot.slane %v1362, 4
          %v1365 = vshll.u32 %v1161, 16
          %v1367 = vrot.slane %v1365, 5
          %v1368 = vsel %vm347, %v1363, %v1367
          %v1369 = vshrl.u32 %v1161, 16
          %v1371 = vrot.slane %v1369, 4
          %v1372 = vor.u32 %v1371, %v1367
          %v1373 = vrot.slane %v1372, 4
          %v1375 = vshll.u32 %v1162, 16
          %v1377 = vrot.slane %v1375, 5
          %v1378 = vsel %vm347, %v1373, %v1377
          %v1380 = vshrl.u32 %v1163, 16
          %v1382 = vrot.slane %v1380, 4
          %v1383 = vshll.u32 %v1163, 16
          %v1385 = vrot.slane %v1383, 5
          %v1386 = vor.u32 %v1382, %v1385
          %v1387 = vrot.slane %v1386, 4
          %v1389 = vshll.u32 %v1164, 16
          %v1391 = vrot.slane %v1389, 5
          %v1392 = vsel %vm347, %v1387, %v1391
          %v1393 = vshrl.u32 %v1164, 16
          %v1395 = vrot.slane %v1393, 4
          %v1396 = vor.u32 %v1395, %v1391
          %v1397 = vrot.slane %v1396, 4
          %v1399 = vshll.u32 %v1165, 16
          %v1401 = vrot.slane %v1399, 5
          %v1402 = vsel %vm347, %v1397, %v1401
          %v1404 = vshrl.u32 %v1166, 16
          %v1406 = vrot.slane %v1404, 4
          %v1407 = vshll.u32 %v1166, 16
          %v1409 = vrot.slane %v1407, 5
          %v1410 = vor.u32 %v1406, %v1409
          %v1411 = vrot.slane %v1410, 4
          %v1413 = vshll.u32 %v1167, 16
          %v1415 = vrot.slane %v1413, 5
          %v1416 = vsel %vm347, %v1411, %v1415
          %v1417 = vshrl.u32 %v1167, 16
          %v1419 = vrot.slane %v1417, 4
          %v1420 = vor.u32 %v1419, %v1415
          %v1421 = vrot.slane %v1420, 4
          %v1423 = vshll.u32 %v1168, 16
          %v1425 = vrot.slane %v1423, 5
          %v1426 = vsel %vm347, %v1421, %v1425
          %v1428 = vshrl.u32 %v1169, 16
          %v1430 = vrot.slane %v1428, 4
          %v1431 = vshll.u32 %v1169, 16
          %v1433 = vrot.slane %v1431, 5
          %v1434 = vor.u32 %v1430, %v1433
          %v1435 = vrot.slane %v1434, 4
          %v1437 = vshll.u32 %v1170, 16
          %v1439 = vrot.slane %v1437, 5
          %v1440 = vsel %vm347, %v1435, %v1439
          %v1441 = vshrl.u32 %v1170, 16
          %v1443 = vrot.slane %v1441, 4
          %v1444 = vor.u32 %v1443, %v1439
          %v1445 = vrot.slane %v1444, 4
          %v1447 = vshll.u32 %v1171, 16
          %v1449 = vrot.slane %v1447, 5
          %v1450 = vsel %vm347, %v1445, %v1449
          %v1452 = vshrl.u32 %v1172, 16
          %v1454 = vrot.slane %v1452, 4
          %v1455 = vshll.u32 %v1172, 16
          %v1457 = vrot.slane %v1455, 5
          %v1458 = vor.u32 %v1454, %v1457
          %v1459 = vrot.slane %v1458, 4
          %v1461 = vshll.u32 %v1173, 16
          %v1463 = vrot.slane %v1461, 5
          %v1464 = vsel %vm347, %v1459, %v1463
          %v1465 = vshrl.u32 %v1173, 16
          %v1467 = vrot.slane %v1465, 4
          %v1468 = vor.u32 %v1467, %v1463
          %v1469 = vrot.slane %v1468, 4
          %v1471 = vshll.u32 %v1174, 16
          %v1473 = vrot.slane %v1471, 5
          %v1474 = vsel %vm347, %v1469, %v1473
          %v1476 = vshrl.u32 %v1175, 16
          %v1478 = vrot.slane %v1476, 4
          %v1479 = vshll.u32 %v1175, 16
          %v1481 = vrot.slane %v1479, 5
          %v1482 = vor.u32 %v1478, %v1481
          %v1483 = vrot.slane %v1482, 4
          %v1485 = vshll.u32 %v1176, 16
          %v1487 = vrot.slane %v1485, 5
          %v1488 = vsel %vm347, %v1483, %v1487
          %v1489 = vshrl.u32 %v1176, 16
          %v1491 = vrot.slane %v1489, 4
          %v1492 = vor.u32 %v1491, %v1487
          %v1493 = vrot.slane %v1492, 4
          %v1495 = vshll.u32 %v1177, 16
          %v1497 = vrot.slane %v1495, 5
          %v1498 = vsel %vm347, %v1493, %v1497
          %v1500 = vshrl.u32 %v1178, 16
          %v1502 = vrot.slane %v1500, 4
          %v1503 = vshll.u32 %v1178, 16
          %v1505 = vrot.slane %v1503, 5
          %v1506 = vor.u32 %v1502, %v1505
          %v1507 = vrot.slane %v1506, 4
          %v1509 = vshll.u32 %v1179, 16
          %v1511 = vrot.slane %v1509, 5
          %v1512 = vsel %vm347, %v1507, %v1511
          %v1513 = vshrl.u32 %v1179, 16
          %v1515 = vrot.slane %v1513, 4
          %v1516 = vor.u32 %v1515, %v1511
          %v1517 = vrot.slane %v1516, 4
          %v1519 = vshll.u32 %v1180, 16
          %v1521 = vrot.slane %v1519, 5
          %v1522 = vsel %vm347, %v1517, %v1521
          %v1524 = vshrl.u32 %v1181, 16
          %v1526 = vrot.slane %v1524, 4
          %v1527 = vshll.u32 %v1181, 16
          %v1529 = vrot.slane %v1527, 5
          %v1530 = vor.u32 %v1526, %v1529
          %v1531 = vrot.slane %v1530, 4
          %v1533 = vshll.u32 %v1182, 16
          %v1535 = vrot.slane %v1533, 5
          %v1536 = vsel %vm347, %v1531, %v1535
          %v1537 = vshrl.u32 %v1182, 16
          %v1539 = vrot.slane %v1537, 4
          %v1540 = vor.u32 %v1539, %v1535
          %v1541 = vrot.slane %v1540, 4
          %v1543 = vshll.u32 %v1183, 16
          %v1545 = vrot.slane %v1543, 5
          %v1546 = vsel %vm347, %v1541, %v1545
          %v1548 = vshrl.u32 %v1184, 16
          %v1550 = vrot.slane %v1548, 4
          %v1551 = vshll.u32 %v1184, 16
          %v1553 = vrot.slane %v1551, 5
          %v1554 = vor.u32 %v1550, %v1553
          %v1555 = vrot.slane %v1554, 4
          %v1557 = vshll.u32 %v1185, 16
          %v1559 = vrot.slane %v1557, 5
          %v1560 = vsel %vm347, %v1555, %v1559
          %v1561 = vshrl.u32 %v1185, 16
          %v1563 = vrot.slane %v1561, 4
          %v1564 = vor.u32 %v1563, %v1559
          %v1565 = vrot.slane %v1564, 4
          %v1567 = vshll.u32 %v1186, 16
          %v1569 = vrot.slane %v1567, 5
          %v1570 = vsel %vm347, %v1565, %v1569
          %1603 = vst [vmem:[#allocation2 + $0x10] sm:$0xf] %v1200
          %1604 = vst [vmem:[#allocation2 + $0x34] sm:$0xf] %v1210
          %1605 = vst [vmem:[#allocation2 + $0x58] sm:$0xf] %v1224
          %1606 = vst [vmem:[#allocation2 + $0x7c] sm:$0xf] %v1234
          %1607 = vst [vmem:[#allocation2 + $0xa0] sm:$0xf] %v1248
          %1608 = vst [vmem:[#allocation2 + $0xc4] sm:$0xf] %v1258
          %1609 = vst [vmem:[#allocation2 + $0xe8] sm:$0xf] %v1272
          %1610 = vst [vmem:[#allocation2 + $0x10c] sm:$0xf] %v1282
          %1611 = vst [vmem:[#allocation2 + $0x130] sm:$0xf] %v1296
          %1612 = vst [vmem:[#allocation2 + $0x154] sm:$0xf] %v1306
          %1613 = vst [vmem:[#allocation2 + $0x178] sm:$0xf] %v1320
          %1614 = vst [vmem:[#allocation2 + $0x19c] sm:$0xf] %v1330
          %1615 = vst [vmem:[#allocation2 + $0x1c0] sm:$0xf] %v1344
          %1616 = vst [vmem:[#allocation2 + $0x1e4] sm:$0xf] %v1354
          %1617 = vst [vmem:[#allocation2 + $0x208] sm:$0xf] %v1368
          %1618 = vst [vmem:[#allocation2 + $0x22c] sm:$0xf] %v1378
          %1619 = vst [vmem:[#allocation2 + $0x250] sm:$0xf] %v1392
          %1620 = vst [vmem:[#allocation2 + $0x274] sm:$0xf] %v1402
          %1621 = vst [vmem:[#allocation2 + $0x298] sm:$0xf] %v1416
          %1622 = vst [vmem:[#allocation2 + $0x2bc] sm:$0xf] %v1426
          %1623 = vst [vmem:[#allocation2 + $0x2e0] sm:$0xf] %v1440
          %1624 = vst [vmem:[#allocation2 + $0x304] sm:$0xf] %v1450
          %1625 = vst [vmem:[#allocation2 + $0x328] sm:$0xf] %v1464
          %1626 = vst [vmem:[#allocation2 + $0x34c] sm:$0xf] %v1474
          %1627 = vst [vmem:[#allocation2 + $0x370] sm:$0xf] %v1488
          %1628 = vst [vmem:[#allocation2 + $0x394] sm:$0xf] %v1498
          %1629 = vst [vmem:[#allocation2 + $0x3b8] sm:$0xf] %v1512
          %1630 = vst [vmem:[#allocation2 + $0x3dc] sm:$0xf] %v1522
          %1631 = vst [vmem:[#allocation2 + $0x400] sm:$0xf] %v1536
          %1632 = vst [vmem:[#allocation2 + $0x424] sm:$0xf] %v1546
          %1633 = vst [vmem:[#allocation2 + $0x448] sm:$0xf] %v1560
          %1634 = vst [vmem:[#allocation2 + $0x46c] sm:$0xf] %v1570
          %v1635 = vld [vmem:[%s1074] sm:$0xe]
          %v1636 = vld [vmem:[%s1074 + $0x4] sm:$0xf]
          %v1637 = vld [vmem:[%s1074 + $0x8] sm:$0x1]
          %v1638 = vld [vmem:[%s1074 + $0xc] sm:$0xe]
          %v1639 = vld [vmem:[%s1074 + $0x10] sm:$0xf]
          %v1640 = vld [vmem:[%s1074 + $0x14] sm:$0x1]
          %v1641 = vld [vmem:[%s1074 + $0x18] sm:$0xe]
          %v1642 = vld [vmem:[%s1074 + $0x1c] sm:$0xf]
          %v1643 = vld [vmem:[%s1074 + $0x20] sm:$0x1]
          %v1644 = vld [vmem:[%s1074 + $0x24] sm:$0xe]
          %v1645 = vld [vmem:[%s1074 + $0x28] sm:$0xf]
          %v1646 = vld [vmem:[%s1074 + $0x2c] sm:$0x1]
          %v1647 = vld [vmem:[%s1074 + $0x30] sm:$0xe]
          %v1648 = vld [vmem:[%s1074 + $0x34] sm:$0xf]
          %v1649 = vld [vmem:[%s1074 + $0x38] sm:$0x1]
          %v1650 = vld [vmem:[%s1074 + $0x3c] sm:$0xe]
          %v1651 = vld [vmem:[%s1074 + $0x40] sm:$0xf]
          %v1652 = vld [vmem:[%s1074 + $0x44] sm:$0x1]
          %v1653 = vld [vmem:[%s1074 + $0x48] sm:$0xe]
          %v1654 = vld [vmem:[%s1074 + $0x4c] sm:$0xf]
          %v1655 = vld [vmem:[%s1074 + $0x50] sm:$0x1]
          %v1656 = vld [vmem:[%s1074 + $0x54] sm:$0xe]
          %v1657 = vld [vmem:[%s1074 + $0x58] sm:$0xf]
          %v1658 = vld [vmem:[%s1074 + $0x5c] sm:$0x1]
          %v1659 = vld [vmem:[%s1074 + $0x60] sm:$0xe]
          %v1660 = vld [vmem:[%s1074 + $0x64] sm:$0xf]
          %v1661 = vld [vmem:[%s1074 + $0x68] sm:$0x1]
          %v1662 = vld [vmem:[%s1074 + $0x6c] sm:$0xe]
          %v1663 = vld [vmem:[%s1074 + $0x70] sm:$0xf]
          %v1664 = vld [vmem:[%s1074 + $0x74] sm:$0x1]
          %v1665 = vld [vmem:[%s1074 + $0x78] sm:$0xe]
          %v1666 = vld [vmem:[%s1074 + $0x7c] sm:$0xf]
          %v1667 = vld [vmem:[%s1074 + $0x80] sm:$0x1]
          %v1668 = vld [vmem:[%s1074 + $0x84] sm:$0xe]
          %v1669 = vld [vmem:[%s1074 + $0x88] sm:$0xf]
          %v1670 = vld [vmem:[%s1074 + $0x8c] sm:$0x1]
          %v1671 = vld [vmem:[%s1074 + $0x90] sm:$0xe]
          %v1672 = vld [vmem:[%s1074 + $0x94] sm:$0xf]
          %v1673 = vld [vmem:[%s1074 + $0x98] sm:$0x1]
          %v1674 = vld [vmem:[%s1074 + $0x9c] sm:$0xe]
          %v1675 = vld [vmem:[%s1074 + $0xa0] sm:$0xf]
          %v1676 = vld [vmem:[%s1074 + $0xa4] sm:$0x1]
          %v1677 = vld [vmem:[%s1074 + $0xa8] sm:$0xe]
          %v1678 = vld [vmem:[%s1074 + $0xac] sm:$0xf]
          %v1679 = vld [vmem:[%s1074 + $0xb0] sm:$0x1]
          %v1680 = vld [vmem:[%s1074 + $0xb4] sm:$0xe]
          %v1681 = vld [vmem:[%s1074 + $0xb8] sm:$0xf]
          %v1682 = vld [vmem:[%s1074 + $0xbc] sm:$0x1]
          %v1731 = vrot.slane %v1635, 5
          %v1732 = vrot.slane %v1731, 4
          %v1733 = vrot.slane %v1636, 5
          %v1734 = vsel %vm894, %v1732, %v1733
          %v1735 = vrot.slane %v1733, 4
          %v1736 = vrot.slane %v1637, 5
          %v1737 = vsel %vm894, %v1735, %v1736
          %v1738 = vrot.slane %v1638, 5
          %v1739 = vrot.slane %v1738, 4
          %v1740 = vrot.slane %v1639, 5
          %v1741 = vsel %vm894, %v1739, %v1740
          %v1742 = vrot.slane %v1740, 4
          %v1743 = vrot.slane %v1640, 5
          %v1744 = vsel %vm894, %v1742, %v1743
          %v1745 = vrot.slane %v1641, 5
          %v1746 = vrot.slane %v1745, 4
          %v1747 = vrot.slane %v1642, 5
          %v1748 = vsel %vm894, %v1746, %v1747
          %v1749 = vrot.slane %v1747, 4
          %v1750 = vrot.slane %v1643, 5
          %v1751 = vsel %vm894, %v1749, %v1750
          %v1752 = vrot.slane %v1644, 5
          %v1753 = vrot.slane %v1752, 4
          %v1754 = vrot.slane %v1645, 5
          %v1755 = vsel %vm894, %v1753, %v1754
          %v1756 = vrot.slane %v1754, 4
          %v1757 = vrot.slane %v1646, 5
          %v1758 = vsel %vm894, %v1756, %v1757
          %v1759 = vrot.slane %v1647, 5
          %v1760 = vrot.slane %v1759, 4
          %v1761 = vrot.slane %v1648, 5
          %v1762 = vsel %vm894, %v1760, %v1761
          %v1763 = vrot.slane %v1761, 4
          %v1764 = vrot.slane %v1649, 5
          %v1765 = vsel %vm894, %v1763, %v1764
          %v1766 = vrot.slane %v1650, 5
          %v1767 = vrot.slane %v1766, 4
          %v1768 = vrot.slane %v1651, 5
          %v1769 = vsel %vm894, %v1767, %v1768
          %v1770 = vrot.slane %v1768, 4
          %v1771 = vrot.slane %v1652, 5
          %v1772 = vsel %vm894, %v1770, %v1771
          %v1773 = vrot.slane %v1653, 5
          %v1774 = vrot.slane %v1773, 4
          %v1775 = vrot.slane %v1654, 5
          %v1776 = vsel %vm894, %v1774, %v1775
          %v1777 = vrot.slane %v1775, 4
          %v1778 = vrot.slane %v1655, 5
          %v1779 = vsel %vm894, %v1777, %v1778
          %v1780 = vrot.slane %v1656, 5
          %v1781 = vrot.slane %v1780, 4
          %v1782 = vrot.slane %v1657, 5
          %v1783 = vsel %vm894, %v1781, %v1782
          %v1784 = vrot.slane %v1782, 4
          %v1785 = vrot.slane %v1658, 5
          %v1786 = vsel %vm894, %v1784, %v1785
          %v1787 = vrot.slane %v1659, 5
          %v1788 = vrot.slane %v1787, 4
          %v1789 = vrot.slane %v1660, 5
          %v1790 = vsel %vm894, %v1788, %v1789
          %v1791 = vrot.slane %v1789, 4
          %v1792 = vrot.slane %v1661, 5
          %v1793 = vsel %vm894, %v1791, %v1792
          %v1794 = vrot.slane %v1662, 5
          %v1795 = vrot.slane %v1794, 4
          %v1796 = vrot.slane %v1663, 5
          %v1797 = vsel %vm894, %v1795, %v1796
          %v1798 = vrot.slane %v1796, 4
          %v1799 = vrot.slane %v1664, 5
          %v1800 = vsel %vm894, %v1798, %v1799
          %v1801 = vrot.slane %v1665, 5
          %v1802 = vrot.slane %v1801, 4
          %v1803 = vrot.slane %v1666, 5
          %v1804 = vsel %vm894, %v1802, %v1803
          %v1805 = vrot.slane %v1803, 4
          %v1806 = vrot.slane %v1667, 5
          %v1807 = vsel %vm894, %v1805, %v1806
          %v1808 = vrot.slane %v1668, 5
          %v1809 = vrot.slane %v1808, 4
          %v1810 = vrot.slane %v1669, 5
          %v1811 = vsel %vm894, %v1809, %v1810
          %v1812 = vrot.slane %v1810, 4
          %v1813 = vrot.slane %v1670, 5
          %v1814 = vsel %vm894, %v1812, %v1813
          %v1815 = vrot.slane %v1671, 5
          %v1816 = vrot.slane %v1815, 4
          %v1817 = vrot.slane %v1672, 5
          %v1818 = vsel %vm894, %v1816, %v1817
          %v1819 = vrot.slane %v1817, 4
          %v1820 = vrot.slane %v1673, 5
          %v1821 = vsel %vm894, %v1819, %v1820
          %v1822 = vrot.slane %v1674, 5
          %v1823 = vrot.slane %v1822, 4
          %v1824 = vrot.slane %v1675, 5
          %v1825 = vsel %vm894, %v1823, %v1824
          %v1826 = vrot.slane %v1824, 4
          %v1827 = vrot.slane %v1676, 5
          %v1828 = vsel %vm894, %v1826, %v1827
          %v1829 = vrot.slane %v1677, 5
          %v1830 = vrot.slane %v1829, 4
          %v1831 = vrot.slane %v1678, 5
          %v1832 = vsel %vm894, %v1830, %v1831
          %v1833 = vrot.slane %v1831, 4
          %v1834 = vrot.slane %v1679, 5
          %v1835 = vsel %vm894, %v1833, %v1834
          %v1836 = vrot.slane %v1680, 5
          %v1837 = vrot.slane %v1836, 4
          %v1838 = vrot.slane %v1681, 5
          %v1839 = vsel %vm894, %v1837, %v1838
          %v1840 = vrot.slane %v1838, 4
          %v1841 = vrot.slane %v1682, 5
          %v1842 = vsel %vm894, %v1840, %v1841
          %1875 = vst [vmem:[#allocation2 + $0x14] sm:$0xf] %v1734
          %1876 = vst [vmem:[#allocation2 + $0x38] sm:$0xf] %v1737
          %1877 = vst [vmem:[#allocation2 + $0x5c] sm:$0xf] %v1741
          %1878 = vst [vmem:[#allocation2 + $0x80] sm:$0xf] %v1744
          %1879 = vst [vmem:[#allocation2 + $0xa4] sm:$0xf] %v1748
          %1880 = vst [vmem:[#allocation2 + $0xc8] sm:$0xf] %v1751
          %1881 = vst [vmem:[#allocation2 + $0xec] sm:$0xf] %v1755
          %1882 = vst [vmem:[#allocation2 + $0x110] sm:$0xf] %v1758
          %1883 = vst [vmem:[#allocation2 + $0x134] sm:$0xf] %v1762
          %1884 = vst [vmem:[#allocation2 + $0x158] sm:$0xf] %v1765
          %1885 = vst [vmem:[#allocation2 + $0x17c] sm:$0xf] %v1769
          %1886 = vst [vmem:[#allocation2 + $0x1a0] sm:$0xf] %v1772
          %1887 = vst [vmem:[#allocation2 + $0x1c4] sm:$0xf] %v1776
          %1888 = vst [vmem:[#allocation2 + $0x1e8] sm:$0xf] %v1779
          %1889 = vst [vmem:[#allocation2 + $0x20c] sm:$0xf] %v1783
          %1890 = vst [vmem:[#allocation2 + $0x230] sm:$0xf] %v1786
          %1891 = vst [vmem:[#allocation2 + $0x254] sm:$0xf] %v1790
          %1892 = vst [vmem:[#allocation2 + $0x278] sm:$0xf] %v1793
          %1893 = vst [vmem:[#allocation2 + $0x29c] sm:$0xf] %v1797
          %1894 = vst [vmem:[#allocation2 + $0x2c0] sm:$0xf] %v1800
          %1895 = vst [vmem:[#allocation2 + $0x2e4] sm:$0xf] %v1804
          %1896 = vst [vmem:[#allocation2 + $0x308] sm:$0xf] %v1807
          %1897 = vst [vmem:[#allocation2 + $0x32c] sm:$0xf] %v1811
          %1898 = vst [vmem:[#allocation2 + $0x350] sm:$0xf] %v1814
          %1899 = vst [vmem:[#allocation2 + $0x374] sm:$0xf] %v1818
          %1900 = vst [vmem:[#allocation2 + $0x398] sm:$0xf] %v1821
          %1901 = vst [vmem:[#allocation2 + $0x3bc] sm:$0xf] %v1825
          %1902 = vst [vmem:[#allocation2 + $0x3e0] sm:$0xf] %v1828
          %1903 = vst [vmem:[#allocation2 + $0x404] sm:$0xf] %v1832
          %1904 = vst [vmem:[#allocation2 + $0x428] sm:$0xf] %v1835
          %1905 = vst [vmem:[#allocation2 + $0x44c] sm:$0xf] %v1839
          %1906 = vst [vmem:[#allocation2 + $0x470] sm:$0xf] %v1842
          %s1907 = sadd.s32 %s229, 2
          %s1908 = smul.u32 %s1907, 3
          %s1909 = smul.addr %s1908, 4
          %s1910 = scalar_lea.vmem %s215, %s1909
          %v1911 = vld [vmem:[%s1910] sm:$0xf]
          %v1912 = vld [vmem:[%s1910 + $0x4] sm:$0xf]
          %v1913 = vld [vmem:[%s1910 + $0xc] sm:$0xf]
          %v1914 = vld [vmem:[%s1910 + $0x10] sm:$0xf]
          %v1915 = vld [vmem:[%s1910 + $0x18] sm:$0xf]
          %v1916 = vld [vmem:[%s1910 + $0x1c] sm:$0xf]
          %v1917 = vld [vmem:[%s1910 + $0x24] sm:$0xf]
          %v1918 = vld [vmem:[%s1910 + $0x28] sm:$0xf]
          %v1919 = vld [vmem:[%s1910 + $0x30] sm:$0xf]
          %v1920 = vld [vmem:[%s1910 + $0x34] sm:$0xf]
          %v1921 = vld [vmem:[%s1910 + $0x3c] sm:$0xf]
          %v1922 = vld [vmem:[%s1910 + $0x40] sm:$0xf]
          %v1923 = vld [vmem:[%s1910 + $0x48] sm:$0xf]
          %v1924 = vld [vmem:[%s1910 + $0x4c] sm:$0xf]
          %v1925 = vld [vmem:[%s1910 + $0x54] sm:$0xf]
          %v1926 = vld [vmem:[%s1910 + $0x58] sm:$0xf]
          %v1927 = vld [vmem:[%s1910 + $0x60] sm:$0xf]
          %v1928 = vld [vmem:[%s1910 + $0x64] sm:$0xf]
          %v1929 = vld [vmem:[%s1910 + $0x6c] sm:$0xf]
          %v1930 = vld [vmem:[%s1910 + $0x70] sm:$0xf]
          %v1931 = vld [vmem:[%s1910 + $0x78] sm:$0xf]
          %v1932 = vld [vmem:[%s1910 + $0x7c] sm:$0xf]
          %v1933 = vld [vmem:[%s1910 + $0x84] sm:$0xf]
          %v1934 = vld [vmem:[%s1910 + $0x88] sm:$0xf]
          %v1935 = vld [vmem:[%s1910 + $0x90] sm:$0xf]
          %v1936 = vld [vmem:[%s1910 + $0x94] sm:$0xf]
          %v1937 = vld [vmem:[%s1910 + $0x9c] sm:$0xf]
          %v1938 = vld [vmem:[%s1910 + $0xa0] sm:$0xf]
          %v1939 = vld [vmem:[%s1910 + $0xa8] sm:$0xf]
          %v1940 = vld [vmem:[%s1910 + $0xac] sm:$0xf]
          %v1941 = vld [vmem:[%s1910 + $0xb4] sm:$0xf]
          %v1942 = vld [vmem:[%s1910 + $0xb8] sm:$0xf]
          %1943 = vst [vmem:[#allocation2 + $0x18] sm:$0xf] %v1911
          %1944 = vst [vmem:[#allocation2 + $0x3c] sm:$0xf] %v1912
          %1945 = vst [vmem:[#allocation2 + $0x60] sm:$0xf] %v1913
          %1946 = vst [vmem:[#allocation2 + $0x84] sm:$0xf] %v1914
          %1947 = vst [vmem:[#allocation2 + $0xa8] sm:$0xf] %v1915
          %1948 = vst [vmem:[#allocation2 + $0xcc] sm:$0xf] %v1916
          %1949 = vst [vmem:[#allocation2 + $0xf0] sm:$0xf] %v1917
          %1950 = vst [vmem:[#allocation2 + $0x114] sm:$0xf] %v1918
          %1951 = vst [vmem:[#allocation2 + $0x138] sm:$0xf] %v1919
          %1952 = vst [vmem:[#allocation2 + $0x15c] sm:$0xf] %v1920
          %1953 = vst [vmem:[#allocation2 + $0x180] sm:$0xf] %v1921
          %1954 = vst [vmem:[#allocation2 + $0x1a4] sm:$0xf] %v1922
          %1955 = vst [vmem:[#allocation2 + $0x1c8] sm:$0xf] %v1923
          %1956 = vst [vmem:[#allocation2 + $0x1ec] sm:$0xf] %v1924
          %1957 = vst [vmem:[#allocation2 + $0x210] sm:$0xf] %v1925
          %1958 = vst [vmem:[#allocation2 + $0x234] sm:$0xf] %v1926
          %1959 = vst [vmem:[#allocation2 + $0x258] sm:$0xf] %v1927
          %1960 = vst [vmem:[#allocation2 + $0x27c] sm:$0xf] %v1928
          %1961 = vst [vmem:[#allocation2 + $0x2a0] sm:$0xf] %v1929
          %1962 = vst [vmem:[#allocation2 + $0x2c4] sm:$0xf] %v1930
          %1963 = vst [vmem:[#allocation2 + $0x2e8] sm:$0xf] %v1931
          %1964 = vst [vmem:[#allocation2 + $0x30c] sm:$0xf] %v1932
          %1965 = vst [vmem:[#allocation2 + $0x330] sm:$0xf] %v1933
          %1966 = vst [vmem:[#allocation2 + $0x354] sm:$0xf] %v1934
          %1967 = vst [vmem:[#allocation2 + $0x378] sm:$0xf] %v1935
          %1968 = vst [vmem:[#allocation2 + $0x39c] sm:$0xf] %v1936
          %1969 = vst [vmem:[#allocation2 + $0x3c0] sm:$0xf] %v1937
          %1970 = vst [vmem:[#allocation2 + $0x3e4] sm:$0xf] %v1938
          %1971 = vst [vmem:[#allocation2 + $0x408] sm:$0xf] %v1939
          %1972 = vst [vmem:[#allocation2 + $0x42c] sm:$0xf] %v1940
          %1973 = vst [vmem:[#allocation2 + $0x450] sm:$0xf] %v1941
          %1974 = vst [vmem:[#allocation2 + $0x474] sm:$0xf] %v1942
          %v1975 = vld [vmem:[%s1910] sm:$0xf]
          %v1976 = vld [vmem:[%s1910 + $0x4] sm:$0xf]
          %v1977 = vld [vmem:[%s1910 + $0x8] sm:$0x1]
          %v1978 = vld [vmem:[%s1910 + $0xc] sm:$0xf]
          %v1979 = vld [vmem:[%s1910 + $0x10] sm:$0xf]
          %v1980 = vld [vmem:[%s1910 + $0x14] sm:$0x1]
          %v1981 = vld [vmem:[%s1910 + $0x18] sm:$0xf]
          %v1982 = vld [vmem:[%s1910 + $0x1c] sm:$0xf]
          %v1983 = vld [vmem:[%s1910 + $0x20] sm:$0x1]
          %v1984 = vld [vmem:[%s1910 + $0x24] sm:$0xf]
          %v1985 = vld [vmem:[%s1910 + $0x28] sm:$0xf]
          %v1986 = vld [vmem:[%s1910 + $0x2c] sm:$0x1]
          %v1987 = vld [vmem:[%s1910 + $0x30] sm:$0xf]
          %v1988 = vld [vmem:[%s1910 + $0x34] sm:$0xf]
          %v1989 = vld [vmem:[%s1910 + $0x38] sm:$0x1]
          %v1990 = vld [vmem:[%s1910 + $0x3c] sm:$0xf]
          %v1991 = vld [vmem:[%s1910 + $0x40] sm:$0xf]
          %v1992 = vld [vmem:[%s1910 + $0x44] sm:$0x1]
          %v1993 = vld [vmem:[%s1910 + $0x48] sm:$0xf]
          %v1994 = vld [vmem:[%s1910 + $0x4c] sm:$0xf]
          %v1995 = vld [vmem:[%s1910 + $0x50] sm:$0x1]
          %v1996 = vld [vmem:[%s1910 + $0x54] sm:$0xf]
          %v1997 = vld [vmem:[%s1910 + $0x58] sm:$0xf]
          %v1998 = vld [vmem:[%s1910 + $0x5c] sm:$0x1]
          %v1999 = vld [vmem:[%s1910 + $0x60] sm:$0xf]
          %v2000 = vld [vmem:[%s1910 + $0x64] sm:$0xf]
          %v2001 = vld [vmem:[%s1910 + $0x68] sm:$0x1]
          %v2002 = vld [vmem:[%s1910 + $0x6c] sm:$0xf]
          %v2003 = vld [vmem:[%s1910 + $0x70] sm:$0xf]
          %v2004 = vld [vmem:[%s1910 + $0x74] sm:$0x1]
          %v2005 = vld [vmem:[%s1910 + $0x78] sm:$0xf]
          %v2006 = vld [vmem:[%s1910 + $0x7c] sm:$0xf]
          %v2007 = vld [vmem:[%s1910 + $0x80] sm:$0x1]
          %v2008 = vld [vmem:[%s1910 + $0x84] sm:$0xf]
          %v2009 = vld [vmem:[%s1910 + $0x88] sm:$0xf]
          %v2010 = vld [vmem:[%s1910 + $0x8c] sm:$0x1]
          %v2011 = vld [vmem:[%s1910 + $0x90] sm:$0xf]
          %v2012 = vld [vmem:[%s1910 + $0x94] sm:$0xf]
          %v2013 = vld [vmem:[%s1910 + $0x98] sm:$0x1]
          %v2014 = vld [vmem:[%s1910 + $0x9c] sm:$0xf]
          %v2015 = vld [vmem:[%s1910 + $0xa0] sm:$0xf]
          %v2016 = vld [vmem:[%s1910 + $0xa4] sm:$0x1]
          %v2017 = vld [vmem:[%s1910 + $0xa8] sm:$0xf]
          %v2018 = vld [vmem:[%s1910 + $0xac] sm:$0xf]
          %v2019 = vld [vmem:[%s1910 + $0xb0] sm:$0x1]
          %v2020 = vld [vmem:[%s1910 + $0xb4] sm:$0xf]
          %v2021 = vld [vmem:[%s1910 + $0xb8] sm:$0xf]
          %v2022 = vld [vmem:[%s1910 + $0xbc] sm:$0x1]
          %v2024 = vshrl.u32 %v1975, 16
          %v2026 = vrot.slane %v2024, 4
          %v2027 = vshll.u32 %v1975, 16
          %v2029 = vrot.slane %v2027, 5
          %v2030 = vor.u32 %v2026, %v2029
          %v2031 = vrot.slane %v2030, 4
          %v2033 = vshll.u32 %v1976, 16
          %v2035 = vrot.slane %v2033, 5
          %v2036 = vsel %vm347, %v2031, %v2035
          %v2037 = vshrl.u32 %v1976, 16
          %v2039 = vrot.slane %v2037, 4
          %v2040 = vor.u32 %v2039, %v2035
          %v2041 = vrot.slane %v2040, 4
          %v2043 = vshll.u32 %v1977, 16
          %v2045 = vrot.slane %v2043, 5
          %v2046 = vsel %vm347, %v2041, %v2045
          %v2048 = vshrl.u32 %v1978, 16
          %v2050 = vrot.slane %v2048, 4
          %v2051 = vshll.u32 %v1978, 16
          %v2053 = vrot.slane %v2051, 5
          %v2054 = vor.u32 %v2050, %v2053
          %v2055 = vrot.slane %v2054, 4
          %v2057 = vshll.u32 %v1979, 16
          %v2059 = vrot.slane %v2057, 5
          %v2060 = vsel %vm347, %v2055, %v2059
          %v2061 = vshrl.u32 %v1979, 16
          %v2063 = vrot.slane %v2061, 4
          %v2064 = vor.u32 %v2063, %v2059
          %v2065 = vrot.slane %v2064, 4
          %v2067 = vshll.u32 %v1980, 16
          %v2069 = vrot.slane %v2067, 5
          %v2070 = vsel %vm347, %v2065, %v2069
          %v2072 = vshrl.u32 %v1981, 16
          %v2074 = vrot.slane %v2072, 4
          %v2075 = vshll.u32 %v1981, 16
          %v2077 = vrot.slane %v2075, 5
          %v2078 = vor.u32 %v2074, %v2077
          %v2079 = vrot.slane %v2078, 4
          %v2081 = vshll.u32 %v1982, 16
          %v2083 = vrot.slane %v2081, 5
          %v2084 = vsel %vm347, %v2079, %v2083
          %v2085 = vshrl.u32 %v1982, 16
          %v2087 = vrot.slane %v2085, 4
          %v2088 = vor.u32 %v2087, %v2083
          %v2089 = vrot.slane %v2088, 4
          %v2091 = vshll.u32 %v1983, 16
          %v2093 = vrot.slane %v2091, 5
          %v2094 = vsel %vm347, %v2089, %v2093
          %v2096 = vshrl.u32 %v1984, 16
          %v2098 = vrot.slane %v2096, 4
          %v2099 = vshll.u32 %v1984, 16
          %v2101 = vrot.slane %v2099, 5
          %v2102 = vor.u32 %v2098, %v2101
          %v2103 = vrot.slane %v2102, 4
          %v2105 = vshll.u32 %v1985, 16
          %v2107 = vrot.slane %v2105, 5
          %v2108 = vsel %vm347, %v2103, %v2107
          %v2109 = vshrl.u32 %v1985, 16
          %v2111 = vrot.slane %v2109, 4
          %v2112 = vor.u32 %v2111, %v2107
          %v2113 = vrot.slane %v2112, 4
          %v2115 = vshll.u32 %v1986, 16
          %v2117 = vrot.slane %v2115, 5
          %v2118 = vsel %vm347, %v2113, %v2117
          %v2120 = vshrl.u32 %v1987, 16
          %v2122 = vrot.slane %v2120, 4
          %v2123 = vshll.u32 %v1987, 16
          %v2125 = vrot.slane %v2123, 5
          %v2126 = vor.u32 %v2122, %v2125
          %v2127 = vrot.slane %v2126, 4
          %v2129 = vshll.u32 %v1988, 16
          %v2131 = vrot.slane %v2129, 5
          %v2132 = vsel %vm347, %v2127, %v2131
          %v2133 = vshrl.u32 %v1988, 16
          %v2135 = vrot.slane %v2133, 4
          %v2136 = vor.u32 %v2135, %v2131
          %v2137 = vrot.slane %v2136, 4
          %v2139 = vshll.u32 %v1989, 16
          %v2141 = vrot.slane %v2139, 5
          %v2142 = vsel %vm347, %v2137, %v2141
          %v2144 = vshrl.u32 %v1990, 16
          %v2146 = vrot.slane %v2144, 4
          %v2147 = vshll.u32 %v1990, 16
          %v2149 = vrot.slane %v2147, 5
          %v2150 = vor.u32 %v2146, %v2149
          %v2151 = vrot.slane %v2150, 4
          %v2153 = vshll.u32 %v1991, 16
          %v2155 = vrot.slane %v2153, 5
          %v2156 = vsel %vm347, %v2151, %v2155
          %v2157 = vshrl.u32 %v1991, 16
          %v2159 = vrot.slane %v2157, 4
          %v2160 = vor.u32 %v2159, %v2155
          %v2161 = vrot.slane %v2160, 4
          %v2163 = vshll.u32 %v1992, 16
          %v2165 = vrot.slane %v2163, 5
          %v2166 = vsel %vm347, %v2161, %v2165
          %v2168 = vshrl.u32 %v1993, 16
          %v2170 = vrot.slane %v2168, 4
          %v2171 = vshll.u32 %v1993, 16
          %v2173 = vrot.slane %v2171, 5
          %v2174 = vor.u32 %v2170, %v2173
          %v2175 = vrot.slane %v2174, 4
          %v2177 = vshll.u32 %v1994, 16
          %v2179 = vrot.slane %v2177, 5
          %v2180 = vsel %vm347, %v2175, %v2179
          %v2181 = vshrl.u32 %v1994, 16
          %v2183 = vrot.slane %v2181, 4
          %v2184 = vor.u32 %v2183, %v2179
          %v2185 = vrot.slane %v2184, 4
          %v2187 = vshll.u32 %v1995, 16
          %v2189 = vrot.slane %v2187, 5
          %v2190 = vsel %vm347, %v2185, %v2189
          %v2192 = vshrl.u32 %v1996, 16
          %v2194 = vrot.slane %v2192, 4
          %v2195 = vshll.u32 %v1996, 16
          %v2197 = vrot.slane %v2195, 5
          %v2198 = vor.u32 %v2194, %v2197
          %v2199 = vrot.slane %v2198, 4
          %v2201 = vshll.u32 %v1997, 16
          %v2203 = vrot.slane %v2201, 5
          %v2204 = vsel %vm347, %v2199, %v2203
          %v2205 = vshrl.u32 %v1997, 16
          %v2207 = vrot.slane %v2205, 4
          %v2208 = vor.u32 %v2207, %v2203
          %v2209 = vrot.slane %v2208, 4
          %v2211 = vshll.u32 %v1998, 16
          %v2213 = vrot.slane %v2211, 5
          %v2214 = vsel %vm347, %v2209, %v2213
          %v2216 = vshrl.u32 %v1999, 16
          %v2218 = vrot.slane %v2216, 4
          %v2219 = vshll.u32 %v1999, 16
          %v2221 = vrot.slane %v2219, 5
          %v2222 = vor.u32 %v2218, %v2221
          %v2223 = vrot.slane %v2222, 4
          %v2225 = vshll.u32 %v2000, 16
          %v2227 = vrot.slane %v2225, 5
          %v2228 = vsel %vm347, %v2223, %v2227
          %v2229 = vshrl.u32 %v2000, 16
          %v2231 = vrot.slane %v2229, 4
          %v2232 = vor.u32 %v2231, %v2227
          %v2233 = vrot.slane %v2232, 4
          %v2235 = vshll.u32 %v2001, 16
          %v2237 = vrot.slane %v2235, 5
          %v2238 = vsel %vm347, %v2233, %v2237
          %v2240 = vshrl.u32 %v2002, 16
          %v2242 = vrot.slane %v2240, 4
          %v2243 = vshll.u32 %v2002, 16
          %v2245 = vrot.slane %v2243, 5
          %v2246 = vor.u32 %v2242, %v2245
          %v2247 = vrot.slane %v2246, 4
          %v2249 = vshll.u32 %v2003, 16
          %v2251 = vrot.slane %v2249, 5
          %v2252 = vsel %vm347, %v2247, %v2251
          %v2253 = vshrl.u32 %v2003, 16
          %v2255 = vrot.slane %v2253, 4
          %v2256 = vor.u32 %v2255, %v2251
          %v2257 = vrot.slane %v2256, 4
          %v2259 = vshll.u32 %v2004, 16
          %v2261 = vrot.slane %v2259, 5
          %v2262 = vsel %vm347, %v2257, %v2261
          %v2264 = vshrl.u32 %v2005, 16
          %v2266 = vrot.slane %v2264, 4
          %v2267 = vshll.u32 %v2005, 16
          %v2269 = vrot.slane %v2267, 5
          %v2270 = vor.u32 %v2266, %v2269
          %v2271 = vrot.slane %v2270, 4
          %v2273 = vshll.u32 %v2006, 16
          %v2275 = vrot.slane %v2273, 5
          %v2276 = vsel %vm347, %v2271, %v2275
          %v2277 = vshrl.u32 %v2006, 16
          %v2279 = vrot.slane %v2277, 4
          %v2280 = vor.u32 %v2279, %v2275
          %v2281 = vrot.slane %v2280, 4
          %v2283 = vshll.u32 %v2007, 16
          %v2285 = vrot.slane %v2283, 5
          %v2286 = vsel %vm347, %v2281, %v2285
          %v2288 = vshrl.u32 %v2008, 16
          %v2290 = vrot.slane %v2288, 4
          %v2291 = vshll.u32 %v2008, 16
          %v2293 = vrot.slane %v2291, 5
          %v2294 = vor.u32 %v2290, %v2293
          %v2295 = vrot.slane %v2294, 4
          %v2297 = vshll.u32 %v2009, 16
          %v2299 = vrot.slane %v2297, 5
          %v2300 = vsel %vm347, %v2295, %v2299
          %v2301 = vshrl.u32 %v2009, 16
          %v2303 = vrot.slane %v2301, 4
          %v2304 = vor.u32 %v2303, %v2299
          %v2305 = vrot.slane %v2304, 4
          %v2307 = vshll.u32 %v2010, 16
          %v2309 = vrot.slane %v2307, 5
          %v2310 = vsel %vm347, %v2305, %v2309
          %v2312 = vshrl.u32 %v2011, 16
          %v2314 = vrot.slane %v2312, 4
          %v2315 = vshll.u32 %v2011, 16
          %v2317 = vrot.slane %v2315, 5
          %v2318 = vor.u32 %v2314, %v2317
          %v2319 = vrot.slane %v2318, 4
          %v2321 = vshll.u32 %v2012, 16
          %v2323 = vrot.slane %v2321, 5
          %v2324 = vsel %vm347, %v2319, %v2323
          %v2325 = vshrl.u32 %v2012, 16
          %v2327 = vrot.slane %v2325, 4
          %v2328 = vor.u32 %v2327, %v2323
          %v2329 = vrot.slane %v2328, 4
          %v2331 = vshll.u32 %v2013, 16
          %v2333 = vrot.slane %v2331, 5
          %v2334 = vsel %vm347, %v2329, %v2333
          %v2336 = vshrl.u32 %v2014, 16
          %v2338 = vrot.slane %v2336, 4
          %v2339 = vshll.u32 %v2014, 16
          %v2341 = vrot.slane %v2339, 5
          %v2342 = vor.u32 %v2338, %v2341
          %v2343 = vrot.slane %v2342, 4
          %v2345 = vshll.u32 %v2015, 16
          %v2347 = vrot.slane %v2345, 5
          %v2348 = vsel %vm347, %v2343, %v2347
          %v2349 = vshrl.u32 %v2015, 16
          %v2351 = vrot.slane %v2349, 4
          %v2352 = vor.u32 %v2351, %v2347
          %v2353 = vrot.slane %v2352, 4
          %v2355 = vshll.u32 %v2016, 16
          %v2357 = vrot.slane %v2355, 5
          %v2358 = vsel %vm347, %v2353, %v2357
          %v2360 = vshrl.u32 %v2017, 16
          %v2362 = vrot.slane %v2360, 4
          %v2363 = vshll.u32 %v2017, 16
          %v2365 = vrot.slane %v2363, 5
          %v2366 = vor.u32 %v2362, %v2365
          %v2367 = vrot.slane %v2366, 4
          %v2369 = vshll.u32 %v2018, 16
          %v2371 = vrot.slane %v2369, 5
          %v2372 = vsel %vm347, %v2367, %v2371
          %v2373 = vshrl.u32 %v2018, 16
          %v2375 = vrot.slane %v2373, 4
          %v2376 = vor.u32 %v2375, %v2371
          %v2377 = vrot.slane %v2376, 4
          %v2379 = vshll.u32 %v2019, 16
          %v2381 = vrot.slane %v2379, 5
          %v2382 = vsel %vm347, %v2377, %v2381
          %v2384 = vshrl.u32 %v2020, 16
          %v2386 = vrot.slane %v2384, 4
          %v2387 = vshll.u32 %v2020, 16
          %v2389 = vrot.slane %v2387, 5
          %v2390 = vor.u32 %v2386, %v2389
          %v2391 = vrot.slane %v2390, 4
          %v2393 = vshll.u32 %v2021, 16
          %v2395 = vrot.slane %v2393, 5
          %v2396 = vsel %vm347, %v2391, %v2395
          %v2397 = vshrl.u32 %v2021, 16
          %v2399 = vrot.slane %v2397, 4
          %v2400 = vor.u32 %v2399, %v2395
          %v2401 = vrot.slane %v2400, 4
          %v2403 = vshll.u32 %v2022, 16
          %v2405 = vrot.slane %v2403, 5
          %v2406 = vsel %vm347, %v2401, %v2405
          %2439 = vst [vmem:[#allocation2 + $0x1c] sm:$0xf] %v2036
          %2440 = vst [vmem:[#allocation2 + $0x40] sm:$0xf] %v2046
          %2441 = vst [vmem:[#allocation2 + $0x64] sm:$0xf] %v2060
          %2442 = vst [vmem:[#allocation2 + $0x88] sm:$0xf] %v2070
          %2443 = vst [vmem:[#allocation2 + $0xac] sm:$0xf] %v2084
          %2444 = vst [vmem:[#allocation2 + $0xd0] sm:$0xf] %v2094
          %2445 = vst [vmem:[#allocation2 + $0xf4] sm:$0xf] %v2108
          %2446 = vst [vmem:[#allocation2 + $0x118] sm:$0xf] %v2118
          %2447 = vst [vmem:[#allocation2 + $0x13c] sm:$0xf] %v2132
          %2448 = vst [vmem:[#allocation2 + $0x160] sm:$0xf] %v2142
          %2449 = vst [vmem:[#allocation2 + $0x184] sm:$0xf] %v2156
          %2450 = vst [vmem:[#allocation2 + $0x1a8] sm:$0xf] %v2166
          %2451 = vst [vmem:[#allocation2 + $0x1cc] sm:$0xf] %v2180
          %2452 = vst [vmem:[#allocation2 + $0x1f0] sm:$0xf] %v2190
          %2453 = vst [vmem:[#allocation2 + $0x214] sm:$0xf] %v2204
          %2454 = vst [vmem:[#allocation2 + $0x238] sm:$0xf] %v2214
          %2455 = vst [vmem:[#allocation2 + $0x25c] sm:$0xf] %v2228
          %2456 = vst [vmem:[#allocation2 + $0x280] sm:$0xf] %v2238
          %2457 = vst [vmem:[#allocation2 + $0x2a4] sm:$0xf] %v2252
          %2458 = vst [vmem:[#allocation2 + $0x2c8] sm:$0xf] %v2262
          %2459 = vst [vmem:[#allocation2 + $0x2ec] sm:$0xf] %v2276
          %2460 = vst [vmem:[#allocation2 + $0x310] sm:$0xf] %v2286
          %2461 = vst [vmem:[#allocation2 + $0x334] sm:$0xf] %v2300
          %2462 = vst [vmem:[#allocation2 + $0x358] sm:$0xf] %v2310
          %2463 = vst [vmem:[#allocation2 + $0x37c] sm:$0xf] %v2324
          %2464 = vst [vmem:[#allocation2 + $0x3a0] sm:$0xf] %v2334
          %2465 = vst [vmem:[#allocation2 + $0x3c4] sm:$0xf] %v2348
          %2466 = vst [vmem:[#allocation2 + $0x3e8] sm:$0xf] %v2358
          %2467 = vst [vmem:[#allocation2 + $0x40c] sm:$0xf] %v2372
          %2468 = vst [vmem:[#allocation2 + $0x430] sm:$0xf] %v2382
          %2469 = vst [vmem:[#allocation2 + $0x454] sm:$0xf] %v2396
          %2470 = vst [vmem:[#allocation2 + $0x478] sm:$0xf] %v2406
          %v2471 = vld [vmem:[%s1910] sm:$0xe]
          %v2472 = vld [vmem:[%s1910 + $0x4] sm:$0xf]
          %v2473 = vld [vmem:[%s1910 + $0x8] sm:$0x1]
          %v2474 = vld [vmem:[%s1910 + $0xc] sm:$0xe]
          %v2475 = vld [vmem:[%s1910 + $0x10] sm:$0xf]
          %v2476 = vld [vmem:[%s1910 + $0x14] sm:$0x1]
          %v2477 = vld [vmem:[%s1910 + $0x18] sm:$0xe]
          %v2478 = vld [vmem:[%s1910 + $0x1c] sm:$0xf]
          %v2479 = vld [vmem:[%s1910 + $0x20] sm:$0x1]
          %v2480 = vld [vmem:[%s1910 + $0x24] sm:$0xe]
          %v2481 = vld [vmem:[%s1910 + $0x28] sm:$0xf]
          %v2482 = vld [vmem:[%s1910 + $0x2c] sm:$0x1]
          %v2483 = vld [vmem:[%s1910 + $0x30] sm:$0xe]
          %v2484 = vld [vmem:[%s1910 + $0x34] sm:$0xf]
          %v2485 = vld [vmem:[%s1910 + $0x38] sm:$0x1]
          %v2486 = vld [vmem:[%s1910 + $0x3c] sm:$0xe]
          %v2487 = vld [vmem:[%s1910 + $0x40] sm:$0xf]
          %v2488 = vld [vmem:[%s1910 + $0x44] sm:$0x1]
          %v2489 = vld [vmem:[%s1910 + $0x48] sm:$0xe]
          %v2490 = vld [vmem:[%s1910 + $0x4c] sm:$0xf]
          %v2491 = vld [vmem:[%s1910 + $0x50] sm:$0x1]
          %v2492 = vld [vmem:[%s1910 + $0x54] sm:$0xe]
          %v2493 = vld [vmem:[%s1910 + $0x58] sm:$0xf]
          %v2494 = vld [vmem:[%s1910 + $0x5c] sm:$0x1]
          %v2495 = vld [vmem:[%s1910 + $0x60] sm:$0xe]
          %v2496 = vld [vmem:[%s1910 + $0x64] sm:$0xf]
          %v2497 = vld [vmem:[%s1910 + $0x68] sm:$0x1]
          %v2498 = vld [vmem:[%s1910 + $0x6c] sm:$0xe]
          %v2499 = vld [vmem:[%s1910 + $0x70] sm:$0xf]
          %v2500 = vld [vmem:[%s1910 + $0x74] sm:$0x1]
          %v2501 = vld [vmem:[%s1910 + $0x78] sm:$0xe]
          %v2502 = vld [vmem:[%s1910 + $0x7c] sm:$0xf]
          %v2503 = vld [vmem:[%s1910 + $0x80] sm:$0x1]
          %v2504 = vld [vmem:[%s1910 + $0x84] sm:$0xe]
          %v2505 = vld [vmem:[%s1910 + $0x88] sm:$0xf]
          %v2506 = vld [vmem:[%s1910 + $0x8c] sm:$0x1]
          %v2507 = vld [vmem:[%s1910 + $0x90] sm:$0xe]
          %v2508 = vld [vmem:[%s1910 + $0x94] sm:$0xf]
          %v2509 = vld [vmem:[%s1910 + $0x98] sm:$0x1]
          %v2510 = vld [vmem:[%s1910 + $0x9c] sm:$0xe]
          %v2511 = vld [vmem:[%s1910 + $0xa0] sm:$0xf]
          %v2512 = vld [vmem:[%s1910 + $0xa4] sm:$0x1]
          %v2513 = vld [vmem:[%s1910 + $0xa8] sm:$0xe]
          %v2514 = vld [vmem:[%s1910 + $0xac] sm:$0xf]
          %v2515 = vld [vmem:[%s1910 + $0xb0] sm:$0x1]
          %v2516 = vld [vmem:[%s1910 + $0xb4] sm:$0xe]
          %v2517 = vld [vmem:[%s1910 + $0xb8] sm:$0xf]
          %v2518 = vld [vmem:[%s1910 + $0xbc] sm:$0x1]
          %v2567 = vrot.slane %v2471, 5
          %v2568 = vrot.slane %v2567, 4
          %v2569 = vrot.slane %v2472, 5
          %v2570 = vsel %vm894, %v2568, %v2569
          %v2571 = vrot.slane %v2569, 4
          %v2572 = vrot.slane %v2473, 5
          %v2573 = vsel %vm894, %v2571, %v2572
          %v2574 = vrot.slane %v2474, 5
          %v2575 = vrot.slane %v2574, 4
          %v2576 = vrot.slane %v2475, 5
          %v2577 = vsel %vm894, %v2575, %v2576
          %v2578 = vrot.slane %v2576, 4
          %v2579 = vrot.slane %v2476, 5
          %v2580 = vsel %vm894, %v2578, %v2579
          %v2581 = vrot.slane %v2477, 5
          %v2582 = vrot.slane %v2581, 4
          %v2583 = vrot.slane %v2478, 5
          %v2584 = vsel %vm894, %v2582, %v2583
          %v2585 = vrot.slane %v2583, 4
          %v2586 = vrot.slane %v2479, 5
          %v2587 = vsel %vm894, %v2585, %v2586
          %v2588 = vrot.slane %v2480, 5
          %v2589 = vrot.slane %v2588, 4
          %v2590 = vrot.slane %v2481, 5
          %v2591 = vsel %vm894, %v2589, %v2590
          %v2592 = vrot.slane %v2590, 4
          %v2593 = vrot.slane %v2482, 5
          %v2594 = vsel %vm894, %v2592, %v2593
          %v2595 = vrot.slane %v2483, 5
          %v2596 = vrot.slane %v2595, 4
          %v2597 = vrot.slane %v2484, 5
          %v2598 = vsel %vm894, %v2596, %v2597
          %v2599 = vrot.slane %v2597, 4
          %v2600 = vrot.slane %v2485, 5
          %v2601 = vsel %vm894, %v2599, %v2600
          %v2602 = vrot.slane %v2486, 5
          %v2603 = vrot.slane %v2602, 4
          %v2604 = vrot.slane %v2487, 5
          %v2605 = vsel %vm894, %v2603, %v2604
          %v2606 = vrot.slane %v2604, 4
          %v2607 = vrot.slane %v2488, 5
          %v2608 = vsel %vm894, %v2606, %v2607
          %v2609 = vrot.slane %v2489, 5
          %v2610 = vrot.slane %v2609, 4
          %v2611 = vrot.slane %v2490, 5
          %v2612 = vsel %vm894, %v2610, %v2611
          %v2613 = vrot.slane %v2611, 4
          %v2614 = vrot.slane %v2491, 5
          %v2615 = vsel %vm894, %v2613, %v2614
          %v2616 = vrot.slane %v2492, 5
          %v2617 = vrot.slane %v2616, 4
          %v2618 = vrot.slane %v2493, 5
          %v2619 = vsel %vm894, %v2617, %v2618
          %v2620 = vrot.slane %v2618, 4
          %v2621 = vrot.slane %v2494, 5
          %v2622 = vsel %vm894, %v2620, %v2621
          %v2623 = vrot.slane %v2495, 5
          %v2624 = vrot.slane %v2623, 4
          %v2625 = vrot.slane %v2496, 5
          %v2626 = vsel %vm894, %v2624, %v2625
          %v2627 = vrot.slane %v2625, 4
          %v2628 = vrot.slane %v2497, 5
          %v2629 = vsel %vm894, %v2627, %v2628
          %v2630 = vrot.slane %v2498, 5
          %v2631 = vrot.slane %v2630, 4
          %v2632 = vrot.slane %v2499, 5
          %v2633 = vsel %vm894, %v2631, %v2632
          %v2634 = vrot.slane %v2632, 4
          %v2635 = vrot.slane %v2500, 5
          %v2636 = vsel %vm894, %v2634, %v2635
          %v2637 = vrot.slane %v2501, 5
          %v2638 = vrot.slane %v2637, 4
          %v2639 = vrot.slane %v2502, 5
          %v2640 = vsel %vm894, %v2638, %v2639
          %v2641 = vrot.slane %v2639, 4
          %v2642 = vrot.slane %v2503, 5
          %v2643 = vsel %vm894, %v2641, %v2642
          %v2644 = vrot.slane %v2504, 5
          %v2645 = vrot.slane %v2644, 4
          %v2646 = vrot.slane %v2505, 5
          %v2647 = vsel %vm894, %v2645, %v2646
          %v2648 = vrot.slane %v2646, 4
          %v2649 = vrot.slane %v2506, 5
          %v2650 = vsel %vm894, %v2648, %v2649
          %v2651 = vrot.slane %v2507, 5
          %v2652 = vrot.slane %v2651, 4
          %v2653 = vrot.slane %v2508, 5
          %v2654 = vsel %vm894, %v2652, %v2653
          %v2655 = vrot.slane %v2653, 4
          %v2656 = vrot.slane %v2509, 5
          %v2657 = vsel %vm894, %v2655, %v2656
          %v2658 = vrot.slane %v2510, 5
          %v2659 = vrot.slane %v2658, 4
          %v2660 = vrot.slane %v2511, 5
          %v2661 = vsel %vm894, %v2659, %v2660
          %v2662 = vrot.slane %v2660, 4
          %v2663 = vrot.slane %v2512, 5
          %v2664 = vsel %vm894, %v2662, %v2663
          %v2665 = vrot.slane %v2513, 5
          %v2666 = vrot.slane %v2665, 4
          %v2667 = vrot.slane %v2514, 5
          %v2668 = vsel %vm894, %v2666, %v2667
          %v2669 = vrot.slane %v2667, 4
          %v2670 = vrot.slane %v2515, 5
          %v2671 = vsel %vm894, %v2669, %v2670
          %v2672 = vrot.slane %v2516, 5
          %v2673 = vrot.slane %v2672, 4
          %v2674 = vrot.slane %v2517, 5
          %v2675 = vsel %vm894, %v2673, %v2674
          %v2676 = vrot.slane %v2674, 4
          %v2677 = vrot.slane %v2518, 5
          %v2678 = vsel %vm894, %v2676, %v2677
          %2711 = vst [vmem:[#allocation2 + $0x20] sm:$0xf] %v2570
          %2712 = vst [vmem:[#allocation2 + $0x44] sm:$0xf] %v2573
          %2713 = vst [vmem:[#allocation2 + $0x68] sm:$0xf] %v2577
          %2714 = vst [vmem:[#allocation2 + $0x8c] sm:$0xf] %v2580
          %2715 = vst [vmem:[#allocation2 + $0xb0] sm:$0xf] %v2584
          %2716 = vst [vmem:[#allocation2 + $0xd4] sm:$0xf] %v2587
          %2717 = vst [vmem:[#allocation2 + $0xf8] sm:$0xf] %v2591
          %2718 = vst [vmem:[#allocation2 + $0x11c] sm:$0xf] %v2594
          %2719 = vst [vmem:[#allocation2 + $0x140] sm:$0xf] %v2598
          %2720 = vst [vmem:[#allocation2 + $0x164] sm:$0xf] %v2601
          %2721 = vst [vmem:[#allocation2 + $0x188] sm:$0xf] %v2605
          %2722 = vst [vmem:[#allocation2 + $0x1ac] sm:$0xf] %v2608
          %2723 = vst [vmem:[#allocation2 + $0x1d0] sm:$0xf] %v2612
          %2724 = vst [vmem:[#allocation2 + $0x1f4] sm:$0xf] %v2615
          %2725 = vst [vmem:[#allocation2 + $0x218] sm:$0xf] %v2619
          %2726 = vst [vmem:[#allocation2 + $0x23c] sm:$0xf] %v2622
          %2727 = vst [vmem:[#allocation2 + $0x260] sm:$0xf] %v2626
          %2728 = vst [vmem:[#allocation2 + $0x284] sm:$0xf] %v2629
          %2729 = vst [vmem:[#allocation2 + $0x2a8] sm:$0xf] %v2633
          %2730 = vst [vmem:[#allocation2 + $0x2cc] sm:$0xf] %v2636
          %2731 = vst [vmem:[#allocation2 + $0x2f0] sm:$0xf] %v2640
          %2732 = vst [vmem:[#allocation2 + $0x314] sm:$0xf] %v2643
          %2733 = vst [vmem:[#allocation2 + $0x338] sm:$0xf] %v2647
          %2734 = vst [vmem:[#allocation2 + $0x35c] sm:$0xf] %v2650
          %2735 = vst [vmem:[#allocation2 + $0x380] sm:$0xf] %v2654
          %2736 = vst [vmem:[#allocation2 + $0x3a4] sm:$0xf] %v2657
          %2737 = vst [vmem:[#allocation2 + $0x3c8] sm:$0xf] %v2661
          %2738 = vst [vmem:[#allocation2 + $0x3ec] sm:$0xf] %v2664
          %2739 = vst [vmem:[#allocation2 + $0x410] sm:$0xf] %v2668
          %2740 = vst [vmem:[#allocation2 + $0x434] sm:$0xf] %v2671
          %2741 = vst [vmem:[#allocation2 + $0x458] sm:$0xf] %v2675
          %2742 = vst [vmem:[#allocation2 + $0x47c] sm:$0xf] %v2678
        $region36: #{tpu_custom_call.1} parent=31 // pred_fallthru
          _
        %v2743 = vld [vmem:[#allocation2] sm:$0xff]
        %v2744 = vld [vmem:[#allocation2 + $0x8] sm:$0xff]
        %v2745 = vld [vmem:[#allocation2 + $0x10] sm:$0xff]
        %v2746 = vld [vmem:[#allocation2 + $0x18] sm:$0xff]
        %v2747 = vld [vmem:[#allocation2 + $0x20] sm:$0xf]
        %v2748 = vld [vmem:[#allocation2 + $0x24] sm:$0xff]
        %v2749 = vld [vmem:[#allocation2 + $0x2c] sm:$0xff]
        %v2750 = vld [vmem:[#allocation2 + $0x34] sm:$0xff]
        %v2751 = vld [vmem:[#allocation2 + $0x3c] sm:$0xff]
        %v2752 = vld [vmem:[#allocation2 + $0x44] sm:$0xf]
        %v2753 = vld [vmem:[#allocation2 + $0x48] sm:$0xff]
        %v2754 = vld [vmem:[#allocation2 + $0x50] sm:$0xff]
        %v2755 = vld [vmem:[#allocation2 + $0x58] sm:$0xff]
        %v2756 = vld [vmem:[#allocation2 + $0x60] sm:$0xff]
        %v2757 = vld [vmem:[#allocation2 + $0x68] sm:$0xf]
        %v2758 = vld [vmem:[#allocation2 + $0x6c] sm:$0xff]
        %v2759 = vld [vmem:[#allocation2 + $0x74] sm:$0xff]
        %v2760 = vld [vmem:[#allocation2 + $0x7c] sm:$0xff]
        %v2761 = vld [vmem:[#allocation2 + $0x84] sm:$0xff]
        %v2762 = vld [vmem:[#allocation2 + $0x8c] sm:$0xf]
        %v2763 = vld [vmem:[#allocation2 + $0x90] sm:$0xff]
        %v2764 = vld [vmem:[#allocation2 + $0x98] sm:$0xff]
        %v2765 = vld [vmem:[#allocation2 + $0xa0] sm:$0xff]
        %v2766 = vld [vmem:[#allocation2 + $0xa8] sm:$0xff]
        %v2767 = vld [vmem:[#allocation2 + $0xb0] sm:$0xf]
        %v2768 = vld [vmem:[#allocation2 + $0xb4] sm:$0xff]
        %v2769 = vld [vmem:[#allocation2 + $0xbc] sm:$0xff]
        %v2770 = vld [vmem:[#allocation2 + $0xc4] sm:$0xff]
        %v2771 = vld [vmem:[#allocation2 + $0xcc] sm:$0xff]
        %v2772 = vld [vmem:[#allocation2 + $0xd4] sm:$0xf]
        %v2773 = vld [vmem:[#allocation2 + $0xd8] sm:$0xff]
        %v2774 = vld [vmem:[#allocation2 + $0xe0] sm:$0xff]
        %v2775 = vld [vmem:[#allocation2 + $0xe8] sm:$0xff]
        %v2776 = vld [vmem:[#allocation2 + $0xf0] sm:$0xff]
        %v2777 = vld [vmem:[#allocation2 + $0xf8] sm:$0xf]
        %v2778 = vld [vmem:[#allocation2 + $0xfc] sm:$0xff]
        %v2779 = vld [vmem:[#allocation2 + $0x104] sm:$0xff]
        %v2780 = vld [vmem:[#allocation2 + $0x10c] sm:$0xff]
        %v2781 = vld [vmem:[#allocation2 + $0x114] sm:$0xff]
        %v2782 = vld [vmem:[#allocation2 + $0x11c] sm:$0xf]
        %v2783 = vld [vmem:[#allocation2 + $0x120] sm:$0xff]
        %v2784 = vld [vmem:[#allocation2 + $0x128] sm:$0xff]
        %v2785 = vld [vmem:[#allocation2 + $0x130] sm:$0xff]
        %v2786 = vld [vmem:[#allocation2 + $0x138] sm:$0xff]
        %v2787 = vld [vmem:[#allocation2 + $0x140] sm:$0xf]
        %v2788 = vld [vmem:[#allocation2 + $0x144] sm:$0xff]
        %v2789 = vld [vmem:[#allocation2 + $0x14c] sm:$0xff]
        %v2790 = vld [vmem:[#allocation2 + $0x154] sm:$0xff]
        %v2791 = vld [vmem:[#allocation2 + $0x15c] sm:$0xff]
        %v2792 = vld [vmem:[#allocation2 + $0x164] sm:$0xf]
        %v2793 = vld [vmem:[#allocation2 + $0x168] sm:$0xff]
        %v2794 = vld [vmem:[#allocation2 + $0x170] sm:$0xff]
        %v2795 = vld [vmem:[#allocation2 + $0x178] sm:$0xff]
        %v2796 = vld [vmem:[#allocation2 + $0x180] sm:$0xff]
        %v2797 = vld [vmem:[#allocation2 + $0x188] sm:$0xf]
        %v2798 = vld [vmem:[#allocation2 + $0x18c] sm:$0xff]
        %v2799 = vld [vmem:[#allocation2 + $0x194] sm:$0xff]
        %v2800 = vld [vmem:[#allocation2 + $0x19c] sm:$0xff]
        %v2801 = vld [vmem:[#allocation2 + $0x1a4] sm:$0xff]
        %v2802 = vld [vmem:[#allocation2 + $0x1ac] sm:$0xf]
        %v2803 = vld [vmem:[#allocation2 + $0x1b0] sm:$0xff]
        %v2804 = vld [vmem:[#allocation2 + $0x1b8] sm:$0xff]
        %v2805 = vld [vmem:[#allocation2 + $0x1c0] sm:$0xff]
        %v2806 = vld [vmem:[#allocation2 + $0x1c8] sm:$0xff]
        %v2807 = vld [vmem:[#allocation2 + $0x1d0] sm:$0xf]
        %v2808 = vld [vmem:[#allocation2 + $0x1d4] sm:$0xff]
        %v2809 = vld [vmem:[#allocation2 + $0x1dc] sm:$0xff]
        %v2810 = vld [vmem:[#allocation2 + $0x1e4] sm:$0xff]
        %v2811 = vld [vmem:[#allocation2 + $0x1ec] sm:$0xff]
        %v2812 = vld [vmem:[#allocation2 + $0x1f4] sm:$0xf]
        %v2813 = vld [vmem:[#allocation2 + $0x1f8] sm:$0xff]
        %v2814 = vld [vmem:[#allocation2 + $0x200] sm:$0xff]
        %v2815 = vld [vmem:[#allocation2 + $0x208] sm:$0xff]
        %v2816 = vld [vmem:[#allocation2 + $0x210] sm:$0xff]
        %v2817 = vld [vmem:[#allocation2 + $0x218] sm:$0xf]
        %v2818 = vld [vmem:[#allocation2 + $0x21c] sm:$0xff]
        %v2819 = vld [vmem:[#allocation2 + $0x224] sm:$0xff]
        %v2820 = vld [vmem:[#allocation2 + $0x22c] sm:$0xff]
        %v2821 = vld [vmem:[#allocation2 + $0x234] sm:$0xff]
        %v2822 = vld [vmem:[#allocation2 + $0x23c] sm:$0xf]
        %v2823 = vld [vmem:[#allocation2 + $0x240] sm:$0xff]
        %v2824 = vld [vmem:[#allocation2 + $0x248] sm:$0xff]
        %v2825 = vld [vmem:[#allocation2 + $0x250] sm:$0xff]
        %v2826 = vld [vmem:[#allocation2 + $0x258] sm:$0xff]
        %v2827 = vld [vmem:[#allocation2 + $0x260] sm:$0xf]
        %v2828 = vld [vmem:[#allocation2 + $0x264] sm:$0xff]
        %v2829 = vld [vmem:[#allocation2 + $0x26c] sm:$0xff]
        %v2830 = vld [vmem:[#allocation2 + $0x274] sm:$0xff]
        %v2831 = vld [vmem:[#allocation2 + $0x27c] sm:$0xff]
        %v2832 = vld [vmem:[#allocation2 + $0x284] sm:$0xf]
        %v2833 = vld [vmem:[#allocation2 + $0x288] sm:$0xff]
        %v2834 = vld [vmem:[#allocation2 + $0x290] sm:$0xff]
        %v2835 = vld [vmem:[#allocation2 + $0x298] sm:$0xff]
        %v2836 = vld [vmem:[#allocation2 + $0x2a0] sm:$0xff]
        %v2837 = vld [vmem:[#allocation2 + $0x2a8] sm:$0xf]
        %v2838 = vld [vmem:[#allocation2 + $0x2ac] sm:$0xff]
        %v2839 = vld [vmem:[#allocation2 + $0x2b4] sm:$0xff]
        %v2840 = vld [vmem:[#allocation2 + $0x2bc] sm:$0xff]
        %v2841 = vld [vmem:[#allocation2 + $0x2c4] sm:$0xff]
        %v2842 = vld [vmem:[#allocation2 + $0x2cc] sm:$0xf]
        %v2843 = vld [vmem:[#allocation2 + $0x2d0] sm:$0xff]
        %v2844 = vld [vmem:[#allocation2 + $0x2d8] sm:$0xff]
        %v2845 = vld [vmem:[#allocation2 + $0x2e0] sm:$0xff]
        %v2846 = vld [vmem:[#allocation2 + $0x2e8] sm:$0xff]
        %v2847 = vld [vmem:[#allocation2 + $0x2f0] sm:$0xf]
        %v2848 = vld [vmem:[#allocation2 + $0x2f4] sm:$0xff]
        %v2849 = vld [vmem:[#allocation2 + $0x2fc] sm:$0xff]
        %v2850 = vld [vmem:[#allocation2 + $0x304] sm:$0xff]
        %v2851 = vld [vmem:[#allocation2 + $0x30c] sm:$0xff]
        %v2852 = vld [vmem:[#allocation2 + $0x314] sm:$0xf]
        %v2853 = vld [vmem:[#allocation2 + $0x318] sm:$0xff]
        %v2854 = vld [vmem:[#allocation2 + $0x320] sm:$0xff]
        %v2855 = vld [vmem:[#allocation2 + $0x328] sm:$0xff]
        %v2856 = vld [vmem:[#allocation2 + $0x330] sm:$0xff]
        %v2857 = vld [vmem:[#allocation2 + $0x338] sm:$0xf]
        %v2858 = vld [vmem:[#allocation2 + $0x33c] sm:$0xff]
        %v2859 = vld [vmem:[#allocation2 + $0x344] sm:$0xff]
        %v2860 = vld [vmem:[#allocation2 + $0x34c] sm:$0xff]
        %v2861 = vld [vmem:[#allocation2 + $0x354] sm:$0xff]
        %v2862 = vld [vmem:[#allocation2 + $0x35c] sm:$0xf]
        %v2863 = vld [vmem:[#allocation2 + $0x360] sm:$0xff]
        %v2864 = vld [vmem:[#allocation2 + $0x368] sm:$0xff]
        %v2865 = vld [vmem:[#allocation2 + $0x370] sm:$0xff]
        %v2866 = vld [vmem:[#allocation2 + $0x378] sm:$0xff]
        %v2867 = vld [vmem:[#allocation2 + $0x380] sm:$0xf]
        %v2868 = vld [vmem:[#allocation2 + $0x384] sm:$0xff]
        %v2869 = vld [vmem:[#allocation2 + $0x38c] sm:$0xff]
        %v2870 = vld [vmem:[#allocation2 + $0x394] sm:$0xff]
        %v2871 = vld [vmem:[#allocation2 + $0x39c] sm:$0xff]
        %v2872 = vld [vmem:[#allocation2 + $0x3a4] sm:$0xf]
        %v2873 = vld [vmem:[#allocation2 + $0x3a8] sm:$0xff]
        %v2874 = vld [vmem:[#allocation2 + $0x3b0] sm:$0xff]
        %v2875 = vld [vmem:[#allocation2 + $0x3b8] sm:$0xff]
        %v2876 = vld [vmem:[#allocation2 + $0x3c0] sm:$0xff]
        %v2877 = vld [vmem:[#allocation2 + $0x3c8] sm:$0xf]
        %v2878 = vld [vmem:[#allocation2 + $0x3cc] sm:$0xff]
        %v2879 = vld [vmem:[#allocation2 + $0x3d4] sm:$0xff]
        %v2880 = vld [vmem:[#allocation2 + $0x3dc] sm:$0xff]
        %v2881 = vld [vmem:[#allocation2 + $0x3e4] sm:$0xff]
        %v2882 = vld [vmem:[#allocation2 + $0x3ec] sm:$0xf]
        %v2883 = vld [vmem:[#allocation2 + $0x3f0] sm:$0xff]
        %v2884 = vld [vmem:[#allocation2 + $0x3f8] sm:$0xff]
        %v2885 = vld [vmem:[#allocation2 + $0x400] sm:$0xff]
        %v2886 = vld [vmem:[#allocation2 + $0x408] sm:$0xff]
        %v2887 = vld [vmem:[#allocation2 + $0x410] sm:$0xf]
        %v2888 = vld [vmem:[#allocation2 + $0x414] sm:$0xff]
        %v2889 = vld [vmem:[#allocation2 + $0x41c] sm:$0xff]
        %v2890 = vld [vmem:[#allocation2 + $0x424] sm:$0xff]
        %v2891 = vld [vmem:[#allocation2 + $0x42c] sm:$0xff]
        %v2892 = vld [vmem:[#allocation2 + $0x434] sm:$0xf]
        %v2893 = vld [vmem:[#allocation2 + $0x438] sm:$0xff]
        %v2894 = vld [vmem:[#allocation2 + $0x440] sm:$0xff]
        %v2895 = vld [vmem:[#allocation2 + $0x448] sm:$0xff]
        %v2896 = vld [vmem:[#allocation2 + $0x450] sm:$0xff]
        %v2897 = vld [vmem:[#allocation2 + $0x458] sm:$0xf]
        %v2898 = vld [vmem:[#allocation2 + $0x45c] sm:$0xff]
        %v2899 = vld [vmem:[#allocation2 + $0x464] sm:$0xff]
        %v2900 = vld [vmem:[#allocation2 + $0x46c] sm:$0xff]
        %v2901 = vld [vmem:[#allocation2 + $0x474] sm:$0xff]
        %v2902 = vld [vmem:[#allocation2 + $0x47c] sm:$0xf]
        %v2903 = vld [vmem:[%s219] sm:$0xf]
        %v2904 = vld [vmem:[%s219 + $0x4] sm:$0xf]
        %v2905 = vld [vmem:[%s219 + $0x8] sm:$0xf]
        %v2906 = vld [vmem:[%s219 + $0xc] sm:$0xf]
        %v2907 = vld [vmem:[%s219 + $0x10] sm:$0xf]
        %v2908 = vld [vmem:[%s219 + $0x14] sm:$0xf]
        %v2909 = vld [vmem:[%s219 + $0x18] sm:$0xf]
        %v2910 = vld [vmem:[%s219 + $0x1c] sm:$0xf]
        %v2911 = vld [vmem:[%s219 + $0x20] sm:$0xf]
        %v2912 = vld [vmem:[%s219 + $0x24] sm:$0xf]
        %v2913 = vld [vmem:[%s219 + $0x28] sm:$0xf]
        %v2914 = vld [vmem:[%s219 + $0x2c] sm:$0xf]
        %v2915 = vld [vmem:[%s219 + $0x30] sm:$0xf]
        %v2916 = vld [vmem:[%s219 + $0x34] sm:$0xf]
        %v2917 = vld [vmem:[%s219 + $0x38] sm:$0xf]
        %v2918 = vld [vmem:[%s219 + $0x3c] sm:$0xf]
        %v2919 = vld [vmem:[%s219 + $0x40] sm:$0xf]
        %v2920 = vld [vmem:[%s219 + $0x44] sm:$0xf]
        %v2921 = vld [vmem:[%s219 + $0x48] sm:$0xf]
        %v2922 = vld [vmem:[%s219 + $0x4c] sm:$0xf]
        %v2923 = vld [vmem:[%s219 + $0x50] sm:$0xf]
        %v2924 = vld [vmem:[%s219 + $0x54] sm:$0xf]
        %v2925 = vld [vmem:[%s219 + $0x58] sm:$0xf]
        %v2926 = vld [vmem:[%s219 + $0x5c] sm:$0xf]
        %v2927 = vld [vmem:[%s219 + $0x60] sm:$0xf]
        %v2928 = vld [vmem:[%s219 + $0x64] sm:$0xf]
        %v2929 = vld [vmem:[%s219 + $0x68] sm:$0xf]
        %v2930 = vld [vmem:[%s219 + $0x6c] sm:$0xf]
        %v2931 = vld [vmem:[%s219 + $0x70] sm:$0xf]
        %v2932 = vld [vmem:[%s219 + $0x74] sm:$0xf]
        %v2933 = vld [vmem:[%s219 + $0x78] sm:$0xf]
        %v2934 = vld [vmem:[%s219 + $0x7c] sm:$0xf]
        %v2935 = vld [vmem:[%s219 + $0x80] sm:$0xf]
        %v2936 = vld [vmem:[%s219 + $0x84] sm:$0xf]
        %v2937 = vld [vmem:[%s219 + $0x88] sm:$0xf]
        %v2938 = vld [vmem:[%s219 + $0x8c] sm:$0xf]
        %v2939 = vld [vmem:[%s219 + $0x90] sm:$0xf]
        %v2940 = vld [vmem:[%s219 + $0x94] sm:$0xf]
        %v2941 = vld [vmem:[%s219 + $0x98] sm:$0xf]
        %v2942 = vld [vmem:[%s219 + $0x9c] sm:$0xf]
        %v2943 = vld [vmem:[%s219 + $0xa0] sm:$0xf]
        %v2944 = vld [vmem:[%s219 + $0xa4] sm:$0xf]
        %v2945 = vld [vmem:[%s219 + $0xa8] sm:$0xf]
        %v2946 = vld [vmem:[%s219 + $0xac] sm:$0xf]
        %v2947 = vld [vmem:[%s219 + $0xb0] sm:$0xf]
        %v2948 = vld [vmem:[%s219 + $0xb4] sm:$0xf]
        %v2949 = vld [vmem:[%s219 + $0xb8] sm:$0xf]
        %v2950 = vld [vmem:[%s219 + $0xbc] sm:$0xf]
        %v2951 = vld [vmem:[%s219 + $0xc0] sm:$0xf]
        %v2952 = vld [vmem:[%s219 + $0xc4] sm:$0xf]
        %v2953 = vld [vmem:[%s219 + $0xc8] sm:$0xf]
        %v2954 = vld [vmem:[%s219 + $0xcc] sm:$0xf]
        %v2955 = vld [vmem:[%s219 + $0xd0] sm:$0xf]
        %v2956 = vld [vmem:[%s219 + $0xd4] sm:$0xf]
        %v2957 = vld [vmem:[%s219 + $0xd8] sm:$0xf]
        %v2958 = vld [vmem:[%s219 + $0xdc] sm:$0xf]
        %v2959 = vld [vmem:[%s219 + $0xe0] sm:$0xf]
        %v2960 = vld [vmem:[%s219 + $0xe4] sm:$0xf]
        %v2961 = vld [vmem:[%s219 + $0xe8] sm:$0xf]
        %v2962 = vld [vmem:[%s219 + $0xec] sm:$0xf]
        %v2963 = vld [vmem:[%s219 + $0xf0] sm:$0xf]
        %v2964 = vld [vmem:[%s219 + $0xf4] sm:$0xf]
        %v2965 = vld [vmem:[%s219 + $0xf8] sm:$0xf]
        %v2966 = vld [vmem:[%s219 + $0xfc] sm:$0xf]
        %v2967 = vld [vmem:[%s219 + $0x100] sm:$0xf]
        %v2968 = vld [vmem:[%s219 + $0x104] sm:$0xf]
        %v2969 = vld [vmem:[%s219 + $0x108] sm:$0xf]
        %v2970 = vld [vmem:[%s219 + $0x10c] sm:$0xf]
        %v2971 = vld [vmem:[%s219 + $0x110] sm:$0xf]
        %v2972 = vld [vmem:[%s219 + $0x114] sm:$0xf]
        %v2973 = vld [vmem:[%s219 + $0x118] sm:$0xf]
        %v2974 = vld [vmem:[%s219 + $0x11c] sm:$0xf]
        %v2975 = vld [vmem:[%s219 + $0x120] sm:$0xf]
        %v2976 = vld [vmem:[%s219 + $0x124] sm:$0xf]
        %v2977 = vld [vmem:[%s219 + $0x128] sm:$0xf]
        %v2978 = vld [vmem:[%s219 + $0x12c] sm:$0xf]
        %v2979 = vld [vmem:[%s219 + $0x130] sm:$0xf]
        %v2980 = vld [vmem:[%s219 + $0x134] sm:$0xf]
        %v2981 = vld [vmem:[%s219 + $0x138] sm:$0xf]
        %v2982 = vld [vmem:[%s219 + $0x13c] sm:$0xf]
        %v2983 = vld [vmem:[%s219 + $0x140] sm:$0xf]
        %v2984 = vld [vmem:[%s219 + $0x144] sm:$0xf]
        %v2985 = vld [vmem:[%s219 + $0x148] sm:$0xf]
        %v2986 = vld [vmem:[%s219 + $0x14c] sm:$0xf]
        %v2987 = vld [vmem:[%s219 + $0x150] sm:$0xf]
        %v2988 = vld [vmem:[%s219 + $0x154] sm:$0xf]
        %v2989 = vld [vmem:[%s219 + $0x158] sm:$0xf]
        %v2990 = vld [vmem:[%s219 + $0x15c] sm:$0xf]
        %v2991 = vld [vmem:[%s219 + $0x160] sm:$0xf]
        %v2992 = vld [vmem:[%s219 + $0x164] sm:$0xf]
        %v2993 = vld [vmem:[%s219 + $0x168] sm:$0xf]
        %v2994 = vld [vmem:[%s219 + $0x16c] sm:$0xf]
        %v2995 = vld [vmem:[%s219 + $0x170] sm:$0xf]
        %v2996 = vld [vmem:[%s219 + $0x174] sm:$0xf]
        %v2997 = vld [vmem:[%s219 + $0x178] sm:$0xf]
        %v2998 = vld [vmem:[%s219 + $0x17c] sm:$0xf]
        %v2999 = vld [vmem:[%s219 + $0x180] sm:$0xf]
        %v3000 = vld [vmem:[%s219 + $0x184] sm:$0xf]
        %v3001 = vld [vmem:[%s219 + $0x188] sm:$0xf]
        %v3002 = vld [vmem:[%s219 + $0x18c] sm:$0xf]
        %v3003 = vld [vmem:[%s219 + $0x190] sm:$0xf]
        %v3004 = vld [vmem:[%s219 + $0x194] sm:$0xf]
        %v3005 = vld [vmem:[%s219 + $0x198] sm:$0xf]
        %v3006 = vld [vmem:[%s219 + $0x19c] sm:$0xf]
        %v3007 = vld [vmem:[%s219 + $0x1a0] sm:$0xf]
        %v3008 = vld [vmem:[%s219 + $0x1a4] sm:$0xf]
        %v3009 = vld [vmem:[%s219 + $0x1a8] sm:$0xf]
        %v3010 = vld [vmem:[%s219 + $0x1ac] sm:$0xf]
        %v3011 = vld [vmem:[%s219 + $0x1b0] sm:$0xf]
        %v3012 = vld [vmem:[%s219 + $0x1b4] sm:$0xf]
        %v3013 = vld [vmem:[%s219 + $0x1b8] sm:$0xf]
        %v3014 = vld [vmem:[%s219 + $0x1bc] sm:$0xf]
        %v3015 = vld [vmem:[%s219 + $0x1c0] sm:$0xf]
        %v3016 = vld [vmem:[%s219 + $0x1c4] sm:$0xf]
        %v3017 = vld [vmem:[%s219 + $0x1c8] sm:$0xf]
        %v3018 = vld [vmem:[%s219 + $0x1cc] sm:$0xf]
        %v3019 = vld [vmem:[%s219 + $0x1d0] sm:$0xf]
        %v3020 = vld [vmem:[%s219 + $0x1d4] sm:$0xf]
        %v3021 = vld [vmem:[%s219 + $0x1d8] sm:$0xf]
        %v3022 = vld [vmem:[%s219 + $0x1dc] sm:$0xf]
        %v3023 = vld [vmem:[%s219 + $0x1e0] sm:$0xf]
        %v3024 = vld [vmem:[%s219 + $0x1e4] sm:$0xf]
        %v3025 = vld [vmem:[%s219 + $0x1e8] sm:$0xf]
        %v3026 = vld [vmem:[%s219 + $0x1ec] sm:$0xf]
        %v3027 = vld [vmem:[%s219 + $0x1f0] sm:$0xf]
        %v3028 = vld [vmem:[%s219 + $0x1f4] sm:$0xf]
        %v3029 = vld [vmem:[%s219 + $0x1f8] sm:$0xf]
        %v3030 = vld [vmem:[%s219 + $0x1fc] sm:$0xf]
        %v3031 = vld [vmem:[%s219 + $0x200] sm:$0xf]
        %v3032 = vld [vmem:[%s219 + $0x204] sm:$0xf]
        %v3033 = vld [vmem:[%s219 + $0x208] sm:$0xf]
        %v3034 = vld [vmem:[%s219 + $0x20c] sm:$0xf]
        %v3035 = vld [vmem:[%s219 + $0x210] sm:$0xf]
        %v3036 = vld [vmem:[%s219 + $0x214] sm:$0xf]
        %v3037 = vld [vmem:[%s219 + $0x218] sm:$0xf]
        %v3038 = vld [vmem:[%s219 + $0x21c] sm:$0xf]
        %v3039 = vld [vmem:[%s219 + $0x220] sm:$0xf]
        %v3040 = vld [vmem:[%s219 + $0x224] sm:$0xf]
        %v3041 = vld [vmem:[%s219 + $0x228] sm:$0xf]
        %v3042 = vld [vmem:[%s219 + $0x22c] sm:$0xf]
        %v3043 = vld [vmem:[%s219 + $0x230] sm:$0xf]
        %v3044 = vld [vmem:[%s219 + $0x234] sm:$0xf]
        %v3045 = vld [vmem:[%s219 + $0x238] sm:$0xf]
        %v3046 = vld [vmem:[%s219 + $0x23c] sm:$0xf]
        %v3047 = vld [vmem:[%s222] sm:$0x1]
        %v3049 = vlaneseq
        %v3050 = vshrl.u32 %v3049, 7
        %v3051 = vsub.s32 0, %v3050
        %v3052 = vrot.slane %v3047, %v3051
        %v3214 = vunpack.c.l.b16 %v2743
        %v3215 = vunpack.c.h.b16 %v2743
        %v3216 = vunpack.c.l.b16 %v2744
        %v3217 = vunpack.c.h.b16 %v2744
        %v3218 = vunpack.c.l.b16 %v2745
        %v3219 = vunpack.c.h.b16 %v2745
        %v3220 = vunpack.c.l.b16 %v2746
        %v3221 = vunpack.c.h.b16 %v2746
        %v3222 = vunpack.c.l.b16 %v2747
        %v3223 = vunpack.c.l.b16 %v2748
        %v3224 = vunpack.c.h.b16 %v2748
        %v3225 = vunpack.c.l.b16 %v2749
        %v3226 = vunpack.c.h.b16 %v2749
        %v3227 = vunpack.c.l.b16 %v2750
        %v3228 = vunpack.c.h.b16 %v2750
        %v3229 = vunpack.c.l.b16 %v2751
        %v3230 = vunpack.c.h.b16 %v2751
        %v3231 = vunpack.c.l.b16 %v2752
        %v3232 = vunpack.c.l.b16 %v2753
        %v3233 = vunpack.c.h.b16 %v2753
        %v3234 = vunpack.c.l.b16 %v2754
        %v3235 = vunpack.c.h.b16 %v2754
        %v3236 = vunpack.c.l.b16 %v2755
        %v3237 = vunpack.c.h.b16 %v2755
        %v3238 = vunpack.c.l.b16 %v2756
        %v3239 = vunpack.c.h.b16 %v2756
        %v3240 = vunpack.c.l.b16 %v2757
        %v3241 = vunpack.c.l.b16 %v2758
        %v3242 = vunpack.c.h.b16 %v2758
        %v3243 = vunpack.c.l.b16 %v2759
        %v3244 = vunpack.c.h.b16 %v2759
        %v3245 = vunpack.c.l.b16 %v2760
        %v3246 = vunpack.c.h.b16 %v2760
        %v3247 = vunpack.c.l.b16 %v2761
        %v3248 = vunpack.c.h.b16 %v2761
        %v3249 = vunpack.c.l.b16 %v2762
        %v3250 = vunpack.c.l.b16 %v2763
        %v3251 = vunpack.c.h.b16 %v2763
        %v3252 = vunpack.c.l.b16 %v2764
        %v3253 = vunpack.c.h.b16 %v2764
        %v3254 = vunpack.c.l.b16 %v2765
        %v3255 = vunpack.c.h.b16 %v2765
        %v3256 = vunpack.c.l.b16 %v2766
        %v3257 = vunpack.c.h.b16 %v2766
        %v3258 = vunpack.c.l.b16 %v2767
        %v3259 = vunpack.c.l.b16 %v2768
        %v3260 = vunpack.c.h.b16 %v2768
        %v3261 = vunpack.c.l.b16 %v2769
        %v3262 = vunpack.c.h.b16 %v2769
        %v3263 = vunpack.c.l.b16 %v2770
        %v3264 = vunpack.c.h.b16 %v2770
        %v3265 = vunpack.c.l.b16 %v2771
        %v3266 = vunpack.c.h.b16 %v2771
        %v3267 = vunpack.c.l.b16 %v2772
        %v3268 = vunpack.c.l.b16 %v2773
        %v3269 = vunpack.c.h.b16 %v2773
        %v3270 = vunpack.c.l.b16 %v2774
        %v3271 = vunpack.c.h.b16 %v2774
        %v3272 = vunpack.c.l.b16 %v2775
        %v3273 = vunpack.c.h.b16 %v2775
        %v3274 = vunpack.c.l.b16 %v2776
        %v3275 = vunpack.c.h.b16 %v2776
        %v3276 = vunpack.c.l.b16 %v2777
        %v3277 = vunpack.c.l.b16 %v2778
        %v3278 = vunpack.c.h.b16 %v2778
        %v3279 = vunpack.c.l.b16 %v2779
        %v3280 = vunpack.c.h.b16 %v2779
        %v3281 = vunpack.c.l.b16 %v2780
        %v3282 = vunpack.c.h.b16 %v2780
        %v3283 = vunpack.c.l.b16 %v2781
        %v3284 = vunpack.c.h.b16 %v2781
        %v3285 = vunpack.c.l.b16 %v2782
        %v3286 = vunpack.c.l.b16 %v2783
        %v3287 = vunpack.c.h.b16 %v2783
        %v3288 = vunpack.c.l.b16 %v2784
        %v3289 = vunpack.c.h.b16 %v2784
        %v3290 = vunpack.c.l.b16 %v2785
        %v3291 = vunpack.c.h.b16 %v2785
        %v3292 = vunpack.c.l.b16 %v2786
        %v3293 = vunpack.c.h.b16 %v2786
        %v3294 = vunpack.c.l.b16 %v2787
        %v3295 = vunpack.c.l.b16 %v2788
        %v3296 = vunpack.c.h.b16 %v2788
        %v3297 = vunpack.c.l.b16 %v2789
        %v3298 = vunpack.c.h.b16 %v2789
        %v3299 = vunpack.c.l.b16 %v2790
        %v3300 = vunpack.c.h.b16 %v2790
        %v3301 = vunpack.c.l.b16 %v2791
        %v3302 = vunpack.c.h.b16 %v2791
        %v3303 = vunpack.c.l.b16 %v2792
        %v3304 = vunpack.c.l.b16 %v2793
        %v3305 = vunpack.c.h.b16 %v2793
        %v3306 = vunpack.c.l.b16 %v2794
        %v3307 = vunpack.c.h.b16 %v2794
        %v3308 = vunpack.c.l.b16 %v2795
        %v3309 = vunpack.c.h.b16 %v2795
        %v3310 = vunpack.c.l.b16 %v2796
        %v3311 = vunpack.c.h.b16 %v2796
        %v3312 = vunpack.c.l.b16 %v2797
        %v3313 = vunpack.c.l.b16 %v2798
        %v3314 = vunpack.c.h.b16 %v2798
        %v3315 = vunpack.c.l.b16 %v2799
        %v3316 = vunpack.c.h.b16 %v2799
        %v3317 = vunpack.c.l.b16 %v2800
        %v3318 = vunpack.c.h.b16 %v2800
        %v3319 = vunpack.c.l.b16 %v2801
        %v3320 = vunpack.c.h.b16 %v2801
        %v3321 = vunpack.c.l.b16 %v2802
        %v3322 = vunpack.c.l.b16 %v2803
        %v3323 = vunpack.c.h.b16 %v2803
        %v3324 = vunpack.c.l.b16 %v2804
        %v3325 = vunpack.c.h.b16 %v2804
        %v3326 = vunpack.c.l.b16 %v2805
        %v3327 = vunpack.c.h.b16 %v2805
        %v3328 = vunpack.c.l.b16 %v2806
        %v3329 = vunpack.c.h.b16 %v2806
        %v3330 = vunpack.c.l.b16 %v2807
        %v3331 = vunpack.c.l.b16 %v2808
        %v3332 = vunpack.c.h.b16 %v2808
        %v3333 = vunpack.c.l.b16 %v2809
        %v3334 = vunpack.c.h.b16 %v2809
        %v3335 = vunpack.c.l.b16 %v2810
        %v3336 = vunpack.c.h.b16 %v2810
        %v3337 = vunpack.c.l.b16 %v2811
        %v3338 = vunpack.c.h.b16 %v2811
        %v3339 = vunpack.c.l.b16 %v2812
        %v3340 = vunpack.c.l.b16 %v2813
        %v3341 = vunpack.c.h.b16 %v2813
        %v3342 = vunpack.c.l.b16 %v2814
        %v3343 = vunpack.c.h.b16 %v2814
        %v3344 = vunpack.c.l.b16 %v2815
        %v3345 = vunpack.c.h.b16 %v2815
        %v3346 = vunpack.c.l.b16 %v2816
        %v3347 = vunpack.c.h.b16 %v2816
        %v3348 = vunpack.c.l.b16 %v2817
        %v3349 = vunpack.c.l.b16 %v2818
        %v3350 = vunpack.c.h.b16 %v2818
        %v3351 = vunpack.c.l.b16 %v2819
        %v3352 = vunpack.c.h.b16 %v2819
        %v3353 = vunpack.c.l.b16 %v2820
        %v3354 = vunpack.c.h.b16 %v2820
        %v3355 = vunpack.c.l.b16 %v2821
        %v3356 = vunpack.c.h.b16 %v2821
        %v3357 = vunpack.c.l.b16 %v2822
        %v3358 = vunpack.c.l.b16 %v2823
        %v3359 = vunpack.c.h.b16 %v2823
        %v3360 = vunpack.c.l.b16 %v2824
        %v3361 = vunpack.c.h.b16 %v2824
        %v3362 = vunpack.c.l.b16 %v2825
        %v3363 = vunpack.c.h.b16 %v2825
        %v3364 = vunpack.c.l.b16 %v2826
        %v3365 = vunpack.c.h.b16 %v2826
        %v3366 = vunpack.c.l.b16 %v2827
        %v3367 = vunpack.c.l.b16 %v2828
        %v3368 = vunpack.c.h.b16 %v2828
        %v3369 = vunpack.c.l.b16 %v2829
        %v3370 = vunpack.c.h.b16 %v2829
        %v3371 = vunpack.c.l.b16 %v2830
        %v3372 = vunpack.c.h.b16 %v2830
        %v3373 = vunpack.c.l.b16 %v2831
        %v3374 = vunpack.c.h.b16 %v2831
        %v3375 = vunpack.c.l.b16 %v2832
        %v3376 = vunpack.c.l.b16 %v2833
        %v3377 = vunpack.c.h.b16 %v2833
        %v3378 = vunpack.c.l.b16 %v2834
        %v3379 = vunpack.c.h.b16 %v2834
        %v3380 = vunpack.c.l.b16 %v2835
        %v3381 = vunpack.c.h.b16 %v2835
        %v3382 = vunpack.c.l.b16 %v2836
        %v3383 = vunpack.c.h.b16 %v2836
        %v3384 = vunpack.c.l.b16 %v2837
        %v3385 = vunpack.c.l.b16 %v2838
        %v3386 = vunpack.c.h.b16 %v2838
        %v3387 = vunpack.c.l.b16 %v2839
        %v3388 = vunpack.c.h.b16 %v2839
        %v3389 = vunpack.c.l.b16 %v2840
        %v3390 = vunpack.c.h.b16 %v2840
        %v3391 = vunpack.c.l.b16 %v2841
        %v3392 = vunpack.c.h.b16 %v2841
        %v3393 = vunpack.c.l.b16 %v2842
        %v3394 = vunpack.c.l.b16 %v2843
        %v3395 = vunpack.c.h.b16 %v2843
        %v3396 = vunpack.c.l.b16 %v2844
        %v3397 = vunpack.c.h.b16 %v2844
        %v3398 = vunpack.c.l.b16 %v2845
        %v3399 = vunpack.c.h.b16 %v2845
        %v3400 = vunpack.c.l.b16 %v2846
        %v3401 = vunpack.c.h.b16 %v2846
        %v3402 = vunpack.c.l.b16 %v2847
        %v3403 = vunpack.c.l.b16 %v2848
        %v3404 = vunpack.c.h.b16 %v2848
        %v3405 = vunpack.c.l.b16 %v2849
        %v3406 = vunpack.c.h.b16 %v2849
        %v3407 = vunpack.c.l.b16 %v2850
        %v3408 = vunpack.c.h.b16 %v2850
        %v3409 = vunpack.c.l.b16 %v2851
        %v3410 = vunpack.c.h.b16 %v2851
        %v3411 = vunpack.c.l.b16 %v2852
        %v3412 = vunpack.c.l.b16 %v2853
        %v3413 = vunpack.c.h.b16 %v2853
        %v3414 = vunpack.c.l.b16 %v2854
        %v3415 = vunpack.c.h.b16 %v2854
        %v3416 = vunpack.c.l.b16 %v2855
        %v3417 = vunpack.c.h.b16 %v2855
        %v3418 = vunpack.c.l.b16 %v2856
        %v3419 = vunpack.c.h.b16 %v2856
        %v3420 = vunpack.c.l.b16 %v2857
        %v3421 = vunpack.c.l.b16 %v2858
        %v3422 = vunpack.c.h.b16 %v2858
        %v3423 = vunpack.c.l.b16 %v2859
        %v3424 = vunpack.c.h.b16 %v2859
        %v3425 = vunpack.c.l.b16 %v2860
        %v3426 = vunpack.c.h.b16 %v2860
        %v3427 = vunpack.c.l.b16 %v2861
        %v3428 = vunpack.c.h.b16 %v2861
        %v3429 = vunpack.c.l.b16 %v2862
        %v3430 = vunpack.c.l.b16 %v2863
        %v3431 = vunpack.c.h.b16 %v2863
        %v3432 = vunpack.c.l.b16 %v2864
        %v3433 = vunpack.c.h.b16 %v2864
        %v3434 = vunpack.c.l.b16 %v2865
        %v3435 = vunpack.c.h.b16 %v2865
        %v3436 = vunpack.c.l.b16 %v2866
        %v3437 = vunpack.c.h.b16 %v2866
        %v3438 = vunpack.c.l.b16 %v2867
        %v3439 = vunpack.c.l.b16 %v2868
        %v3440 = vunpack.c.h.b16 %v2868
        %v3441 = vunpack.c.l.b16 %v2869
        %v3442 = vunpack.c.h.b16 %v2869
        %v3443 = vunpack.c.l.b16 %v2870
        %v3444 = vunpack.c.h.b16 %v2870
        %v3445 = vunpack.c.l.b16 %v2871
        %v3446 = vunpack.c.h.b16 %v2871
        %v3447 = vunpack.c.l.b16 %v2872
        %v3448 = vunpack.c.l.b16 %v2873
        %v3449 = vunpack.c.h.b16 %v2873
        %v3450 = vunpack.c.l.b16 %v2874
        %v3451 = vunpack.c.h.b16 %v2874
        %v3452 = vunpack.c.l.b16 %v2875
        %v3453 = vunpack.c.h.b16 %v2875
        %v3454 = vunpack.c.l.b16 %v2876
        %v3455 = vunpack.c.h.b16 %v2876
        %v3456 = vunpack.c.l.b16 %v2877
        %v3457 = vunpack.c.l.b16 %v2878
        %v3458 = vunpack.c.h.b16 %v2878
        %v3459 = vunpack.c.l.b16 %v2879
        %v3460 = vunpack.c.h.b16 %v2879
        %v3461 = vunpack.c.l.b16 %v2880
        %v3462 = vunpack.c.h.b16 %v2880
        %v3463 = vunpack.c.l.b16 %v2881
        %v3464 = vunpack.c.h.b16 %v2881
        %v3465 = vunpack.c.l.b16 %v2882
        %v3466 = vunpack.c.l.b16 %v2883
        %v3467 = vunpack.c.h.b16 %v2883
        %v3468 = vunpack.c.l.b16 %v2884
        %v3469 = vunpack.c.h.b16 %v2884
        %v3470 = vunpack.c.l.b16 %v2885
        %v3471 = vunpack.c.h.b16 %v2885
        %v3472 = vunpack.c.l.b16 %v2886
        %v3473 = vunpack.c.h.b16 %v2886
        %v3474 = vunpack.c.l.b16 %v2887
        %v3475 = vunpack.c.l.b16 %v2888
        %v3476 = vunpack.c.h.b16 %v2888
        %v3477 = vunpack.c.l.b16 %v2889
        %v3478 = vunpack.c.h.b16 %v2889
        %v3479 = vunpack.c.l.b16 %v2890
        %v3480 = vunpack.c.h.b16 %v2890
        %v3481 = vunpack.c.l.b16 %v2891
        %v3482 = vunpack.c.h.b16 %v2891
        %v3483 = vunpack.c.l.b16 %v2892
        %v3484 = vunpack.c.l.b16 %v2893
        %v3485 = vunpack.c.h.b16 %v2893
        %v3486 = vunpack.c.l.b16 %v2894
        %v3487 = vunpack.c.h.b16 %v2894
        %v3488 = vunpack.c.l.b16 %v2895
        %v3489 = vunpack.c.h.b16 %v2895
        %v3490 = vunpack.c.l.b16 %v2896
        %v3491 = vunpack.c.h.b16 %v2896
        %v3492 = vunpack.c.l.b16 %v2897
        %v3493 = vunpack.c.l.b16 %v2898
        %v3494 = vunpack.c.h.b16 %v2898
        %v3495 = vunpack.c.l.b16 %v2899
        %v3496 = vunpack.c.h.b16 %v2899
        %v3497 = vunpack.c.l.b16 %v2900
        %v3498 = vunpack.c.h.b16 %v2900
        %v3499 = vunpack.c.l.b16 %v2901
        %v3500 = vunpack.c.h.b16 %v2901
        %v3501 = vunpack.c.l.b16 %v2902
        %v3502 = vpack.c.b16 %v3223, %v3214
        %v3503 = vpack.c.b16 %v3224, %v3215
        %v3504 = vpack.c.b16 %v3225, %v3216
        %v3505 = vpack.c.b16 %v3226, %v3217
        %v3506 = vpack.c.b16 %v3227, %v3218
        %v3507 = vpack.c.b16 %v3228, %v3219
        %v3508 = vpack.c.b16 %v3229, %v3220
        %v3509 = vpack.c.b16 %v3230, %v3221
        %v3510 = vpack.c.b16 %v3231, %v3222
        %v3511 = vpack.c.b16 %v3241, %v3232
        %v3512 = vpack.c.b16 %v3242, %v3233
        %v3513 = vpack.c.b16 %v3243, %v3234
        %v3514 = vpack.c.b16 %v3244, %v3235
        %v3515 = vpack.c.b16 %v3245, %v3236
        %v3516 = vpack.c.b16 %v3246, %v3237
        %v3517 = vpack.c.b16 %v3247, %v3238
        %v3518 = vpack.c.b16 %v3248, %v3239
        %v3519 = vpack.c.b16 %v3249, %v3240
        %v3520 = vpack.c.b16 %v3259, %v3250
        %v3521 = vpack.c.b16 %v3260, %v3251
        %v3522 = vpack.c.b16 %v3261, %v3252
        %v3523 = vpack.c.b16 %v3262, %v3253
        %v3524 = vpack.c.b16 %v3263, %v3254
        %v3525 = vpack.c.b16 %v3264, %v3255
        %v3526 = vpack.c.b16 %v3265, %v3256
        %v3527 = vpack.c.b16 %v3266, %v3257
        %v3528 = vpack.c.b16 %v3267, %v3258
        %v3529 = vpack.c.b16 %v3277, %v3268
        %v3530 = vpack.c.b16 %v3278, %v3269
        %v3531 = vpack.c.b16 %v3279, %v3270
        %v3532 = vpack.c.b16 %v3280, %v3271
        %v3533 = vpack.c.b16 %v3281, %v3272
        %v3534 = vpack.c.b16 %v3282, %v3273
        %v3535 = vpack.c.b16 %v3283, %v3274
        %v3536 = vpack.c.b16 %v3284, %v3275
        %v3537 = vpack.c.b16 %v3285, %v3276
        %v3538 = vpack.c.b16 %v3295, %v3286
        %v3539 = vpack.c.b16 %v3296, %v3287
        %v3540 = vpack.c.b16 %v3297, %v3288
        %v3541 = vpack.c.b16 %v3298, %v3289
        %v3542 = vpack.c.b16 %v3299, %v3290
        %v3543 = vpack.c.b16 %v3300, %v3291
        %v3544 = vpack.c.b16 %v3301, %v3292
        %v3545 = vpack.c.b16 %v3302, %v3293
        %v3546 = vpack.c.b16 %v3303, %v3294
        %v3547 = vpack.c.b16 %v3313, %v3304
        %v3548 = vpack.c.b16 %v3314, %v3305
        %v3549 = vpack.c.b16 %v3315, %v3306
        %v3550 = vpack.c.b16 %v3316, %v3307
        %v3551 = vpack.c.b16 %v3317, %v3308
        %v3552 = vpack.c.b16 %v3318, %v3309
        %v3553 = vpack.c.b16 %v3319, %v3310
        %v3554 = vpack.c.b16 %v3320, %v3311
        %v3555 = vpack.c.b16 %v3321, %v3312
        %v3556 = vpack.c.b16 %v3331, %v3322
        %v3557 = vpack.c.b16 %v3332, %v3323
        %v3558 = vpack.c.b16 %v3333, %v3324
        %v3559 = vpack.c.b16 %v3334, %v3325
        %v3560 = vpack.c.b16 %v3335, %v3326
        %v3561 = vpack.c.b16 %v3336, %v3327
        %v3562 = vpack.c.b16 %v3337, %v3328
        %v3563 = vpack.c.b16 %v3338, %v3329
        %v3564 = vpack.c.b16 %v3339, %v3330
        %v3565 = vpack.c.b16 %v3349, %v3340
        %v3566 = vpack.c.b16 %v3350, %v3341
        %v3567 = vpack.c.b16 %v3351, %v3342
        %v3568 = vpack.c.b16 %v3352, %v3343
        %v3569 = vpack.c.b16 %v3353, %v3344
        %v3570 = vpack.c.b16 %v3354, %v3345
        %v3571 = vpack.c.b16 %v3355, %v3346
        %v3572 = vpack.c.b16 %v3356, %v3347
        %v3573 = vpack.c.b16 %v3357, %v3348
        %v3574 = vpack.c.b16 %v3367, %v3358
        %v3575 = vpack.c.b16 %v3368, %v3359
        %v3576 = vpack.c.b16 %v3369, %v3360
        %v3577 = vpack.c.b16 %v3370, %v3361
        %v3578 = vpack.c.b16 %v3371, %v3362
        %v3579 = vpack.c.b16 %v3372, %v3363
        %v3580 = vpack.c.b16 %v3373, %v3364
        %v3581 = vpack.c.b16 %v3374, %v3365
        %v3582 = vpack.c.b16 %v3375, %v3366
        %v3583 = vpack.c.b16 %v3385, %v3376
        %v3584 = vpack.c.b16 %v3386, %v3377
        %v3585 = vpack.c.b16 %v3387, %v3378
        %v3586 = vpack.c.b16 %v3388, %v3379
        %v3587 = vpack.c.b16 %v3389, %v3380
        %v3588 = vpack.c.b16 %v3390, %v3381
        %v3589 = vpack.c.b16 %v3391, %v3382
        %v3590 = vpack.c.b16 %v3392, %v3383
        %v3591 = vpack.c.b16 %v3393, %v3384
        %v3592 = vpack.c.b16 %v3403, %v3394
        %v3593 = vpack.c.b16 %v3404, %v3395
        %v3594 = vpack.c.b16 %v3405, %v3396
        %v3595 = vpack.c.b16 %v3406, %v3397
        %v3596 = vpack.c.b16 %v3407, %v3398
        %v3597 = vpack.c.b16 %v3408, %v3399
        %v3598 = vpack.c.b16 %v3409, %v3400
        %v3599 = vpack.c.b16 %v3410, %v3401
        %v3600 = vpack.c.b16 %v3411, %v3402
        %v3601 = vpack.c.b16 %v3421, %v3412
        %v3602 = vpack.c.b16 %v3422, %v3413
        %v3603 = vpack.c.b16 %v3423, %v3414
        %v3604 = vpack.c.b16 %v3424, %v3415
        %v3605 = vpack.c.b16 %v3425, %v3416
        %v3606 = vpack.c.b16 %v3426, %v3417
        %v3607 = vpack.c.b16 %v3427, %v3418
        %v3608 = vpack.c.b16 %v3428, %v3419
        %v3609 = vpack.c.b16 %v3429, %v3420
        %v3610 = vpack.c.b16 %v3439, %v3430
        %v3611 = vpack.c.b16 %v3440, %v3431
        %v3612 = vpack.c.b16 %v3441, %v3432
        %v3613 = vpack.c.b16 %v3442, %v3433
        %v3614 = vpack.c.b16 %v3443, %v3434
        %v3615 = vpack.c.b16 %v3444, %v3435
        %v3616 = vpack.c.b16 %v3445, %v3436
        %v3617 = vpack.c.b16 %v3446, %v3437
        %v3618 = vpack.c.b16 %v3447, %v3438
        %v3619 = vpack.c.b16 %v3457, %v3448
        %v3620 = vpack.c.b16 %v3458, %v3449
        %v3621 = vpack.c.b16 %v3459, %v3450
        %v3622 = vpack.c.b16 %v3460, %v3451
        %v3623 = vpack.c.b16 %v3461, %v3452
        %v3624 = vpack.c.b16 %v3462, %v3453
        %v3625 = vpack.c.b16 %v3463, %v3454
        %v3626 = vpack.c.b16 %v3464, %v3455
        %v3627 = vpack.c.b16 %v3465, %v3456
        %v3628 = vpack.c.b16 %v3475, %v3466
        %v3629 = vpack.c.b16 %v3476, %v3467
        %v3630 = vpack.c.b16 %v3477, %v3468
        %v3631 = vpack.c.b16 %v3478, %v3469
        %v3632 = vpack.c.b16 %v3479, %v3470
        %v3633 = vpack.c.b16 %v3480, %v3471
        %v3634 = vpack.c.b16 %v3481, %v3472
        %v3635 = vpack.c.b16 %v3482, %v3473
        %v3636 = vpack.c.b16 %v3483, %v3474
        %v3637 = vpack.c.b16 %v3493, %v3484
        %v3638 = vpack.c.b16 %v3494, %v3485
        %v3639 = vpack.c.b16 %v3495, %v3486
        %v3640 = vpack.c.b16 %v3496, %v3487
        %v3641 = vpack.c.b16 %v3497, %v3488
        %v3642 = vpack.c.b16 %v3498, %v3489
        %v3643 = vpack.c.b16 %v3499, %v3490
        %v3644 = vpack.c.b16 %v3500, %v3491
        %v3645 = vpack.c.b16 %v3501, %v3492
        %v3934 = vunpack.c.l.b16 %v2903
        %v3935 = vunpack.c.l.b16 %v2904
        %v3936 = vunpack.c.l.b16 %v2905
        %v3937 = vunpack.c.l.b16 %v2906
        %v3938 = vunpack.c.l.b16 %v2907
        %v3939 = vunpack.c.l.b16 %v2908
        %v3940 = vunpack.c.l.b16 %v2909
        %v3941 = vunpack.c.l.b16 %v2910
        %v3942 = vunpack.c.l.b16 %v2911
        %v3943 = vunpack.c.l.b16 %v2912
        %v3944 = vunpack.c.l.b16 %v2913
        %v3945 = vunpack.c.l.b16 %v2914
        %v3946 = vunpack.c.l.b16 %v2915
        %v3947 = vunpack.c.l.b16 %v2916
        %v3948 = vunpack.c.l.b16 %v2917
        %v3949 = vunpack.c.l.b16 %v2918
        %v3950 = vunpack.c.l.b16 %v2919
        %v3951 = vunpack.c.l.b16 %v2920
        %v3952 = vunpack.c.l.b16 %v2921
        %v3953 = vunpack.c.l.b16 %v2922
        %v3954 = vunpack.c.l.b16 %v2923
        %v3955 = vunpack.c.l.b16 %v2924
        %v3956 = vunpack.c.l.b16 %v2925
        %v3957 = vunpack.c.l.b16 %v2926
        %v3958 = vunpack.c.l.b16 %v2927
        %v3959 = vunpack.c.l.b16 %v2928
        %v3960 = vunpack.c.l.b16 %v2929
        %v3961 = vunpack.c.l.b16 %v2930
        %v3962 = vunpack.c.l.b16 %v2931
        %v3963 = vunpack.c.l.b16 %v2932
        %v3964 = vunpack.c.l.b16 %v2933
        %v3965 = vunpack.c.l.b16 %v2934
        %v3966 = vunpack.c.l.b16 %v2935
        %v3967 = vunpack.c.l.b16 %v2936
        %v3968 = vunpack.c.l.b16 %v2937
        %v3969 = vunpack.c.l.b16 %v2938
        %v3970 = vunpack.c.l.b16 %v2939
        %v3971 = vunpack.c.l.b16 %v2940
        %v3972 = vunpack.c.l.b16 %v2941
        %v3973 = vunpack.c.l.b16 %v2942
        %v3974 = vunpack.c.l.b16 %v2943
        %v3975 = vunpack.c.l.b16 %v2944
        %v3976 = vunpack.c.l.b16 %v2945
        %v3977 = vunpack.c.l.b16 %v2946
        %v3978 = vunpack.c.l.b16 %v2947
        %v3979 = vunpack.c.l.b16 %v2948
        %v3980 = vunpack.c.l.b16 %v2949
        %v3981 = vunpack.c.l.b16 %v2950
        %v3982 = vunpack.c.l.b16 %v2951
        %v3983 = vunpack.c.l.b16 %v2952
        %v3984 = vunpack.c.l.b16 %v2953
        %v3985 = vunpack.c.l.b16 %v2954
        %v3986 = vunpack.c.l.b16 %v2955
        %v3987 = vunpack.c.l.b16 %v2956
        %v3988 = vunpack.c.l.b16 %v2957
        %v3989 = vunpack.c.l.b16 %v2958
        %v3990 = vunpack.c.l.b16 %v2959
        %v3991 = vunpack.c.l.b16 %v2960
        %v3992 = vunpack.c.l.b16 %v2961
        %v3993 = vunpack.c.l.b16 %v2962
        %v3994 = vunpack.c.l.b16 %v2963
        %v3995 = vunpack.c.l.b16 %v2964
        %v3996 = vunpack.c.l.b16 %v2965
        %v3997 = vunpack.c.l.b16 %v2966
        %v3998 = vunpack.c.l.b16 %v2967
        %v3999 = vunpack.c.l.b16 %v2968
        %v4000 = vunpack.c.l.b16 %v2969
        %v4001 = vunpack.c.l.b16 %v2970
        %v4002 = vunpack.c.l.b16 %v2971
        %v4003 = vunpack.c.l.b16 %v2972
        %v4004 = vunpack.c.l.b16 %v2973
        %v4005 = vunpack.c.l.b16 %v2974
        %v4006 = vunpack.c.l.b16 %v2975
        %v4007 = vunpack.c.l.b16 %v2976
        %v4008 = vunpack.c.l.b16 %v2977
        %v4009 = vunpack.c.l.b16 %v2978
        %v4010 = vunpack.c.l.b16 %v2979
        %v4011 = vunpack.c.l.b16 %v2980
        %v4012 = vunpack.c.l.b16 %v2981
        %v4013 = vunpack.c.l.b16 %v2982
        %v4014 = vunpack.c.l.b16 %v2983
        %v4015 = vunpack.c.l.b16 %v2984
        %v4016 = vunpack.c.l.b16 %v2985
        %v4017 = vunpack.c.l.b16 %v2986
        %v4018 = vunpack.c.l.b16 %v2987
        %v4019 = vunpack.c.l.b16 %v2988
        %v4020 = vunpack.c.l.b16 %v2989
        %v4021 = vunpack.c.l.b16 %v2990
        %v4022 = vunpack.c.l.b16 %v2991
        %v4023 = vunpack.c.l.b16 %v2992
        %v4024 = vunpack.c.l.b16 %v2993
        %v4025 = vunpack.c.l.b16 %v2994
        %v4026 = vunpack.c.l.b16 %v2995
        %v4027 = vunpack.c.l.b16 %v2996
        %v4028 = vunpack.c.l.b16 %v2997
        %v4029 = vunpack.c.l.b16 %v2998
        %v4030 = vunpack.c.l.b16 %v2999
        %v4031 = vunpack.c.l.b16 %v3000
        %v4032 = vunpack.c.l.b16 %v3001
        %v4033 = vunpack.c.l.b16 %v3002
        %v4034 = vunpack.c.l.b16 %v3003
        %v4035 = vunpack.c.l.b16 %v3004
        %v4036 = vunpack.c.l.b16 %v3005
        %v4037 = vunpack.c.l.b16 %v3006
        %v4038 = vunpack.c.l.b16 %v3007
        %v4039 = vunpack.c.l.b16 %v3008
        %v4040 = vunpack.c.l.b16 %v3009
        %v4041 = vunpack.c.l.b16 %v3010
        %v4042 = vunpack.c.l.b16 %v3011
        %v4043 = vunpack.c.l.b16 %v3012
        %v4044 = vunpack.c.l.b16 %v3013
        %v4045 = vunpack.c.l.b16 %v3014
        %v4046 = vunpack.c.l.b16 %v3015
        %v4047 = vunpack.c.l.b16 %v3016
        %v4048 = vunpack.c.l.b16 %v3017
        %v4049 = vunpack.c.l.b16 %v3018
        %v4050 = vunpack.c.l.b16 %v3019
        %v4051 = vunpack.c.l.b16 %v3020
        %v4052 = vunpack.c.l.b16 %v3021
        %v4053 = vunpack.c.l.b16 %v3022
        %v4054 = vunpack.c.l.b16 %v3023
        %v4055 = vunpack.c.l.b16 %v3024
        %v4056 = vunpack.c.l.b16 %v3025
        %v4057 = vunpack.c.l.b16 %v3026
        %v4058 = vunpack.c.l.b16 %v3027
        %v4059 = vunpack.c.l.b16 %v3028
        %v4060 = vunpack.c.l.b16 %v3029
        %v4061 = vunpack.c.l.b16 %v3030
        %v4062 = vunpack.c.l.b16 %v3031
        %v4063 = vunpack.c.l.b16 %v3032
        %v4064 = vunpack.c.l.b16 %v3033
        %v4065 = vunpack.c.l.b16 %v3034
        %v4066 = vunpack.c.l.b16 %v3035
        %v4067 = vunpack.c.l.b16 %v3036
        %v4068 = vunpack.c.l.b16 %v3037
        %v4069 = vunpack.c.l.b16 %v3038
        %v4070 = vunpack.c.l.b16 %v3039
        %v4071 = vunpack.c.l.b16 %v3040
        %v4072 = vunpack.c.l.b16 %v3041
        %v4073 = vunpack.c.l.b16 %v3042
        %v4074 = vunpack.c.l.b16 %v3043
        %v4075 = vunpack.c.l.b16 %v3044
        %v4076 = vunpack.c.l.b16 %v3045
        %v4077 = vunpack.c.l.b16 %v3046
        %v4078 = vpack.c.b16 %v3935, %v3934
        %v4079 = vpack.c.b16 %v3937, %v3936
        %v4080 = vpack.c.b16 %v3939, %v3938
        %v4081 = vpack.c.b16 %v3941, %v3940
        %v4082 = vpack.c.b16 %v3943, %v3942
        %v4083 = vpack.c.b16 %v3945, %v3944
        %v4084 = vpack.c.b16 %v3947, %v3946
        %v4085 = vpack.c.b16 %v3949, %v3948
        %v4086 = vpack.c.b16 %v3951, %v3950
        %v4087 = vpack.c.b16 %v3953, %v3952
        %v4088 = vpack.c.b16 %v3955, %v3954
        %v4089 = vpack.c.b16 %v3957, %v3956
        %v4090 = vpack.c.b16 %v3959, %v3958
        %v4091 = vpack.c.b16 %v3961, %v3960
        %v4092 = vpack.c.b16 %v3963, %v3962
        %v4093 = vpack.c.b16 %v3965, %v3964
        %v4094 = vpack.c.b16 %v3967, %v3966
        %v4095 = vpack.c.b16 %v3969, %v3968
        %v4096 = vpack.c.b16 %v3971, %v3970
        %v4097 = vpack.c.b16 %v3973, %v3972
        %v4098 = vpack.c.b16 %v3975, %v3974
        %v4099 = vpack.c.b16 %v3977, %v3976
        %v4100 = vpack.c.b16 %v3979, %v3978
        %v4101 = vpack.c.b16 %v3981, %v3980
        %v4102 = vpack.c.b16 %v3983, %v3982
        %v4103 = vpack.c.b16 %v3985, %v3984
        %v4104 = vpack.c.b16 %v3987, %v3986
        %v4105 = vpack.c.b16 %v3989, %v3988
        %v4106 = vpack.c.b16 %v3991, %v3990
        %v4107 = vpack.c.b16 %v3993, %v3992
        %v4108 = vpack.c.b16 %v3995, %v3994
        %v4109 = vpack.c.b16 %v3997, %v3996
        %v4110 = vpack.c.b16 %v3999, %v3998
        %v4111 = vpack.c.b16 %v4001, %v4000
        %v4112 = vpack.c.b16 %v4003, %v4002
        %v4113 = vpack.c.b16 %v4005, %v4004
        %v4114 = vpack.c.b16 %v4007, %v4006
        %v4115 = vpack.c.b16 %v4009, %v4008
        %v4116 = vpack.c.b16 %v4011, %v4010
        %v4117 = vpack.c.b16 %v4013, %v4012
        %v4118 = vpack.c.b16 %v4015, %v4014
        %v4119 = vpack.c.b16 %v4017, %v4016
        %v4120 = vpack.c.b16 %v4019, %v4018
        %v4121 = vpack.c.b16 %v4021, %v4020
        %v4122 = vpack.c.b16 %v4023, %v4022
        %v4123 = vpack.c.b16 %v4025, %v4024
        %v4124 = vpack.c.b16 %v4027, %v4026
        %v4125 = vpack.c.b16 %v4029, %v4028
        %v4126 = vpack.c.b16 %v4031, %v4030
        %v4127 = vpack.c.b16 %v4033, %v4032
        %v4128 = vpack.c.b16 %v4035, %v4034
        %v4129 = vpack.c.b16 %v4037, %v4036
        %v4130 = vpack.c.b16 %v4039, %v4038
        %v4131 = vpack.c.b16 %v4041, %v4040
        %v4132 = vpack.c.b16 %v4043, %v4042
        %v4133 = vpack.c.b16 %v4045, %v4044
        %v4134 = vpack.c.b16 %v4047, %v4046
        %v4135 = vpack.c.b16 %v4049, %v4048
        %v4136 = vpack.c.b16 %v4051, %v4050
        %v4137 = vpack.c.b16 %v4053, %v4052
        %v4138 = vpack.c.b16 %v4055, %v4054
        %v4139 = vpack.c.b16 %v4057, %v4056
        %v4140 = vpack.c.b16 %v4059, %v4058
        %v4141 = vpack.c.b16 %v4061, %v4060
        %v4142 = vpack.c.b16 %v4063, %v4062
        %v4143 = vpack.c.b16 %v4065, %v4064
        %v4144 = vpack.c.b16 %v4067, %v4066
        %v4145 = vpack.c.b16 %v4069, %v4068
        %v4146 = vpack.c.b16 %v4071, %v4070
        %v4147 = vpack.c.b16 %v4073, %v4072
        %v4148 = vpack.c.b16 %v4075, %v4074
        %v4149 = vpack.c.b16 %v4077, %v4076
        %4222 = vmatprep.subr.bf16.mxu0 0
        %4223 = vmatpush1.bf16.msra.mxu0 %v4085
        %4224 = vmatprep.subr.bf16.mxu0 0
        %4225 = vmatpush1.bf16.msra.mxu0 %v4084
        %4226 = vmatprep.subr.bf16.mxu0 0
        %4227 = vmatpush1.bf16.msra.mxu0 %v4083
        %4228 = vmatprep.subr.bf16.mxu0 0
        %4229 = vmatpush1.bf16.msra.mxu0 %v4082
        %4230 = vmatprep.subr.bf16.mxu0 0
        %4231 = vmatpush1.bf16.msra.mxu0 %v4081
        %4232 = vmatprep.subr.bf16.mxu0 0
        %4233 = vmatpush1.bf16.msra.mxu0 %v4080
        %4234 = vmatprep.subr.bf16.mxu0 0
        %4235 = vmatpush1.bf16.msra.mxu0 %v4079
        %4236 = vmatprep.subr.bf16.mxu0 0
        %4237 = vmatpush1.bf16.msra.mxu0 %v4078
        %4238 = vmatprep.subr.bf16.mxu0 0
        %4239 = vmatpush2.bf16.msra.mxu0 %v4093
        %4240 = vmatprep.subr.bf16.mxu0 0
        %4241 = vmatpush2.bf16.msra.mxu0 %v4092
        %4242 = vmatprep.subr.bf16.mxu0 0
        %4243 = vmatpush2.bf16.msra.mxu0 %v4091
        %4244 = vmatprep.subr.bf16.mxu0 0
        %4245 = vmatpush2.bf16.msra.mxu0 %v4090
        %4246 = vmatprep.subr.bf16.mxu0 0
        %4247 = vmatpush2.bf16.msra.mxu0 %v4089
        %4248 = vmatprep.subr.bf16.mxu0 0
        %4249 = vmatpush2.bf16.msra.mxu0 %v4088
        %4250 = vmatprep.subr.bf16.mxu0 0
        %4251 = vmatpush2.bf16.msra.mxu0 %v4087
        %4252 = vmatprep.subr.bf16.mxu0 0
        %4253 = vmatpush2.bf16.msra.mxu0 %v4086
        %4254 = vmatprep.mubr.bf16.mxu0 %v3503
        %4255 = vmatmul.mubr.bf16.gmra.mxu0 %v3502
        %v4256 = vpop.f32.mrf.mxu0
        %v4257 = vadd.f32 %v3052, %v4256
        %v4258 = vpop.f32.mrf.mxu0
        %v4259 = vpop.f32.mrf.mxu0
        %v4260 = vadd.f32 %v3052, %v4259
        %v4261 = vpop.f32.mrf.mxu0
        %4262 = vmatprep.mubr.bf16.mxu0 %v3512
        %4263 = vmatmul.mubr.bf16.gmra.mxu0 %v3511
        %v4264 = vpop.f32.mrf.mxu0
        %v4265 = vadd.f32 %v3052, %v4264
        %v4266 = vpop.f32.mrf.mxu0
        %v4267 = vpop.f32.mrf.mxu0
        %v4268 = vadd.f32 %v3052, %v4267
        %v4269 = vpop.f32.mrf.mxu0
        %4270 = vmatprep.mubr.bf16.mxu0 %v3521
        %4271 = vmatmul.mubr.bf16.gmra.mxu0 %v3520
        %v4272 = vpop.f32.mrf.mxu0
        %v4273 = vadd.f32 %v3052, %v4272
        %v4274 = vpop.f32.mrf.mxu0
        %v4275 = vpop.f32.mrf.mxu0
        %v4276 = vadd.f32 %v3052, %v4275
        %v4277 = vpop.f32.mrf.mxu0
        %4278 = vmatprep.mubr.bf16.mxu0 %v3530
        %4279 = vmatmul.mubr.bf16.gmra.mxu0 %v3529
        %v4280 = vpop.f32.mrf.mxu0
        %v4281 = vadd.f32 %v3052, %v4280
        %v4282 = vpop.f32.mrf.mxu0
        %v4283 = vpop.f32.mrf.mxu0
        %v4284 = vadd.f32 %v3052, %v4283
        %v4285 = vpop.f32.mrf.mxu0
        %4286 = vmatprep.mubr.bf16.mxu0 %v3539
        %4287 = vmatmul.mubr.bf16.gmra.mxu0 %v3538
        %v4288 = vpop.f32.mrf.mxu0
        %v4289 = vadd.f32 %v3052, %v4288
        %v4290 = vpop.f32.mrf.mxu0
        %v4291 = vpop.f32.mrf.mxu0
        %v4292 = vadd.f32 %v3052, %v4291
        %v4293 = vpop.f32.mrf.mxu0
        %4294 = vmatprep.mubr.bf16.mxu0 %v3548
        %4295 = vmatmul.mubr.bf16.gmra.mxu0 %v3547
        %v4296 = vpop.f32.mrf.mxu0
        %v4297 = vadd.f32 %v3052, %v4296
        %v4298 = vpop.f32.mrf.mxu0
        %v4299 = vpop.f32.mrf.mxu0
        %v4300 = vadd.f32 %v3052, %v4299
        %v4301 = vpop.f32.mrf.mxu0
        %4302 = vmatprep.mubr.bf16.mxu0 %v3557
        %4303 = vmatmul.mubr.bf16.gmra.mxu0 %v3556
        %v4304 = vpop.f32.mrf.mxu0
        %v4305 = vadd.f32 %v3052, %v4304
        %v4306 = vpop.f32.mrf.mxu0
        %v4307 = vpop.f32.mrf.mxu0
        %v4308 = vadd.f32 %v3052, %v4307
        %v4309 = vpop.f32.mrf.mxu0
        %4310 = vmatprep.mubr.bf16.mxu0 %v3566
        %4311 = vmatmul.mubr.bf16.gmra.mxu0 %v3565
        %v4312 = vpop.f32.mrf.mxu0
        %v4313 = vadd.f32 %v3052, %v4312
        %v4314 = vpop.f32.mrf.mxu0
        %v4315 = vpop.f32.mrf.mxu0
        %v4316 = vadd.f32 %v3052, %v4315
        %v4317 = vpop.f32.mrf.mxu0
        %4318 = vmatprep.mubr.bf16.mxu0 %v3575
        %4319 = vmatmul.mubr.bf16.gmra.mxu0 %v3574
        %v4320 = vpop.f32.mrf.mxu0
        %v4321 = vadd.f32 %v3052, %v4320
        %v4322 = vpop.f32.mrf.mxu0
        %v4323 = vpop.f32.mrf.mxu0
        %v4324 = vadd.f32 %v3052, %v4323
        %v4325 = vpop.f32.mrf.mxu0
        %4326 = vmatprep.mubr.bf16.mxu0 %v3584
        %4327 = vmatmul.mubr.bf16.gmra.mxu0 %v3583
        %v4328 = vpop.f32.mrf.mxu0
        %v4329 = vadd.f32 %v3052, %v4328
        %v4330 = vpop.f32.mrf.mxu0
        %v4331 = vpop.f32.mrf.mxu0
        %v4332 = vadd.f32 %v3052, %v4331
        %v4333 = vpop.f32.mrf.mxu0
        %4334 = vmatprep.mubr.bf16.mxu0 %v3593
        %4335 = vmatmul.mubr.bf16.gmra.mxu0 %v3592
        %v4336 = vpop.f32.mrf.mxu0
        %v4337 = vadd.f32 %v3052, %v4336
        %v4338 = vpop.f32.mrf.mxu0
        %v4339 = vpop.f32.mrf.mxu0
        %v4340 = vadd.f32 %v3052, %v4339
        %v4341 = vpop.f32.mrf.mxu0
        %4342 = vmatprep.mubr.bf16.mxu0 %v3602
        %4343 = vmatmul.mubr.bf16.gmra.mxu0 %v3601
        %v4344 = vpop.f32.mrf.mxu0
        %v4345 = vadd.f32 %v3052, %v4344
        %v4346 = vpop.f32.mrf.mxu0
        %v4347 = vpop.f32.mrf.mxu0
        %v4348 = vadd.f32 %v3052, %v4347
        %v4349 = vpop.f32.mrf.mxu0
        %4350 = vmatprep.mubr.bf16.mxu0 %v3611
        %4351 = vmatmul.mubr.bf16.gmra.mxu0 %v3610
        %v4352 = vpop.f32.mrf.mxu0
        %v4353 = vadd.f32 %v3052, %v4352
        %v4354 = vpop.f32.mrf.mxu0
        %v4355 = vpop.f32.mrf.mxu0
        %v4356 = vadd.f32 %v3052, %v4355
        %v4357 = vpop.f32.mrf.mxu0
        %4358 = vmatprep.mubr.bf16.mxu0 %v3620
        %4359 = vmatmul.mubr.bf16.gmra.mxu0 %v3619
        %v4360 = vpop.f32.mrf.mxu0
        %v4361 = vadd.f32 %v3052, %v4360
        %v4362 = vpop.f32.mrf.mxu0
        %v4363 = vpop.f32.mrf.mxu0
        %v4364 = vadd.f32 %v3052, %v4363
        %v4365 = vpop.f32.mrf.mxu0
        %4366 = vmatprep.mubr.bf16.mxu0 %v3629
        %4367 = vmatmul.mubr.bf16.gmra.mxu0 %v3628
        %v4368 = vpop.f32.mrf.mxu0
        %v4369 = vadd.f32 %v3052, %v4368
        %v4370 = vpop.f32.mrf.mxu0
        %v4371 = vpop.f32.mrf.mxu0
        %v4372 = vadd.f32 %v3052, %v4371
        %v4373 = vpop.f32.mrf.mxu0
        %4374 = vmatprep.mubr.bf16.mxu0 %v3638
        %4375 = vmatmul.mubr.bf16.gmra.mxu0 %v3637
        %v4376 = vpop.f32.mrf.mxu0
        %v4377 = vadd.f32 %v3052, %v4376
        %v4378 = vpop.f32.mrf.mxu0
        %v4379 = vpop.f32.mrf.mxu0
        %v4380 = vadd.f32 %v3052, %v4379
        %v4381 = vpop.f32.mrf.mxu0
        %4382 = vdwg.mxu0
        %4383 = vmatprep.subr.bf16.mxu0 0
        %4384 = vmatpush1.bf16.msra.mxu0 %v4101
        %4385 = vmatprep.subr.bf16.mxu0 0
        %4386 = vmatpush1.bf16.msra.mxu0 %v4100
        %4387 = vmatprep.subr.bf16.mxu0 0
        %4388 = vmatpush1.bf16.msra.mxu0 %v4099
        %4389 = vmatprep.subr.bf16.mxu0 0
        %4390 = vmatpush1.bf16.msra.mxu0 %v4098
        %4391 = vmatprep.subr.bf16.mxu0 0
        %4392 = vmatpush1.bf16.msra.mxu0 %v4097
        %4393 = vmatprep.subr.bf16.mxu0 0
        %4394 = vmatpush1.bf16.msra.mxu0 %v4096
        %4395 = vmatprep.subr.bf16.mxu0 0
        %4396 = vmatpush1.bf16.msra.mxu0 %v4095
        %4397 = vmatprep.subr.bf16.mxu0 0
        %4398 = vmatpush1.bf16.msra.mxu0 %v4094
        %4399 = vmatprep.subr.bf16.mxu0 0
        %4400 = vmatpush2.bf16.msra.mxu0 %v4109
        %4401 = vmatprep.subr.bf16.mxu0 0
        %4402 = vmatpush2.bf16.msra.mxu0 %v4108
        %4403 = vmatprep.subr.bf16.mxu0 0
        %4404 = vmatpush2.bf16.msra.mxu0 %v4107
        %4405 = vmatprep.subr.bf16.mxu0 0
        %4406 = vmatpush2.bf16.msra.mxu0 %v4106
        %4407 = vmatprep.subr.bf16.mxu0 0
        %4408 = vmatpush2.bf16.msra.mxu0 %v4105
        %4409 = vmatprep.subr.bf16.mxu0 0
        %4410 = vmatpush2.bf16.msra.mxu0 %v4104
        %4411 = vmatprep.subr.bf16.mxu0 0
        %4412 = vmatpush2.bf16.msra.mxu0 %v4103
        %4413 = vmatprep.subr.bf16.mxu0 0
        %4414 = vmatpush2.bf16.msra.mxu0 %v4102
        %4415 = vmatprep.mubr.bf16.mxu0 %v3505
        %4416 = vmatmul.mubr.bf16.gmra.mxu0 %v3504
        %v4417 = vpop.f32.mrf.mxu0
        %v4418 = vadd.f32 %v4257, %v4417
        %v4419 = vpop.f32.mrf.mxu0
        %v4420 = vpop.f32.mrf.mxu0
        %v4421 = vadd.f32 %v4260, %v4420
        %v4422 = vpop.f32.mrf.mxu0
        %4423 = vmatprep.mubr.bf16.mxu0 %v3514
        %4424 = vmatmul.mubr.bf16.gmra.mxu0 %v3513
        %v4425 = vpop.f32.mrf.mxu0
        %v4426 = vadd.f32 %v4265, %v4425
        %v4427 = vpop.f32.mrf.mxu0
        %v4428 = vpop.f32.mrf.mxu0
        %v4429 = vadd.f32 %v4268, %v4428
        %v4430 = vpop.f32.mrf.mxu0
        %4431 = vmatprep.mubr.bf16.mxu0 %v3523
        %4432 = vmatmul.mubr.bf16.gmra.mxu0 %v3522
        %v4433 = vpop.f32.mrf.mxu0
        %v4434 = vadd.f32 %v4273, %v4433
        %v4435 = vpop.f32.mrf.mxu0
        %v4436 = vpop.f32.mrf.mxu0
        %v4437 = vadd.f32 %v4276, %v4436
        %v4438 = vpop.f32.mrf.mxu0
        %4439 = vmatprep.mubr.bf16.mxu0 %v3532
        %4440 = vmatmul.mubr.bf16.gmra.mxu0 %v3531
        %v4441 = vpop.f32.mrf.mxu0
        %v4442 = vadd.f32 %v4281, %v4441
        %v4443 = vpop.f32.mrf.mxu0
        %v4444 = vpop.f32.mrf.mxu0
        %v4445 = vadd.f32 %v4284, %v4444
        %v4446 = vpop.f32.mrf.mxu0
        %4447 = vmatprep.mubr.bf16.mxu0 %v3541
        %4448 = vmatmul.mubr.bf16.gmra.mxu0 %v3540
        %v4449 = vpop.f32.mrf.mxu0
        %v4450 = vadd.f32 %v4289, %v4449
        %v4451 = vpop.f32.mrf.mxu0
        %v4452 = vpop.f32.mrf.mxu0
        %v4453 = vadd.f32 %v4292, %v4452
        %v4454 = vpop.f32.mrf.mxu0
        %4455 = vmatprep.mubr.bf16.mxu0 %v3550
        %4456 = vmatmul.mubr.bf16.gmra.mxu0 %v3549
        %v4457 = vpop.f32.mrf.mxu0
        %v4458 = vadd.f32 %v4297, %v4457
        %v4459 = vpop.f32.mrf.mxu0
        %v4460 = vpop.f32.mrf.mxu0
        %v4461 = vadd.f32 %v4300, %v4460
        %v4462 = vpop.f32.mrf.mxu0
        %4463 = vmatprep.mubr.bf16.mxu0 %v3559
        %4464 = vmatmul.mubr.bf16.gmra.mxu0 %v3558
        %v4465 = vpop.f32.mrf.mxu0
        %v4466 = vadd.f32 %v4305, %v4465
        %v4467 = vpop.f32.mrf.mxu0
        %v4468 = vpop.f32.mrf.mxu0
        %v4469 = vadd.f32 %v4308, %v4468
        %v4470 = vpop.f32.mrf.mxu0
        %4471 = vmatprep.mubr.bf16.mxu0 %v3568
        %4472 = vmatmul.mubr.bf16.gmra.mxu0 %v3567
        %v4473 = vpop.f32.mrf.mxu0
        %v4474 = vadd.f32 %v4313, %v4473
        %v4475 = vpop.f32.mrf.mxu0
        %v4476 = vpop.f32.mrf.mxu0
        %v4477 = vadd.f32 %v4316, %v4476
        %v4478 = vpop.f32.mrf.mxu0
        %4479 = vmatprep.mubr.bf16.mxu0 %v3577
        %4480 = vmatmul.mubr.bf16.gmra.mxu0 %v3576
        %v4481 = vpop.f32.mrf.mxu0
        %v4482 = vadd.f32 %v4321, %v4481
        %v4483 = vpop.f32.mrf.mxu0
        %v4484 = vpop.f32.mrf.mxu0
        %v4485 = vadd.f32 %v4324, %v4484
        %v4486 = vpop.f32.mrf.mxu0
        %4487 = vmatprep.mubr.bf16.mxu0 %v3586
        %4488 = vmatmul.mubr.bf16.gmra.mxu0 %v3585
        %v4489 = vpop.f32.mrf.mxu0
        %v4490 = vadd.f32 %v4329, %v4489
        %v4491 = vpop.f32.mrf.mxu0
        %v4492 = vpop.f32.mrf.mxu0
        %v4493 = vadd.f32 %v4332, %v4492
        %v4494 = vpop.f32.mrf.mxu0
        %4495 = vmatprep.mubr.bf16.mxu0 %v3595
        %4496 = vmatmul.mubr.bf16.gmra.mxu0 %v3594
        %v4497 = vpop.f32.mrf.mxu0
        %v4498 = vadd.f32 %v4337, %v4497
        %v4499 = vpop.f32.mrf.mxu0
        %v4500 = vpop.f32.mrf.mxu0
        %v4501 = vadd.f32 %v4340, %v4500
        %v4502 = vpop.f32.mrf.mxu0
        %4503 = vmatprep.mubr.bf16.mxu0 %v3604
        %4504 = vmatmul.mubr.bf16.gmra.mxu0 %v3603
        %v4505 = vpop.f32.mrf.mxu0
        %v4506 = vadd.f32 %v4345, %v4505
        %v4507 = vpop.f32.mrf.mxu0
        %v4508 = vpop.f32.mrf.mxu0
        %v4509 = vadd.f32 %v4348, %v4508
        %v4510 = vpop.f32.mrf.mxu0
        %4511 = vmatprep.mubr.bf16.mxu0 %v3613
        %4512 = vmatmul.mubr.bf16.gmra.mxu0 %v3612
        %v4513 = vpop.f32.mrf.mxu0
        %v4514 = vadd.f32 %v4353, %v4513
        %v4515 = vpop.f32.mrf.mxu0
        %v4516 = vpop.f32.mrf.mxu0
        %v4517 = vadd.f32 %v4356, %v4516
        %v4518 = vpop.f32.mrf.mxu0
        %4519 = vmatprep.mubr.bf16.mxu0 %v3622
        %4520 = vmatmul.mubr.bf16.gmra.mxu0 %v3621
        %v4521 = vpop.f32.mrf.mxu0
        %v4522 = vadd.f32 %v4361, %v4521
        %v4523 = vpop.f32.mrf.mxu0
        %v4524 = vpop.f32.mrf.mxu0
        %v4525 = vadd.f32 %v4364, %v4524
        %v4526 = vpop.f32.mrf.mxu0
        %4527 = vmatprep.mubr.bf16.mxu0 %v3631
        %4528 = vmatmul.mubr.bf16.gmra.mxu0 %v3630
        %v4529 = vpop.f32.mrf.mxu0
        %v4530 = vadd.f32 %v4369, %v4529
        %v4531 = vpop.f32.mrf.mxu0
        %v4532 = vpop.f32.mrf.mxu0
        %v4533 = vadd.f32 %v4372, %v4532
        %v4534 = vpop.f32.mrf.mxu0
        %4535 = vmatprep.mubr.bf16.mxu0 %v3640
        %4536 = vmatmul.mubr.bf16.gmra.mxu0 %v3639
        %v4537 = vpop.f32.mrf.mxu0
        %v4538 = vadd.f32 %v4377, %v4537
        %v4539 = vpop.f32.mrf.mxu0
        %v4540 = vpop.f32.mrf.mxu0
        %v4541 = vadd.f32 %v4380, %v4540
        %v4542 = vpop.f32.mrf.mxu0
        %4543 = vdwg.mxu0
        %4544 = vmatprep.subr.bf16.mxu0 0
        %4545 = vmatpush1.bf16.msra.mxu0 %v4117
        %4546 = vmatprep.subr.bf16.mxu0 0
        %4547 = vmatpush1.bf16.msra.mxu0 %v4116
        %4548 = vmatprep.subr.bf16.mxu0 0
        %4549 = vmatpush1.bf16.msra.mxu0 %v4115
        %4550 = vmatprep.subr.bf16.mxu0 0
        %4551 = vmatpush1.bf16.msra.mxu0 %v4114
        %4552 = vmatprep.subr.bf16.mxu0 0
        %4553 = vmatpush1.bf16.msra.mxu0 %v4113
        %4554 = vmatprep.subr.bf16.mxu0 0
        %4555 = vmatpush1.bf16.msra.mxu0 %v4112
        %4556 = vmatprep.subr.bf16.mxu0 0
        %4557 = vmatpush1.bf16.msra.mxu0 %v4111
        %4558 = vmatprep.subr.bf16.mxu0 0
        %4559 = vmatpush1.bf16.msra.mxu0 %v4110
        %4560 = vmatprep.subr.bf16.mxu0 0
        %4561 = vmatpush2.bf16.msra.mxu0 %v4125
        %4562 = vmatprep.subr.bf16.mxu0 0
        %4563 = vmatpush2.bf16.msra.mxu0 %v4124
        %4564 = vmatprep.subr.bf16.mxu0 0
        %4565 = vmatpush2.bf16.msra.mxu0 %v4123
        %4566 = vmatprep.subr.bf16.mxu0 0
        %4567 = vmatpush2.bf16.msra.mxu0 %v4122
        %4568 = vmatprep.subr.bf16.mxu0 0
        %4569 = vmatpush2.bf16.msra.mxu0 %v4121
        %4570 = vmatprep.subr.bf16.mxu0 0
        %4571 = vmatpush2.bf16.msra.mxu0 %v4120
        %4572 = vmatprep.subr.bf16.mxu0 0
        %4573 = vmatpush2.bf16.msra.mxu0 %v4119
        %4574 = vmatprep.subr.bf16.mxu0 0
        %4575 = vmatpush2.bf16.msra.mxu0 %v4118
        %4576 = vmatprep.mubr.bf16.mxu0 %v3507
        %4577 = vmatmul.mubr.bf16.gmra.mxu0 %v3506
        %v4578 = vpop.f32.mrf.mxu0
        %v4579 = vadd.f32 %v4418, %v4578
        %v4580 = vpop.f32.mrf.mxu0
        %v4581 = vpop.f32.mrf.mxu0
        %v4582 = vadd.f32 %v4421, %v4581
        %v4583 = vpop.f32.mrf.mxu0
        %4584 = vmatprep.mubr.bf16.mxu0 %v3516
        %4585 = vmatmul.mubr.bf16.gmra.mxu0 %v3515
        %v4586 = vpop.f32.mrf.mxu0
        %v4587 = vadd.f32 %v4426, %v4586
        %v4588 = vpop.f32.mrf.mxu0
        %v4589 = vpop.f32.mrf.mxu0
        %v4590 = vadd.f32 %v4429, %v4589
        %v4591 = vpop.f32.mrf.mxu0
        %4592 = vmatprep.mubr.bf16.mxu0 %v3525
        %4593 = vmatmul.mubr.bf16.gmra.mxu0 %v3524
        %v4594 = vpop.f32.mrf.mxu0
        %v4595 = vadd.f32 %v4434, %v4594
        %v4596 = vpop.f32.mrf.mxu0
        %v4597 = vpop.f32.mrf.mxu0
        %v4598 = vadd.f32 %v4437, %v4597
        %v4599 = vpop.f32.mrf.mxu0
        %4600 = vmatprep.mubr.bf16.mxu0 %v3534
        %4601 = vmatmul.mubr.bf16.gmra.mxu0 %v3533
        %v4602 = vpop.f32.mrf.mxu0
        %v4603 = vadd.f32 %v4442, %v4602
        %v4604 = vpop.f32.mrf.mxu0
        %v4605 = vpop.f32.mrf.mxu0
        %v4606 = vadd.f32 %v4445, %v4605
        %v4607 = vpop.f32.mrf.mxu0
        %4608 = vmatprep.mubr.bf16.mxu0 %v3543
        %4609 = vmatmul.mubr.bf16.gmra.mxu0 %v3542
        %v4610 = vpop.f32.mrf.mxu0
        %v4611 = vadd.f32 %v4450, %v4610
        %v4612 = vpop.f32.mrf.mxu0
        %v4613 = vpop.f32.mrf.mxu0
        %v4614 = vadd.f32 %v4453, %v4613
        %v4615 = vpop.f32.mrf.mxu0
        %4616 = vmatprep.mubr.bf16.mxu0 %v3552
        %4617 = vmatmul.mubr.bf16.gmra.mxu0 %v3551
        %v4618 = vpop.f32.mrf.mxu0
        %v4619 = vadd.f32 %v4458, %v4618
        %v4620 = vpop.f32.mrf.mxu0
        %v4621 = vpop.f32.mrf.mxu0
        %v4622 = vadd.f32 %v4461, %v4621
        %v4623 = vpop.f32.mrf.mxu0
        %4624 = vmatprep.mubr.bf16.mxu0 %v3561
        %4625 = vmatmul.mubr.bf16.gmra.mxu0 %v3560
        %v4626 = vpop.f32.mrf.mxu0
        %v4627 = vadd.f32 %v4466, %v4626
        %v4628 = vpop.f32.mrf.mxu0
        %v4629 = vpop.f32.mrf.mxu0
        %v4630 = vadd.f32 %v4469, %v4629
        %v4631 = vpop.f32.mrf.mxu0
        %4632 = vmatprep.mubr.bf16.mxu0 %v3570
        %4633 = vmatmul.mubr.bf16.gmra.mxu0 %v3569
        %v4634 = vpop.f32.mrf.mxu0
        %v4635 = vadd.f32 %v4474, %v4634
        %v4636 = vpop.f32.mrf.mxu0
        %v4637 = vpop.f32.mrf.mxu0
        %v4638 = vadd.f32 %v4477, %v4637
        %v4639 = vpop.f32.mrf.mxu0
        %4640 = vmatprep.mubr.bf16.mxu0 %v3579
        %4641 = vmatmul.mubr.bf16.gmra.mxu0 %v3578
        %v4642 = vpop.f32.mrf.mxu0
        %v4643 = vadd.f32 %v4482, %v4642
        %v4644 = vpop.f32.mrf.mxu0
        %v4645 = vpop.f32.mrf.mxu0
        %v4646 = vadd.f32 %v4485, %v4645
        %v4647 = vpop.f32.mrf.mxu0
        %4648 = vmatprep.mubr.bf16.mxu0 %v3588
        %4649 = vmatmul.mubr.bf16.gmra.mxu0 %v3587
        %v4650 = vpop.f32.mrf.mxu0
        %v4651 = vadd.f32 %v4490, %v4650
        %v4652 = vpop.f32.mrf.mxu0
        %v4653 = vpop.f32.mrf.mxu0
        %v4654 = vadd.f32 %v4493, %v4653
        %v4655 = vpop.f32.mrf.mxu0
        %4656 = vmatprep.mubr.bf16.mxu0 %v3597
        %4657 = vmatmul.mubr.bf16.gmra.mxu0 %v3596
        %v4658 = vpop.f32.mrf.mxu0
        %v4659 = vadd.f32 %v4498, %v4658
        %v4660 = vpop.f32.mrf.mxu0
        %v4661 = vpop.f32.mrf.mxu0
        %v4662 = vadd.f32 %v4501, %v4661
        %v4663 = vpop.f32.mrf.mxu0
        %4664 = vmatprep.mubr.bf16.mxu0 %v3606
        %4665 = vmatmul.mubr.bf16.gmra.mxu0 %v3605
        %v4666 = vpop.f32.mrf.mxu0
        %v4667 = vadd.f32 %v4506, %v4666
        %v4668 = vpop.f32.mrf.mxu0
        %v4669 = vpop.f32.mrf.mxu0
        %v4670 = vadd.f32 %v4509, %v4669
        %v4671 = vpop.f32.mrf.mxu0
        %4672 = vmatprep.mubr.bf16.mxu0 %v3615
        %4673 = vmatmul.mubr.bf16.gmra.mxu0 %v3614
        %v4674 = vpop.f32.mrf.mxu0
        %v4675 = vadd.f32 %v4514, %v4674
        %v4676 = vpop.f32.mrf.mxu0
        %v4677 = vpop.f32.mrf.mxu0
        %v4678 = vadd.f32 %v4517, %v4677
        %v4679 = vpop.f32.mrf.mxu0
        %4680 = vmatprep.mubr.bf16.mxu0 %v3624
        %4681 = vmatmul.mubr.bf16.gmra.mxu0 %v3623
        %v4682 = vpop.f32.mrf.mxu0
        %v4683 = vadd.f32 %v4522, %v4682
        %v4684 = vpop.f32.mrf.mxu0
        %v4685 = vpop.f32.mrf.mxu0
        %v4686 = vadd.f32 %v4525, %v4685
        %v4687 = vpop.f32.mrf.mxu0
        %4688 = vmatprep.mubr.bf16.mxu0 %v3633
        %4689 = vmatmul.mubr.bf16.gmra.mxu0 %v3632
        %v4690 = vpop.f32.mrf.mxu0
        %v4691 = vadd.f32 %v4530, %v4690
        %v4692 = vpop.f32.mrf.mxu0
        %v4693 = vpop.f32.mrf.mxu0
        %v4694 = vadd.f32 %v4533, %v4693
        %v4695 = vpop.f32.mrf.mxu0
        %4696 = vmatprep.mubr.bf16.mxu0 %v3642
        %4697 = vmatmul.mubr.bf16.gmra.mxu0 %v3641
        %v4698 = vpop.f32.mrf.mxu0
        %v4699 = vadd.f32 %v4538, %v4698
        %v4700 = vpop.f32.mrf.mxu0
        %v4701 = vpop.f32.mrf.mxu0
        %v4702 = vadd.f32 %v4541, %v4701
        %v4703 = vpop.f32.mrf.mxu0
        %4704 = vdwg.mxu0
        %4705 = vmatprep.subr.bf16.mxu0 0
        %4706 = vmatpush1.bf16.msra.mxu0 %v4133
        %4707 = vmatprep.subr.bf16.mxu0 0
        %4708 = vmatpush1.bf16.msra.mxu0 %v4132
        %4709 = vmatprep.subr.bf16.mxu0 0
        %4710 = vmatpush1.bf16.msra.mxu0 %v4131
        %4711 = vmatprep.subr.bf16.mxu0 0
        %4712 = vmatpush1.bf16.msra.mxu0 %v4130
        %4713 = vmatprep.subr.bf16.mxu0 0
        %4714 = vmatpush1.bf16.msra.mxu0 %v4129
        %4715 = vmatprep.subr.bf16.mxu0 0
        %4716 = vmatpush1.bf16.msra.mxu0 %v4128
        %4717 = vmatprep.subr.bf16.mxu0 0
        %4718 = vmatpush1.bf16.msra.mxu0 %v4127
        %4719 = vmatprep.subr.bf16.mxu0 0
        %4720 = vmatpush1.bf16.msra.mxu0 %v4126
        %4721 = vmatprep.subr.bf16.mxu0 0
        %4722 = vmatpush2.bf16.msra.mxu0 %v4141
        %4723 = vmatprep.subr.bf16.mxu0 0
        %4724 = vmatpush2.bf16.msra.mxu0 %v4140
        %4725 = vmatprep.subr.bf16.mxu0 0
        %4726 = vmatpush2.bf16.msra.mxu0 %v4139
        %4727 = vmatprep.subr.bf16.mxu0 0
        %4728 = vmatpush2.bf16.msra.mxu0 %v4138
        %4729 = vmatprep.subr.bf16.mxu0 0
        %4730 = vmatpush2.bf16.msra.mxu0 %v4137
        %4731 = vmatprep.subr.bf16.mxu0 0
        %4732 = vmatpush2.bf16.msra.mxu0 %v4136
        %4733 = vmatprep.subr.bf16.mxu0 0
        %4734 = vmatpush2.bf16.msra.mxu0 %v4135
        %4735 = vmatprep.subr.bf16.mxu0 0
        %4736 = vmatpush2.bf16.msra.mxu0 %v4134
        %4737 = vmatprep.mubr.bf16.mxu0 %v3509
        %4738 = vmatmul.mubr.bf16.gmra.mxu0 %v3508
        %v4739 = vpop.f32.mrf.mxu0
        %v4740 = vadd.f32 %v4579, %v4739
        %v4741 = vpop.f32.mrf.mxu0
        %v4742 = vpop.f32.mrf.mxu0
        %v4743 = vadd.f32 %v4582, %v4742
        %v4744 = vpop.f32.mrf.mxu0
        %4745 = vmatprep.mubr.bf16.mxu0 %v3518
        %4746 = vmatmul.mubr.bf16.gmra.mxu0 %v3517
        %v4747 = vpop.f32.mrf.mxu0
        %v4748 = vadd.f32 %v4587, %v4747
        %v4749 = vpop.f32.mrf.mxu0
        %v4750 = vpop.f32.mrf.mxu0
        %v4751 = vadd.f32 %v4590, %v4750
        %v4752 = vpop.f32.mrf.mxu0
        %4753 = vmatprep.mubr.bf16.mxu0 %v3527
        %4754 = vmatmul.mubr.bf16.gmra.mxu0 %v3526
        %v4755 = vpop.f32.mrf.mxu0
        %v4756 = vadd.f32 %v4595, %v4755
        %v4757 = vpop.f32.mrf.mxu0
        %v4758 = vpop.f32.mrf.mxu0
        %v4759 = vadd.f32 %v4598, %v4758
        %v4760 = vpop.f32.mrf.mxu0
        %4761 = vmatprep.mubr.bf16.mxu0 %v3536
        %4762 = vmatmul.mubr.bf16.gmra.mxu0 %v3535
        %v4763 = vpop.f32.mrf.mxu0
        %v4764 = vadd.f32 %v4603, %v4763
        %v4765 = vpop.f32.mrf.mxu0
        %v4766 = vpop.f32.mrf.mxu0
        %v4767 = vadd.f32 %v4606, %v4766
        %v4768 = vpop.f32.mrf.mxu0
        %4769 = vmatprep.mubr.bf16.mxu0 %v3545
        %4770 = vmatmul.mubr.bf16.gmra.mxu0 %v3544
        %v4771 = vpop.f32.mrf.mxu0
        %v4772 = vadd.f32 %v4611, %v4771
        %v4773 = vpop.f32.mrf.mxu0
        %v4774 = vpop.f32.mrf.mxu0
        %v4775 = vadd.f32 %v4614, %v4774
        %v4776 = vpop.f32.mrf.mxu0
        %4777 = vmatprep.mubr.bf16.mxu0 %v3554
        %4778 = vmatmul.mubr.bf16.gmra.mxu0 %v3553
        %v4779 = vpop.f32.mrf.mxu0
        %v4780 = vadd.f32 %v4619, %v4779
        %v4781 = vpop.f32.mrf.mxu0
        %v4782 = vpop.f32.mrf.mxu0
        %v4783 = vadd.f32 %v4622, %v4782
        %v4784 = vpop.f32.mrf.mxu0
        %4785 = vmatprep.mubr.bf16.mxu0 %v3563
        %4786 = vmatmul.mubr.bf16.gmra.mxu0 %v3562
        %v4787 = vpop.f32.mrf.mxu0
        %v4788 = vadd.f32 %v4627, %v4787
        %v4789 = vpop.f32.mrf.mxu0
        %v4790 = vpop.f32.mrf.mxu0
        %v4791 = vadd.f32 %v4630, %v4790
        %v4792 = vpop.f32.mrf.mxu0
        %4793 = vmatprep.mubr.bf16.mxu0 %v3572
        %4794 = vmatmul.mubr.bf16.gmra.mxu0 %v3571
        %v4795 = vpop.f32.mrf.mxu0
        %v4796 = vadd.f32 %v4635, %v4795
        %v4797 = vpop.f32.mrf.mxu0
        %v4798 = vpop.f32.mrf.mxu0
        %v4799 = vadd.f32 %v4638, %v4798
        %v4800 = vpop.f32.mrf.mxu0
        %4801 = vmatprep.mubr.bf16.mxu0 %v3581
        %4802 = vmatmul.mubr.bf16.gmra.mxu0 %v3580
        %v4803 = vpop.f32.mrf.mxu0
        %v4804 = vadd.f32 %v4643, %v4803
        %v4805 = vpop.f32.mrf.mxu0
        %v4806 = vpop.f32.mrf.mxu0
        %v4807 = vadd.f32 %v4646, %v4806
        %v4808 = vpop.f32.mrf.mxu0
        %4809 = vmatprep.mubr.bf16.mxu0 %v3590
        %4810 = vmatmul.mubr.bf16.gmra.mxu0 %v3589
        %v4811 = vpop.f32.mrf.mxu0
        %v4812 = vadd.f32 %v4651, %v4811
        %v4813 = vpop.f32.mrf.mxu0
        %v4814 = vpop.f32.mrf.mxu0
        %v4815 = vadd.f32 %v4654, %v4814
        %v4816 = vpop.f32.mrf.mxu0
        %4817 = vmatprep.mubr.bf16.mxu0 %v3599
        %4818 = vmatmul.mubr.bf16.gmra.mxu0 %v3598
        %v4819 = vpop.f32.mrf.mxu0
        %v4820 = vadd.f32 %v4659, %v4819
        %v4821 = vpop.f32.mrf.mxu0
        %v4822 = vpop.f32.mrf.mxu0
        %v4823 = vadd.f32 %v4662, %v4822
        %v4824 = vpop.f32.mrf.mxu0
        %4825 = vmatprep.mubr.bf16.mxu0 %v3608
        %4826 = vmatmul.mubr.bf16.gmra.mxu0 %v3607
        %v4827 = vpop.f32.mrf.mxu0
        %v4828 = vadd.f32 %v4667, %v4827
        %v4829 = vpop.f32.mrf.mxu0
        %v4830 = vpop.f32.mrf.mxu0
        %v4831 = vadd.f32 %v4670, %v4830
        %v4832 = vpop.f32.mrf.mxu0
        %4833 = vmatprep.mubr.bf16.mxu0 %v3617
        %4834 = vmatmul.mubr.bf16.gmra.mxu0 %v3616
        %v4835 = vpop.f32.mrf.mxu0
        %v4836 = vadd.f32 %v4675, %v4835
        %v4837 = vpop.f32.mrf.mxu0
        %v4838 = vpop.f32.mrf.mxu0
        %v4839 = vadd.f32 %v4678, %v4838
        %v4840 = vpop.f32.mrf.mxu0
        %4841 = vmatprep.mubr.bf16.mxu0 %v3626
        %4842 = vmatmul.mubr.bf16.gmra.mxu0 %v3625
        %v4843 = vpop.f32.mrf.mxu0
        %v4844 = vadd.f32 %v4683, %v4843
        %v4845 = vpop.f32.mrf.mxu0
        %v4846 = vpop.f32.mrf.mxu0
        %v4847 = vadd.f32 %v4686, %v4846
        %v4848 = vpop.f32.mrf.mxu0
        %4849 = vmatprep.mubr.bf16.mxu0 %v3635
        %4850 = vmatmul.mubr.bf16.gmra.mxu0 %v3634
        %v4851 = vpop.f32.mrf.mxu0
        %v4852 = vadd.f32 %v4691, %v4851
        %v4853 = vpop.f32.mrf.mxu0
        %v4854 = vpop.f32.mrf.mxu0
        %v4855 = vadd.f32 %v4694, %v4854
        %v4856 = vpop.f32.mrf.mxu0
        %4857 = vmatprep.mubr.bf16.mxu0 %v3644
        %4858 = vmatmul.mubr.bf16.gmra.mxu0 %v3643
        %v4859 = vpop.f32.mrf.mxu0
        %v4860 = vadd.f32 %v4699, %v4859
        %v4861 = vpop.f32.mrf.mxu0
        %v4862 = vpop.f32.mrf.mxu0
        %v4863 = vadd.f32 %v4702, %v4862
        %v4864 = vpop.f32.mrf.mxu0
        %4865 = vdwg.mxu0
        %4866 = vmatprep.subr.bf16.mxu0 0
        %4867 = vmatpush1.bf16.msra.mxu0 %v4149
        %4868 = vmatprep.subr.bf16.mxu0 0
        %4869 = vmatpush1.bf16.msra.mxu0 %v4148
        %4870 = vmatprep.subr.bf16.mxu0 0
        %4871 = vmatpush1.bf16.msra.mxu0 %v4147
        %4872 = vmatprep.subr.bf16.mxu0 0
        %4873 = vmatpush1.bf16.msra.mxu0 %v4146
        %4874 = vmatprep.subr.bf16.mxu0 0
        %4875 = vmatpush1.bf16.msra.mxu0 %v4145
        %4876 = vmatprep.subr.bf16.mxu0 0
        %4877 = vmatpush1.bf16.msra.mxu0 %v4144
        %4878 = vmatprep.subr.bf16.mxu0 0
        %4879 = vmatpush1.bf16.msra.mxu0 %v4143
        %4880 = vmatprep.subr.bf16.mxu0 0
        %4881 = vmatpush1.bf16.msra.mxu0 %v4142
        %4882 = vmatprep.subr.bf16.mxu0 0
        %4883 = vmatpush2.bf16.msra.mxu0 0
        %4884 = vmatprep.subr.bf16.mxu0 0
        %4885 = vmatpush2.bf16.msra.mxu0 0
        %4886 = vmatprep.subr.bf16.mxu0 0
        %4887 = vmatpush2.bf16.msra.mxu0 0
        %4888 = vmatprep.subr.bf16.mxu0 0
        %4889 = vmatpush2.bf16.msra.mxu0 0
        %4890 = vmatprep.subr.bf16.mxu0 0
        %4891 = vmatpush2.bf16.msra.mxu0 0
        %4892 = vmatprep.subr.bf16.mxu0 0
        %4893 = vmatpush2.bf16.msra.mxu0 0
        %4894 = vmatprep.subr.bf16.mxu0 0
        %4895 = vmatpush2.bf16.msra.mxu0 0
        %4896 = vmatprep.subr.bf16.mxu0 0
        %4897 = vmatpush2.bf16.msra.mxu0 0
        %4898 = vmatprep.mubr.bf16.mxu0 0
        %4899 = vmatmul.mubr.bf16.gmra.mxu0 %v3510
        %v4900 = vpop.f32.mrf.mxu0
        %v4901 = vadd.f32 %v4740, %v4900
        %v4902 = vpop.f32.mrf.mxu0
        %v4903 = vpop.f32.mrf.mxu0
        %v4904 = vadd.f32 %v4743, %v4903
        %v4905 = vpop.f32.mrf.mxu0
        %4906 = vmatprep.mubr.bf16.mxu0 0
        %4907 = vmatmul.mubr.bf16.gmra.mxu0 %v3519
        %v4908 = vpop.f32.mrf.mxu0
        %v4909 = vadd.f32 %v4748, %v4908
        %v4910 = vpop.f32.mrf.mxu0
        %v4911 = vpop.f32.mrf.mxu0
        %v4912 = vadd.f32 %v4751, %v4911
        %v4913 = vpop.f32.mrf.mxu0
        %4914 = vmatprep.mubr.bf16.mxu0 0
        %4915 = vmatmul.mubr.bf16.gmra.mxu0 %v3528
        %v4916 = vpop.f32.mrf.mxu0
        %v4917 = vadd.f32 %v4756, %v4916
        %v4918 = vpop.f32.mrf.mxu0
        %v4919 = vpop.f32.mrf.mxu0
        %v4920 = vadd.f32 %v4759, %v4919
        %v4921 = vpop.f32.mrf.mxu0
        %4922 = vmatprep.mubr.bf16.mxu0 0
        %4923 = vmatmul.mubr.bf16.gmra.mxu0 %v3537
        %v4924 = vpop.f32.mrf.mxu0
        %v4925 = vadd.f32 %v4764, %v4924
        %v4926 = vpop.f32.mrf.mxu0
        %v4927 = vpop.f32.mrf.mxu0
        %v4928 = vadd.f32 %v4767, %v4927
        %v4929 = vpop.f32.mrf.mxu0
        %4930 = vmatprep.mubr.bf16.mxu0 0
        %4931 = vmatmul.mubr.bf16.gmra.mxu0 %v3546
        %v4932 = vpop.f32.mrf.mxu0
        %v4933 = vadd.f32 %v4772, %v4932
        %v4934 = vpop.f32.mrf.mxu0
        %v4935 = vpop.f32.mrf.mxu0
        %v4936 = vadd.f32 %v4775, %v4935
        %v4937 = vpop.f32.mrf.mxu0
        %4938 = vmatprep.mubr.bf16.mxu0 0
        %4939 = vmatmul.mubr.bf16.gmra.mxu0 %v3555
        %v4940 = vpop.f32.mrf.mxu0
        %v4941 = vadd.f32 %v4780, %v4940
        %v4942 = vpop.f32.mrf.mxu0
        %v4943 = vpop.f32.mrf.mxu0
        %v4944 = vadd.f32 %v4783, %v4943
        %v4945 = vpop.f32.mrf.mxu0
        %4946 = vmatprep.mubr.bf16.mxu0 0
        %4947 = vmatmul.mubr.bf16.gmra.mxu0 %v3564
        %v4948 = vpop.f32.mrf.mxu0
        %v4949 = vadd.f32 %v4788, %v4948
        %v4950 = vpop.f32.mrf.mxu0
        %v4951 = vpop.f32.mrf.mxu0
        %v4952 = vadd.f32 %v4791, %v4951
        %v4953 = vpop.f32.mrf.mxu0
        %4954 = vmatprep.mubr.bf16.mxu0 0
        %4955 = vmatmul.mubr.bf16.gmra.mxu0 %v3573
        %v4956 = vpop.f32.mrf.mxu0
        %v4957 = vadd.f32 %v4796, %v4956
        %v4958 = vpop.f32.mrf.mxu0
        %v4959 = vpop.f32.mrf.mxu0
        %v4960 = vadd.f32 %v4799, %v4959
        %v4961 = vpop.f32.mrf.mxu0
        %4962 = vmatprep.mubr.bf16.mxu0 0
        %4963 = vmatmul.mubr.bf16.gmra.mxu0 %v3582
        %v4964 = vpop.f32.mrf.mxu0
        %v4965 = vadd.f32 %v4804, %v4964
        %v4966 = vpop.f32.mrf.mxu0
        %v4967 = vpop.f32.mrf.mxu0
        %v4968 = vadd.f32 %v4807, %v4967
        %v4969 = vpop.f32.mrf.mxu0
        %4970 = vmatprep.mubr.bf16.mxu0 0
        %4971 = vmatmul.mubr.bf16.gmra.mxu0 %v3591
        %v4972 = vpop.f32.mrf.mxu0
        %v4973 = vadd.f32 %v4812, %v4972
        %v4974 = vpop.f32.mrf.mxu0
        %v4975 = vpop.f32.mrf.mxu0
        %v4976 = vadd.f32 %v4815, %v4975
        %v4977 = vpop.f32.mrf.mxu0
        %4978 = vmatprep.mubr.bf16.mxu0 0
        %4979 = vmatmul.mubr.bf16.gmra.mxu0 %v3600
        %v4980 = vpop.f32.mrf.mxu0
        %v4981 = vadd.f32 %v4820, %v4980
        %v4982 = vpop.f32.mrf.mxu0
        %v4983 = vpop.f32.mrf.mxu0
        %v4984 = vadd.f32 %v4823, %v4983
        %v4985 = vpop.f32.mrf.mxu0
        %4986 = vmatprep.mubr.bf16.mxu0 0
        %4987 = vmatmul.mubr.bf16.gmra.mxu0 %v3609
        %v4988 = vpop.f32.mrf.mxu0
        %v4989 = vadd.f32 %v4828, %v4988
        %v4990 = vpop.f32.mrf.mxu0
        %v4991 = vpop.f32.mrf.mxu0
        %v4992 = vadd.f32 %v4831, %v4991
        %v4993 = vpop.f32.mrf.mxu0
        %4994 = vmatprep.mubr.bf16.mxu0 0
        %4995 = vmatmul.mubr.bf16.gmra.mxu0 %v3618
        %v4996 = vpop.f32.mrf.mxu0
        %v4997 = vadd.f32 %v4836, %v4996
        %v4998 = vpop.f32.mrf.mxu0
        %v4999 = vpop.f32.mrf.mxu0
        %v5000 = vadd.f32 %v4839, %v4999
        %v5001 = vpop.f32.mrf.mxu0
        %5002 = vmatprep.mubr.bf16.mxu0 0
        %5003 = vmatmul.mubr.bf16.gmra.mxu0 %v3627
        %v5004 = vpop.f32.mrf.mxu0
        %v5005 = vadd.f32 %v4844, %v5004
        %v5006 = vpop.f32.mrf.mxu0
        %v5007 = vpop.f32.mrf.mxu0
        %v5008 = vadd.f32 %v4847, %v5007
        %v5009 = vpop.f32.mrf.mxu0
        %5010 = vmatprep.mubr.bf16.mxu0 0
        %5011 = vmatmul.mubr.bf16.gmra.mxu0 %v3636
        %v5012 = vpop.f32.mrf.mxu0
        %v5013 = vadd.f32 %v4852, %v5012
        %v5014 = vpop.f32.mrf.mxu0
        %v5015 = vpop.f32.mrf.mxu0
        %v5016 = vadd.f32 %v4855, %v5015
        %v5017 = vpop.f32.mrf.mxu0
        %5018 = vmatprep.mubr.bf16.mxu0 0
        %5019 = vmatmul.mubr.bf16.gmra.mxu0 %v3645
        %v5020 = vpop.f32.mrf.mxu0
        %v5021 = vadd.f32 %v4860, %v5020
        %v5022 = vpop.f32.mrf.mxu0
        %v5023 = vpop.f32.mrf.mxu0
        %v5024 = vadd.f32 %v4863, %v5023
        %v5025 = vpop.f32.mrf.mxu0
        %5026 = vdwg.mxu0
        %v5027 = vmax.f32 %v4901, 0.0
        %v5028 = vmax.f32 %v4904, 0.0
        %v5029 = vmax.f32 %v4909, 0.0
        %v5030 = vmax.f32 %v4912, 0.0
        %v5031 = vmax.f32 %v4917, 0.0
        %v5032 = vmax.f32 %v4920, 0.0
        %v5033 = vmax.f32 %v4925, 0.0
        %v5034 = vmax.f32 %v4928, 0.0
        %v5035 = vmax.f32 %v4933, 0.0
        %v5036 = vmax.f32 %v4936, 0.0
        %v5037 = vmax.f32 %v4941, 0.0
        %v5038 = vmax.f32 %v4944, 0.0
        %v5039 = vmax.f32 %v4949, 0.0
        %v5040 = vmax.f32 %v4952, 0.0
        %v5041 = vmax.f32 %v4957, 0.0
        %v5042 = vmax.f32 %v4960, 0.0
        %v5043 = vmax.f32 %v4965, 0.0
        %v5044 = vmax.f32 %v4968, 0.0
        %v5045 = vmax.f32 %v4973, 0.0
        %v5046 = vmax.f32 %v4976, 0.0
        %v5047 = vmax.f32 %v4981, 0.0
        %v5048 = vmax.f32 %v4984, 0.0
        %v5049 = vmax.f32 %v4989, 0.0
        %v5050 = vmax.f32 %v4992, 0.0
        %v5051 = vmax.f32 %v4997, 0.0
        %v5052 = vmax.f32 %v5000, 0.0
        %v5053 = vmax.f32 %v5005, 0.0
        %v5054 = vmax.f32 %v5008, 0.0
        %v5055 = vmax.f32 %v5013, 0.0
        %v5056 = vmax.f32 %v5016, 0.0
        %v5057 = vmax.f32 %v5021, 0.0
        %v5058 = vmax.f32 %v5024, 0.0
        %5059 = vst [vmem:[%s210] sm:$0xff] %v5027
        %5060 = vst [vmem:[%s210 + $0x8] sm:$0xff] %v5028
        %5061 = vst [vmem:[%s210 + $0x10] sm:$0xff] %v5029
        %5062 = vst [vmem:[%s210 + $0x18] sm:$0xff] %v5030
        %5063 = vst [vmem:[%s210 + $0x20] sm:$0xff] %v5031
        %5064 = vst [vmem:[%s210 + $0x28] sm:$0xff] %v5032
        %5065 = vst [vmem:[%s210 + $0x30] sm:$0xff] %v5033
        %5066 = vst [vmem:[%s210 + $0x38] sm:$0xff] %v5034
        %5067 = vst [vmem:[%s210 + $0x40] sm:$0xff] %v5035
        %5068 = vst [vmem:[%s210 + $0x48] sm:$0xff] %v5036
        %5069 = vst [vmem:[%s210 + $0x50] sm:$0xff] %v5037
        %5070 = vst [vmem:[%s210 + $0x58] sm:$0xff] %v5038
        %5071 = vst [vmem:[%s210 + $0x60] sm:$0xff] %v5039
        %5072 = vst [vmem:[%s210 + $0x68] sm:$0xff] %v5040
        %5073 = vst [vmem:[%s210 + $0x70] sm:$0xff] %v5041
        %5074 = vst [vmem:[%s210 + $0x78] sm:$0xff] %v5042
        %5075 = vst [vmem:[%s210 + $0x80] sm:$0xff] %v5043
        %5076 = vst [vmem:[%s210 + $0x88] sm:$0xff] %v5044
        %5077 = vst [vmem:[%s210 + $0x90] sm:$0xff] %v5045
        %5078 = vst [vmem:[%s210 + $0x98] sm:$0xff] %v5046
        %5079 = vst [vmem:[%s210 + $0xa0] sm:$0xff] %v5047
        %5080 = vst [vmem:[%s210 + $0xa8] sm:$0xff] %v5048
        %5081 = vst [vmem:[%s210 + $0xb0] sm:$0xff] %v5049
        %5082 = vst [vmem:[%s210 + $0xb8] sm:$0xff] %v5050
        %5083 = vst [vmem:[%s210 + $0xc0] sm:$0xff] %v5051
        %5084 = vst [vmem:[%s210 + $0xc8] sm:$0xff] %v5052
        %5085 = vst [vmem:[%s210 + $0xd0] sm:$0xff] %v5053
        %5086 = vst [vmem:[%s210 + $0xd8] sm:$0xff] %v5054
        %5087 = vst [vmem:[%s210 + $0xe0] sm:$0xff] %v5055
        %5088 = vst [vmem:[%s210 + $0xe8] sm:$0xff] %v5056
        %5089 = vst [vmem:[%s210 + $0xf0] sm:$0xff] %v5057
        %5090 = vst [vmem:[%s210 + $0xf8] sm:$0xff] %v5058
        %s5091 = sand.u32 %s126, 1
        %s5092 = scalar_lea.sflag [#allocation4], %s5091
        %s5093 = sand.u32 %s126, 1
        %s5094 = smul.addr %s5093, 256
        %s5095 = scalar_lea.vmem [#allocation3], %s5094
        // Predicated region
        $region37: #{tpu_custom_call.1} parent=31 // pred_check
          %p5096 = pneg %p136
        $region38: #{tpu_custom_call.1} parent=31 // pred_check_branch
          %5098 = sbr.rel (%p5096) target = $region40
        $region39: #{tpu_custom_call.1} parent=31 // pred_region
          %s5099 = smul.u32 32, %s23
          %s5101 = ssub.s32 4096, 4096
          %5102 = vsyncadd %s5092, %s5101
          %s5103 = sadd.s32 %s24, %s5099
          %s5104 = smul.addr %s22, 32
          %s5105 = sadd.s32 %s5103, %s5104
          %s5106 = smul.addr %s5105, 128
          %s5107 = scalar_lea.hbm %s3, %s5106
          %s5108 = sshll.u32 %s5095, 4
          %s5109 = int_to_ptr.vmem [resolvable:$true] %s5108
          %5114 = dma.vmem_to_hbm [thread:$0]  %s5109, 4096, %s5107, %s5092, 128, 128, 8
        $region40: #{tpu_custom_call.1} parent=31 // pred_fallthru
          _
      $region32: #{tpu_custom_call.1} parent=5 // pred_fallthru
        _
      %p5115 = scmp.le.s32.totalorder 2, %s12
      // Predicated region
      $region41: #{tpu_custom_call.1} parent=5 // pred_check
        %p5116 = pneg %p5115
      $region42: #{tpu_custom_call.1} parent=5 // pred_check_branch
        %5118 = sbr.rel (%p5116) target = $region44
      $region43: #{tpu_custom_call.1} parent=5 // pred_region
        %s5119 = ssub.s32 %s12, 2
        // Predicated region
        $region45: #{tpu_custom_call.1} parent=43 // pred_check
          %p5120 = pneg %p142
        $region46: #{tpu_custom_call.1} parent=43 // pred_check_branch
          %5122 = sbr.rel (%p5120) target = $region48
        $region47: #{tpu_custom_call.1} parent=43 // pred_region
          %s5123 = sand.u32 %s127, 1
          %s5124 = scalar_lea.sflag [#allocation4], %s5123
          %s5125 = sand.u32 %s127, 1
          %s5126 = smul.addr %s5125, 256
          %s5127 = scalar_lea.vmem [#allocation3], %s5126
          %5128 = dma.done %s5124, 4096
        $region48: #{tpu_custom_call.1} parent=43 // pred_fallthru
          _
      $region44: #{tpu_custom_call.1} parent=5 // pred_fallthru
        _
    $region6: #{tpu_custom_call.1} parent=1 // loop_footer
      %s16 = sadd.s32 1, %s12
    $region7: #{tpu_custom_call.1} parent=1 // loop_footer_branch
      %11 = sbr.rel target = $region3
    $region8: #{tpu_custom_call.1} parent=1 // loop_exit
      _
    %5129 = vsyncpa [#allocation4], 1
    %s5130 = scalar_lea.sflag [#allocation4], 1
    %5131 = vsyncpa %s5130, 1

</llo_original>
